<compile_context>
chip_gen: v5e
topology: v5e:2x2
jax: 0.10.0
libtpu: 0.0.40
codegen_flags: <defaults>
</compile_context>

<pallas_src>
import functools

import jax
import jax.numpy as jnp
from jax import lax
from jax.experimental import pallas as pl
from jax.experimental.pallas import tpu as pltpu

_EPS = 1e-5  # matches nn.BatchNorm2d default


def _rep_spec(arr):
    """Full-array block that is identical for every grid step (weights / constants)."""
    shape = arr.shape
    nd = len(shape)
    return pl.BlockSpec(shape, lambda n, _nd=nd: (0,) * _nd)


def _conv3x3_im2col(xp, hi, wi, w_ref):
    """3x3 stride-1 conv of an (already zero-padded) (>=hi+2, >=wi+2, C) value.

    Built as one im2col matmul: 9 shifted windows concatenated along channels
    (K = 9*C) against the (9*C, C_out) weight.
    """
    c = xp.shape[-1]
    cols = [xp[kh:kh + hi, kw:kw + wi, :].reshape(hi * wi, c)
            for kh in range(3) for kw in range(3)]
    a = jnp.concatenate(cols, axis=-1)                              # (hi*wi, 9*C)
    return jnp.dot(a, w_ref[...], preferred_element_type=jnp.float32)


# ---------------------------------------------------------------------------
# The fused BasicBlock kernel (one grid step == one batch sample)
# ---------------------------------------------------------------------------
def _basic_block_kernel(xp_ref, sel_ref, pad2_ref,
                        w1_ref, s1_ref, b1_ref,
                        w2_ref, s2_ref, b2_ref,
                        scw_ref, scs_ref, scb_ref,
                        f1w_ref, f1s_ref, f1b_ref, f2w_ref, f2b_ref,
                        out_ref, gate_ref,
                        *, stride, has_shortcut):
    f32 = jnp.float32
    _, hp, wp, c_in = xp_ref.shape            # (1, H+2, W+2, C_in) zero-padded input
    H, W = hp - 2, wp - 2
    _, Ho, Wo, c_out = out_ref.shape
    hp2 = Ho + 2
    wp2 = pad2_ref.shape[0] // hp2            # conv2's padded width (rounded up to 8)

    xp = xp_ref[0]                            # (H+2, W+2, C_in) -- x read once
    x_flat = xp[1:H + 1, 1:W + 1, :].reshape(H * W, c_in)

    # ---- gating head: global avg pool -> fc1 + BN + ReLU -> fc2; gate = w[:, 1] ----
    pooled = jnp.sum(x_flat, axis=0, keepdims=True) * (1.0 / (H * W))       # (1, C_in)
    h = jnp.dot(pooled, f1w_ref[...], preferred_element_type=f32)
    h = jnp.maximum(h * f1s_ref[...] + f1b_ref[...], 0.0)
    wg = jnp.dot(h, f2w_ref[...], preferred_element_type=f32) + f2b_ref[...]  # (1, 2)
    gate = wg[:, 1:2]                                                          # (1, 1)
    gate_ref[...] = gate.reshape(1, 1, 1)

    # ---- conv1 (3x3, pad 1) + BN1 + ReLU, stride handled by row-selection matmul ----
    y1 = _conv3x3_im2col(xp, H, W, w1_ref)                        # (H*W, C_out)
    if stride != 1:
        # constant 0/1 matrix picks rows (i*stride, j*stride): stride-s conv output
        y1 = jnp.dot(sel_ref[...], y1, preferred_element_type=f32)   # (Ho*Wo, C_out)
    y1 = jnp.maximum(y1 * s1_ref[...] + b1_ref[...], 0.0)

    # ---- conv2 (3x3, stride 1) + BN2; zero-padding done in-kernel via scatter matmul ----
    ypad = jnp.dot(pad2_ref[...], y1, preferred_element_type=f32)    # (hp2*wp2, C_out)
    ypad = ypad.reshape(hp2, wp2, c_out)
    y2 = _conv3x3_im2col(ypad, Ho, Wo, w2_ref)
    y2 = y2 * s2_ref[...] + b2_ref[...]

    # ---- shortcut branch ----
    if has_shortcut:
        xs = x_flat
        if stride != 1:
            xs = jnp.dot(sel_ref[...], x_flat, preferred_element_type=f32)  # (Ho*Wo, C_in)
        sc = (jnp.dot(xs, scw_ref[...], preferred_element_type=f32)
              * scs_ref[...] + scb_ref[...])
    else:
        sc = x_flat                                   # identity shortcut (C_in == C_out)

    # ---- residual add, per-sample gate, final ReLU ----
    out = jnp.maximum(sc + y2 * gate, 0.0)            # (Ho*Wo, C_out)
    out_ref[...] = out.reshape(1, Ho, Wo, c_out)


# ---------------------------------------------------------------------------
# Wrapper: builds constants / specs and launches the single fused kernel
# ---------------------------------------------------------------------------
@functools.partial(jax.jit, static_argnames=("stride",))
def basic_block_forward(x, action, params, *, stride):
    del action  # unused by the PyTorch forward as well
    N, H, W, C_in = x.shape
    C_out = params["conv1_w"].shape[-1]
    Ho = (H - 1) // stride + 1
    Wo = (W - 1) // stride + 1
    has_shortcut = (stride != 1) or (C_in != C_out)
    f32 = jnp.float32

    # glue: one tiny zero-pad of the input; everything else happens inside the kernel.
    xp = jnp.pad(x, ((0, 0), (1, 1), (1, 1), (0, 0)))

    # im2col-ordered conv weights: rows ordered (kh, kw, c_in).
    w1 = params["conv1_w"].reshape(9 * C_in, C_out)
    w2 = params["conv2_w"].reshape(9 * C_out, C_out)

    # Constant 0/1 selection matrix: stride-s spatial subsampling as a matmul.
    if stride != 1:
        rows = (jnp.arange(Ho) * stride)[:, None] * W + (jnp.arange(Wo) * stride)[None, :]
        sel = (rows.reshape(-1, 1) == jnp.arange(H * W)[None, :]).astype(f32)
    else:
        sel = jnp.zeros((1, 1), f32)                  # unused dummy

    # Constant 0/1 scatter matrix: zero-pads conv2's input inside the kernel.
    # Padded width rounded up to a multiple of 8 so in-kernel reshapes stay tile-aligned.
    hp2 = Ho + 2
    wp2 = ((Wo + 2 + 7) // 8) * 8
    ii = jnp.arange(hp2)[:, None]
    jj = jnp.arange(wp2)[None, :]
    inner = (ii - 1) * Wo + (jj - 1)
    valid = (ii >= 1) & (ii <= Ho) & (jj >= 1) & (jj <= Wo)
    tgt = jnp.where(valid, inner, -1).reshape(-1)
    pad2 = (tgt[:, None] == jnp.arange(Ho * Wo)[None, :]).astype(f32)

    if has_shortcut:
        scw = params["sc_w"]
        scs = params["sc_scale"].reshape(1, C_out)
        scb = params["sc_bias"].reshape(1, C_out)
    else:                                             # unused dummies
        scw = jnp.zeros((1, 1), f32)
        scs = jnp.zeros((1, 1), f32)
        scb = jnp.zeros((1, 1), f32)

    consts = (sel, pad2, w1,
              params["bn1_scale"].reshape(1, C_out), params["bn1_bias"].reshape(1, C_out),
              w2,
              params["bn2_scale"].reshape(1, C_out), params["bn2_bias"].reshape(1, C_out),
              scw, scs, scb,
              params["fc1_w"], params["fc1_scale"].reshape(1, 16),
              params["fc1_bias"].reshape(1, 16),
              params["fc2_w"], params["fc2_b"].reshape(1, 2))

    out, gate = pl.pallas_call(
        functools.partial(_basic_block_kernel, stride=stride, has_shortcut=has_shortcut),
        grid=(N,),
        in_specs=[pl.BlockSpec((1, H + 2, W + 2, C_in), lambda n: (n, 0, 0, 0))]
                 + [_rep_spec(c) for c in consts],
        out_specs=(pl.BlockSpec((1, Ho, Wo, C_out), lambda n: (n, 0, 0, 0)),
                   pl.BlockSpec((1, 1, 1), lambda n: (n, 0, 0))),
        out_shape=(jax.ShapeDtypeStruct((N, Ho, Wo, C_out), f32),
                   jax.ShapeDtypeStruct((N, 1, 1), f32)),
        compiler_params=pltpu.CompilerParams(dimension_semantics=("parallel",)),
    )(xp, *consts)

    return out, gate                                  # gate shape (N, 1, 1) == w[:, 1]


# ---------------------------------------------------------------------------
# Parameter init (deterministic, synthetic) + BN folding
# ---------------------------------------------------------------------------
def _bn_params(k, c):
    k1, k2, k3, k4 = jax.random.split(k, 4)
    gamma = 1.0 + 0.1 * jax.random.normal(k1, (c,), jnp.float32)
    beta = 0.1 * jax.random.normal(k2, (c,), jnp.float32)
    mean = 0.1 * jax.random.normal(k3, (c,), jnp.float32)
    var = 0.5 + jax.random.uniform(k4, (c,), jnp.float32)
    return gamma, beta, mean, var


def _fold_bn(gamma, beta, mean, var):
    scale = gamma / jnp.sqrt(var + _EPS)
    bias = beta - mean * scale
    return scale, bias


def init_params(key, input_planes, out_planes):
    ks = jax.random.split(key, 10)
    p = {}
    p["conv1_w"] = 0.1 * jax.random.normal(ks[0], (3, 3, input_planes, out_planes), jnp.float32)
    p["bn1_scale"], p["bn1_bias"] = _fold_bn(*_bn_params(ks[1], out_planes))
    p["conv2_w"] = 0.1 * jax.random.normal(ks[2], (3, 3, out_planes, out_planes), jnp.float32)
    p["bn2_scale"], p["bn2_bias"] = _fold_bn(*_bn_params(ks[3], out_planes))
    # shortcut 1x1 conv + BN (used when stride != 1 or planes differ)
    p["sc_w"] = 0.1 * jax.random.normal(ks[4], (input_planes, out_planes), jnp.float32)
    p["sc_scale"], p["sc_bias"] = _fold_bn(*_bn_params(ks[5], out_planes))
    # gating head: fc1 (1x1 conv, bias) + fc1bn, fc2 (1x1 conv, bias = [0.1, 2.0])
    p["fc1_w"] = 0.1 * jax.random.normal(ks[6], (input_planes, 16), jnp.float32)
    fc1_b = 0.1 * jax.random.normal(ks[7], (16,), jnp.float32)
    g, b, m, v = _bn_params(ks[8], 16)
    s = g / jnp.sqrt(v + _EPS)
    p["fc1_scale"] = s
    p["fc1_bias"] = (fc1_b - m) * s + b               # conv bias folded into BN
    p["fc2_w"] = 0.1 * jax.random.normal(ks[9], (16, 2), jnp.float32)
    p["fc2_b"] = jnp.array([0.1, 2.0], jnp.float32)   # fc2.bias.data = [0.1, 2]
    return p


# ---------------------------------------------------------------------------
# Pure-JAX reference (correctness check)
# ---------------------------------------------------------------------------
def reference_forward(x, params, stride):
    dn = ("NHWC", "HWIO", "NHWC")
    hp = lax.Precision.HIGHEST

    def c3(inp, w, s):
        return lax.conv_general_dilated(inp, w, (s, s), ((1, 1), (1, 1)),
                                        dimension_numbers=dn, precision=hp)

    pooled = jnp.mean(x, axis=(1, 2))
    h = jnp.maximum(pooled @ params["fc1_w"] * params["fc1_scale"] + params["fc1_bias"], 0.0)
    w = h @ params["fc2_w"] + params["fc2_b"]
    gate = w[:, 1]
    out = jnp.maximum(c3(x, params["conv1_w"], stride) * params["bn1_scale"]
                      + params["bn1_bias"], 0.0)
    out = c3(out, params["conv2_w"], 1) * params["bn2_scale"] + params["bn2_bias"]
    C_in = x.shape[-1]
    C_out = params["conv1_w"].shape[-1]
    if stride != 1 or C_in != C_out:
        xs = x[:, ::stride, ::stride, :]
        sc = (xs @ params["sc_w"]) * params["sc_scale"] + params["sc_bias"]
    else:
        sc = x
    out = jnp.maximum(sc + out * gate[:, None, None, None], 0.0)
    return out, gate


if __name__ == "__main__":
    key = jax.random.PRNGKey(0)
    kx1, kp1, kx2, kp2 = jax.random.split(key, 4)

    N, H, W = 2, 16, 16
    action = jnp.zeros((N,), jnp.int32)               # unused by forward (parity only)

    # Case 1: stride-2 downsampling block (1x1-conv + BN shortcut).
    cin, cout, stride = 4, 8, 2
    x = jax.random.normal(kx1, (N, H, W, cin), jnp.float32)       # NHWC
    params = init_params(kp1, cin, cout)
    out, gate = basic_block_forward(x, action, params, stride=stride)
    out = jax.block_until_ready(out)
    gate = jax.block_until_ready(gate)
    ref_out, ref_gate = reference_forward(x, params, stride)
    assert out.shape == (N, H // stride, W // stride, cout), out.shape
    assert gate.shape == (N, 1, 1), gate.shape
    assert jnp.allclose(out, ref_out, rtol=1e-2, atol=1e-2)
    assert jnp.allclose(gate[:, 0, 0], ref_gate, rtol=1e-2, atol=1e-2)

    # Case 2: stride-1 block with identity shortcut.
    x2 = jax.random.normal(kx2, (N, H, W, cout), jnp.float32)
    params2 = init_params(kp2, cout, cout)
    out2, gate2 = basic_block_forward(x2, action, params2, stride=1)
    out2 = jax.block_until_ready(out2)
    gate2 = jax.block_until_ready(gate2)
    ref_out2, ref_gate2 = reference_forward(x2, params2, 1)
    assert out2.shape == (N, H, W, cout), out2.shape
    assert jnp.allclose(out2, ref_out2, rtol=1e-2, atol=1e-2)
    assert jnp.allclose(gate2[:, 0, 0], ref_gate2, rtol=1e-2, atol=1e-2)

    print("KERNEL_OK")
</pallas_src>

<mosaic_0001>
module attributes {stable_mosaic.version = 11 : i64} {
  func.func @_basic_block_kernel(%arg0: i32, %arg1: memref<1x18x18x4xf32, #tpu.memory_space<vmem>>, %arg2: memref<64x256xf32, #tpu.memory_space<vmem>>, %arg3: memref<160x64xf32, #tpu.memory_space<vmem>>, %arg4: memref<36x8xf32, #tpu.memory_space<vmem>>, %arg5: memref<1x8xf32, #tpu.memory_space<vmem>>, %arg6: memref<1x8xf32, #tpu.memory_space<vmem>>, %arg7: memref<72x8xf32, #tpu.memory_space<vmem>>, %arg8: memref<1x8xf32, #tpu.memory_space<vmem>>, %arg9: memref<1x8xf32, #tpu.memory_space<vmem>>, %arg10: memref<4x8xf32, #tpu.memory_space<vmem>>, %arg11: memref<1x8xf32, #tpu.memory_space<vmem>>, %arg12: memref<1x8xf32, #tpu.memory_space<vmem>>, %arg13: memref<4x16xf32, #tpu.memory_space<vmem>>, %arg14: memref<1x16xf32, #tpu.memory_space<vmem>>, %arg15: memref<1x16xf32, #tpu.memory_space<vmem>>, %arg16: memref<16x2xf32, #tpu.memory_space<vmem>>, %arg17: memref<1x2xf32, #tpu.memory_space<vmem>>, %arg18: memref<1x8x8x8xf32, #tpu.memory_space<vmem>>, %arg19: memref<1x1x1xf32, #tpu.memory_space<vmem>>) attributes {dimension_semantics = [#tpu.dimension_semantics<parallel>], iteration_bounds = array<i64: 2>, scalar_prefetch = 0 : i64, scratch_operands = 0 : i64, tpu.core_type = #tpu.core_type<tc>, window_params = [{transform_indices = @transform_0, window_bounds = array<i64: 1, 18, 18, 4>}, {pipeline_mode = #tpu.pipeline_mode<synchronous>, transform_indices = @transform_1, window_bounds = array<i64: 64, 256>}, {pipeline_mode = #tpu.pipeline_mode<synchronous>, transform_indices = @transform_2, window_bounds = array<i64: 160, 64>}, {pipeline_mode = #tpu.pipeline_mode<synchronous>, transform_indices = @transform_3, window_bounds = array<i64: 36, 8>}, {pipeline_mode = #tpu.pipeline_mode<synchronous>, transform_indices = @transform_4, window_bounds = array<i64: 1, 8>}, {pipeline_mode = #tpu.pipeline_mode<synchronous>, transform_indices = @transform_5, window_bounds = array<i64: 1, 8>}, {pipeline_mode = #tpu.pipeline_mode<synchronous>, transform_indices = @transform_6, window_bounds = array<i64: 72, 8>}, {pipeline_mode = #tpu.pipeline_mode<synchronous>, transform_indices = @transform_7, window_bounds = array<i64: 1, 8>}, {pipeline_mode = #tpu.pipeline_mode<synchronous>, transform_indices = @transform_8, window_bounds = array<i64: 1, 8>}, {pipeline_mode = #tpu.pipeline_mode<synchronous>, transform_indices = @transform_9, window_bounds = array<i64: 4, 8>}, {pipeline_mode = #tpu.pipeline_mode<synchronous>, transform_indices = @transform_10, window_bounds = array<i64: 1, 8>}, {pipeline_mode = #tpu.pipeline_mode<synchronous>, transform_indices = @transform_11, window_bounds = array<i64: 1, 8>}, {pipeline_mode = #tpu.pipeline_mode<synchronous>, transform_indices = @transform_12, window_bounds = array<i64: 4, 16>}, {pipeline_mode = #tpu.pipeline_mode<synchronous>, transform_indices = @transform_13, window_bounds = array<i64: 1, 16>}, {pipeline_mode = #tpu.pipeline_mode<synchronous>, transform_indices = @transform_14, window_bounds = array<i64: 1, 16>}, {pipeline_mode = #tpu.pipeline_mode<synchronous>, transform_indices = @transform_15, window_bounds = array<i64: 16, 2>}, {pipeline_mode = #tpu.pipeline_mode<synchronous>, transform_indices = @transform_16, window_bounds = array<i64: 1, 2>}, {transform_indices = @transform_17, window_bounds = array<i64: 1, 8, 8, 8>}, {transform_indices = @transform_18, window_bounds = array<i64: 1, 1, 1>}]} {
    %c0 = arith.constant 0 : index
    %c0_0 = arith.constant 0 : index
    %c0_1 = arith.constant 0 : index
    %c0_2 = arith.constant 0 : index
    %0 = vector.load %arg1[%c0, %c0_0, %c0_1, %c0_2] : memref<1x18x18x4xf32, #tpu.memory_space<vmem>>, vector<1x18x18x4xf32>
    %1 = vector.shape_cast %0 : vector<1x18x18x4xf32> to vector<18x18x4xf32>
    %2 = vector.extract_strided_slice %1 {offsets = [1, 1, 0], sizes = [16, 16, 4], strides = [1, 1, 1]} : vector<18x18x4xf32> to vector<16x16x4xf32>
    %3 = vector.shape_cast %2 : vector<16x16x4xf32> to vector<256x4xf32>
    %cst = arith.constant dense<0.000000e+00> : vector<4xf32>
    %4 = vector.multi_reduction <add>, %3, %cst [0] : vector<256x4xf32> to vector<4xf32>
    %5 = vector.shape_cast %4 : vector<4xf32> to vector<1x4xf32>
    %cst_3 = arith.constant 3.906250e-03 : f32
    %6 = vector.broadcast %cst_3 : f32 to vector<1x4xf32>
    %7 = arith.mulf %5, %6 : vector<1x4xf32>
    %c0_4 = arith.constant 0 : index
    %c0_5 = arith.constant 0 : index
    %8 = vector.load %arg13[%c0_4, %c0_5] : memref<4x16xf32, #tpu.memory_space<vmem>>, vector<4x16xf32>
    %cst_6 = arith.constant dense<0.000000e+00> : vector<1x16xf32>
    %9 = tpu.matmul %7, %8, %cst_6 {dimension_numbers = #tpu.dot_dimension_numbers<[1], [0], [0], [1], [0, 0, 1, 1], [], []>} : vector<1x4xf32>, vector<4x16xf32>, vector<1x16xf32> -> vector<1x16xf32>
    %c0_7 = arith.constant 0 : index
    %c0_8 = arith.constant 0 : index
    %10 = vector.load %arg14[%c0_7, %c0_8] : memref<1x16xf32, #tpu.memory_space<vmem>>, vector<1x16xf32>
    %11 = arith.mulf %9, %10 : vector<1x16xf32>
    %c0_9 = arith.constant 0 : index
    %c0_10 = arith.constant 0 : index
    %12 = vector.load %arg15[%c0_9, %c0_10] : memref<1x16xf32, #tpu.memory_space<vmem>>, vector<1x16xf32>
    %13 = arith.addf %11, %12 : vector<1x16xf32>
    %cst_11 = arith.constant 0.000000e+00 : f32
    %14 = vector.broadcast %cst_11 : f32 to vector<1x16xf32>
    %15 = arith.maximumf %13, %14 : vector<1x16xf32>
    %c0_12 = arith.constant 0 : index
    %c0_13 = arith.constant 0 : index
    %16 = vector.load %arg16[%c0_12, %c0_13] : memref<16x2xf32, #tpu.memory_space<vmem>>, vector<16x2xf32>
    %cst_14 = arith.constant dense<0.000000e+00> : vector<1x2xf32>
    %17 = tpu.matmul %15, %16, %cst_14 {dimension_numbers = #tpu.dot_dimension_numbers<[1], [0], [0], [1], [0, 0, 1, 1], [], []>} : vector<1x16xf32>, vector<16x2xf32>, vector<1x2xf32> -> vector<1x2xf32>
    %c0_15 = arith.constant 0 : index
    %c0_16 = arith.constant 0 : index
    %18 = vector.load %arg17[%c0_15, %c0_16] : memref<1x2xf32, #tpu.memory_space<vmem>>, vector<1x2xf32>
    %19 = arith.addf %17, %18 : vector<1x2xf32>
    %20 = vector.extract_strided_slice %19 {offsets = [0, 1], sizes = [1, 1], strides = [1, 1]} : vector<1x2xf32> to vector<1x1xf32>
    %21 = vector.shape_cast %20 : vector<1x1xf32> to vector<1x1x1xf32>
    %c0_17 = arith.constant 0 : index
    %c0_18 = arith.constant 0 : index
    %c0_19 = arith.constant 0 : index
    %22 = vector.load %arg19[%c0_17, %c0_18, %c0_19] : memref<1x1x1xf32, #tpu.memory_space<vmem>>, vector<1x1x1xf32>
    tpu.vector_store %arg19[%c0_17, %c0_18, %c0_19], %21 {strides = array<i32>} : memref<1x1x1xf32, #tpu.memory_space<vmem>>, vector<1x1x1xf32>,
    %23 = vector.extract_strided_slice %1 {offsets = [0, 0, 0], sizes = [16, 16, 4], strides = [1, 1, 1]} : vector<18x18x4xf32> to vector<16x16x4xf32>
    %24 = vector.shape_cast %23 : vector<16x16x4xf32> to vector<256x4xf32>
    %25 = vector.extract_strided_slice %1 {offsets = [0, 1, 0], sizes = [16, 16, 4], strides = [1, 1, 1]} : vector<18x18x4xf32> to vector<16x16x4xf32>
    %26 = vector.shape_cast %25 : vector<16x16x4xf32> to vector<256x4xf32>
    %27 = vector.extract_strided_slice %1 {offsets = [0, 2, 0], sizes = [16, 16, 4], strides = [1, 1, 1]} : vector<18x18x4xf32> to vector<16x16x4xf32>
    %28 = vector.shape_cast %27 : vector<16x16x4xf32> to vector<256x4xf32>
    %29 = vector.extract_strided_slice %1 {offsets = [1, 0, 0], sizes = [16, 16, 4], strides = [1, 1, 1]} : vector<18x18x4xf32> to vector<16x16x4xf32>
    %30 = vector.shape_cast %29 : vector<16x16x4xf32> to vector<256x4xf32>
    %31 = vector.extract_strided_slice %1 {offsets = [1, 1, 0], sizes = [16, 16, 4], strides = [1, 1, 1]} : vector<18x18x4xf32> to vector<16x16x4xf32>
    %32 = vector.shape_cast %31 : vector<16x16x4xf32> to vector<256x4xf32>
    %33 = vector.extract_strided_slice %1 {offsets = [1, 2, 0], sizes = [16, 16, 4], strides = [1, 1, 1]} : vector<18x18x4xf32> to vector<16x16x4xf32>
    %34 = vector.shape_cast %33 : vector<16x16x4xf32> to vector<256x4xf32>
    %35 = vector.extract_strided_slice %1 {offsets = [2, 0, 0], sizes = [16, 16, 4], strides = [1, 1, 1]} : vector<18x18x4xf32> to vector<16x16x4xf32>
    %36 = vector.shape_cast %35 : vector<16x16x4xf32> to vector<256x4xf32>
    %37 = vector.extract_strided_slice %1 {offsets = [2, 1, 0], sizes = [16, 16, 4], strides = [1, 1, 1]} : vector<18x18x4xf32> to vector<16x16x4xf32>
    %38 = vector.shape_cast %37 : vector<16x16x4xf32> to vector<256x4xf32>
    %39 = vector.extract_strided_slice %1 {offsets = [2, 2, 0], sizes = [16, 16, 4], strides = [1, 1, 1]} : vector<18x18x4xf32> to vector<16x16x4xf32>
    %40 = vector.shape_cast %39 : vector<16x16x4xf32> to vector<256x4xf32>
    %41 = tpu.concatenate %24, %26, %28, %30, %32, %34, %36, %38, %40 in 1 : vector<256x4xf32>, vector<256x4xf32>, vector<256x4xf32>, vector<256x4xf32>, vector<256x4xf32>, vector<256x4xf32>, vector<256x4xf32>, vector<256x4xf32>, vector<256x4xf32> -> vector<256x36xf32>
    %c0_20 = arith.constant 0 : index
    %c0_21 = arith.constant 0 : index
    %42 = vector.load %arg4[%c0_20, %c0_21] : memref<36x8xf32, #tpu.memory_space<vmem>>, vector<36x8xf32>
    %cst_22 = arith.constant dense<0.000000e+00> : vector<256x8xf32>
    %43 = tpu.matmul %41, %42, %cst_22 {dimension_numbers = #tpu.dot_dimension_numbers<[1], [0], [0], [1], [0, 0, 1, 1], [], []>} : vector<256x36xf32>, vector<36x8xf32>, vector<256x8xf32> -> vector<256x8xf32>
    %c0_23 = arith.constant 0 : index
    %c0_24 = arith.constant 0 : index
    %44 = vector.load %arg2[%c0_23, %c0_24] : memref<64x256xf32, #tpu.memory_space<vmem>>, vector<64x256xf32>
    %cst_25 = arith.constant dense<0.000000e+00> : vector<64x8xf32>
    %45 = tpu.matmul %44, %43, %cst_25 {dimension_numbers = #tpu.dot_dimension_numbers<[1], [0], [0], [1], [0, 0, 1, 1], [], []>} : vector<64x256xf32>, vector<256x8xf32>, vector<64x8xf32> -> vector<64x8xf32>
    %c0_26 = arith.constant 0 : index
    %c0_27 = arith.constant 0 : index
    %46 = vector.load %arg5[%c0_26, %c0_27] : memref<1x8xf32, #tpu.memory_space<vmem>>, vector<1x8xf32>
    %47 = vector.broadcast %46 : vector<1x8xf32> to vector<64x8xf32>
    %48 = arith.mulf %45, %47 : vector<64x8xf32>
    %c0_28 = arith.constant 0 : index
    %c0_29 = arith.constant 0 : index
    %49 = vector.load %arg6[%c0_28, %c0_29] : memref<1x8xf32, #tpu.memory_space<vmem>>, vector<1x8xf32>
    %50 = vector.broadcast %49 : vector<1x8xf32> to vector<64x8xf32>
    %51 = arith.addf %48, %50 : vector<64x8xf32>
    %cst_30 = arith.constant 0.000000e+00 : f32
    %52 = vector.broadcast %cst_30 : f32 to vector<64x8xf32>
    %53 = arith.maximumf %51, %52 : vector<64x8xf32>
    %c0_31 = arith.constant 0 : index
    %c0_32 = arith.constant 0 : index
    %54 = vector.load %arg3[%c0_31, %c0_32] : memref<160x64xf32, #tpu.memory_space<vmem>>, vector<160x64xf32>
    %cst_33 = arith.constant dense<0.000000e+00> : vector<160x8xf32>
    %55 = tpu.matmul %54, %53, %cst_33 {dimension_numbers = #tpu.dot_dimension_numbers<[1], [0], [0], [1], [0, 0, 1, 1], [], []>} : vector<160x64xf32>, vector<64x8xf32>, vector<160x8xf32> -> vector<160x8xf32>
    %56 = vector.shape_cast %55 : vector<160x8xf32> to vector<10x16x8xf32>
    %57 = vector.extract_strided_slice %56 {offsets = [0, 0, 0], sizes = [8, 8, 8], strides = [1, 1, 1]} : vector<10x16x8xf32> to vector<8x8x8xf32>
    %58 = vector.shape_cast %57 : vector<8x8x8xf32> to vector<64x8xf32>
    %59 = vector.extract_strided_slice %56 {offsets = [0, 1, 0], sizes = [8, 8, 8], strides = [1, 1, 1]} : vector<10x16x8xf32> to vector<8x8x8xf32>
    %60 = vector.shape_cast %59 : vector<8x8x8xf32> to vector<64x8xf32>
    %61 = vector.extract_strided_slice %56 {offsets = [0, 2, 0], sizes = [8, 8, 8], strides = [1, 1, 1]} : vector<10x16x8xf32> to vector<8x8x8xf32>
    %62 = vector.shape_cast %61 : vector<8x8x8xf32> to vector<64x8xf32>
    %63 = vector.extract_strided_slice %56 {offsets = [1, 0, 0], sizes = [8, 8, 8], strides = [1, 1, 1]} : vector<10x16x8xf32> to vector<8x8x8xf32>
    %64 = vector.shape_cast %63 : vector<8x8x8xf32> to vector<64x8xf32>
    %65 = vector.extract_strided_slice %56 {offsets = [1, 1, 0], sizes = [8, 8, 8], strides = [1, 1, 1]} : vector<10x16x8xf32> to vector<8x8x8xf32>
    %66 = vector.shape_cast %65 : vector<8x8x8xf32> to vector<64x8xf32>
    %67 = vector.extract_strided_slice %56 {offsets = [1, 2, 0], sizes = [8, 8, 8], strides = [1, 1, 1]} : vector<10x16x8xf32> to vector<8x8x8xf32>
    %68 = vector.shape_cast %67 : vector<8x8x8xf32> to vector<64x8xf32>
    %69 = vector.extract_strided_slice %56 {offsets = [2, 0, 0], sizes = [8, 8, 8], strides = [1, 1, 1]} : vector<10x16x8xf32> to vector<8x8x8xf32>
    %70 = vector.shape_cast %69 : vector<8x8x8xf32> to vector<64x8xf32>
    %71 = vector.extract_strided_slice %56 {offsets = [2, 1, 0], sizes = [8, 8, 8], strides = [1, 1, 1]} : vector<10x16x8xf32> to vector<8x8x8xf32>
    %72 = vector.shape_cast %71 : vector<8x8x8xf32> to vector<64x8xf32>
    %73 = vector.extract_strided_slice %56 {offsets = [2, 2, 0], sizes = [8, 8, 8], strides = [1, 1, 1]} : vector<10x16x8xf32> to vector<8x8x8xf32>
    %74 = vector.shape_cast %73 : vector<8x8x8xf32> to vector<64x8xf32>
    %75 = tpu.concatenate %58, %60, %62, %64, %66, %68, %70, %72, %74 in 1 : vector<64x8xf32>, vector<64x8xf32>, vector<64x8xf32>, vector<64x8xf32>, vector<64x8xf32>, vector<64x8xf32>, vector<64x8xf32>, vector<64x8xf32>, vector<64x8xf32> -> vector<64x72xf32>
    %c0_34 = arith.constant 0 : index
    %c0_35 = arith.constant 0 : index
    %76 = vector.load %arg7[%c0_34, %c0_35] : memref<72x8xf32, #tpu.memory_space<vmem>>, vector<72x8xf32>
    %cst_36 = arith.constant dense<0.000000e+00> : vector<64x8xf32>
    %77 = tpu.matmul %75, %76, %cst_36 {dimension_numbers = #tpu.dot_dimension_numbers<[1], [0], [0], [1], [0, 0, 1, 1], [], []>} : vector<64x72xf32>, vector<72x8xf32>, vector<64x8xf32> -> vector<64x8xf32>
    %c0_37 = arith.constant 0 : index
    %c0_38 = arith.constant 0 : index
    %78 = vector.load %arg8[%c0_37, %c0_38] : memref<1x8xf32, #tpu.memory_space<vmem>>, vector<1x8xf32>
    %79 = vector.broadcast %78 : vector<1x8xf32> to vector<64x8xf32>
    %80 = arith.mulf %77, %79 : vector<64x8xf32>
    %c0_39 = arith.constant 0 : index
    %c0_40 = arith.constant 0 : index
    %81 = vector.load %arg9[%c0_39, %c0_40] : memref<1x8xf32, #tpu.memory_space<vmem>>, vector<1x8xf32>
    %82 = vector.broadcast %81 : vector<1x8xf32> to vector<64x8xf32>
    %83 = arith.addf %80, %82 : vector<64x8xf32>
    %c0_41 = arith.constant 0 : index
    %c0_42 = arith.constant 0 : index
    %84 = vector.load %arg2[%c0_41, %c0_42] : memref<64x256xf32, #tpu.memory_space<vmem>>, vector<64x256xf32>
    %cst_43 = arith.constant dense<0.000000e+00> : vector<64x4xf32>
    %85 = tpu.matmul %84, %3, %cst_43 {dimension_numbers = #tpu.dot_dimension_numbers<[1], [0], [0], [1], [0, 0, 1, 1], [], []>} : vector<64x256xf32>, vector<256x4xf32>, vector<64x4xf32> -> vector<64x4xf32>
    %c0_44 = arith.constant 0 : index
    %c0_45 = arith.constant 0 : index
    %86 = vector.load %arg10[%c0_44, %c0_45] : memref<4x8xf32, #tpu.memory_space<vmem>>, vector<4x8xf32>
    %cst_46 = arith.constant dense<0.000000e+00> : vector<64x8xf32>
    %87 = tpu.matmul %85, %86, %cst_46 {dimension_numbers = #tpu.dot_dimension_numbers<[1], [0], [0], [1], [0, 0, 1, 1], [], []>} : vector<64x4xf32>, vector<4x8xf32>, vector<64x8xf32> -> vector<64x8xf32>
    %c0_47 = arith.constant 0 : index
    %c0_48 = arith.constant 0 : index
    %88 = vector.load %arg11[%c0_47, %c0_48] : memref<1x8xf32, #tpu.memory_space<vmem>>, vector<1x8xf32>
    %89 = vector.broadcast %88 : vector<1x8xf32> to vector<64x8xf32>
    %90 = arith.mulf %87, %89 : vector<64x8xf32>
    %c0_49 = arith.constant 0 : index
    %c0_50 = arith.constant 0 : index
    %91 = vector.load %arg12[%c0_49, %c0_50] : memref<1x8xf32, #tpu.memory_space<vmem>>, vector<1x8xf32>
    %92 = vector.broadcast %91 : vector<1x8xf32> to vector<64x8xf32>
    %93 = arith.addf %90, %92 : vector<64x8xf32>
    %94 = vector.broadcast %20 : vector<1x1xf32> to vector<64x8xf32>
    %95 = arith.mulf %83, %94 : vector<64x8xf32>
    %96 = arith.addf %93, %95 : vector<64x8xf32>
    %cst_51 = arith.constant 0.000000e+00 : f32
    %97 = vector.broadcast %cst_51 : f32 to vector<64x8xf32>
    %98 = arith.maximumf %96, %97 : vector<64x8xf32>
    %99 = vector.shape_cast %98 : vector<64x8xf32> to vector<1x8x8x8xf32>
    %c0_52 = arith.constant 0 : index
    %c0_53 = arith.constant 0 : index
    %c0_54 = arith.constant 0 : index
    %c0_55 = arith.constant 0 : index
    %100 = vector.load %arg18[%c0_52, %c0_53, %c0_54, %c0_55] : memref<1x8x8x8xf32, #tpu.memory_space<vmem>>, vector<1x8x8x8xf32>
    tpu.vector_store %arg18[%c0_52, %c0_53, %c0_54, %c0_55], %99 {strides = array<i32>} : memref<1x8x8x8xf32, #tpu.memory_space<vmem>>, vector<1x8x8x8xf32>,
    return
  }
  func.func @transform_0(%arg0: i32) -> (i32, i32, i32, i32) {
    %c0_i32 = arith.constant 0 : i32
    %c0_i32_0 = arith.constant 0 : i32
    %c0_i32_1 = arith.constant 0 : i32
    %c0_i32_2 = arith.constant 0 : i32
    return %arg0, %c0_i32, %c0_i32_0, %c0_i32_1 : i32, i32, i32, i32
  }
  func.func @transform_1(%arg0: i32) -> (i32, i32) {
    %c0_i32 = arith.constant 0 : i32
    %c0_i32_0 = arith.constant 0 : i32
    %c0_i32_1 = arith.constant 0 : i32
    return %c0_i32, %c0_i32_0 : i32, i32
  }
  func.func @transform_2(%arg0: i32) -> (i32, i32) {
    %c0_i32 = arith.constant 0 : i32
    %c0_i32_0 = arith.constant 0 : i32
    %c0_i32_1 = arith.constant 0 : i32
    return %c0_i32, %c0_i32_0 : i32, i32
  }
  func.func @transform_3(%arg0: i32) -> (i32, i32) {
    %c0_i32 = arith.constant 0 : i32
    %c0_i32_0 = arith.constant 0 : i32
    %c0_i32_1 = arith.constant 0 : i32
    return %c0_i32, %c0_i32_0 : i32, i32
  }
  func.func @transform_4(%arg0: i32) -> (i32, i32) {
    %c0_i32 = arith.constant 0 : i32
    %c0_i32_0 = arith.constant 0 : i32
    %c0_i32_1 = arith.constant 0 : i32
    return %c0_i32, %c0_i32_0 : i32, i32
  }
  func.func @transform_5(%arg0: i32) -> (i32, i32) {
    %c0_i32 = arith.constant 0 : i32
    %c0_i32_0 = arith.constant 0 : i32
    %c0_i32_1 = arith.constant 0 : i32
    return %c0_i32, %c0_i32_0 : i32, i32
  }
  func.func @transform_6(%arg0: i32) -> (i32, i32) {
    %c0_i32 = arith.constant 0 : i32
    %c0_i32_0 = arith.constant 0 : i32
    %c0_i32_1 = arith.constant 0 : i32
    return %c0_i32, %c0_i32_0 : i32, i32
  }
  func.func @transform_7(%arg0: i32) -> (i32, i32) {
    %c0_i32 = arith.constant 0 : i32
    %c0_i32_0 = arith.constant 0 : i32
    %c0_i32_1 = arith.constant 0 : i32
    return %c0_i32, %c0_i32_0 : i32, i32
  }
  func.func @transform_8(%arg0: i32) -> (i32, i32) {
    %c0_i32 = arith.constant 0 : i32
    %c0_i32_0 = arith.constant 0 : i32
    %c0_i32_1 = arith.constant 0 : i32
    return %c0_i32, %c0_i32_0 : i32, i32
  }
  func.func @transform_9(%arg0: i32) -> (i32, i32) {
    %c0_i32 = arith.constant 0 : i32
    %c0_i32_0 = arith.constant 0 : i32
    %c0_i32_1 = arith.constant 0 : i32
    return %c0_i32, %c0_i32_0 : i32, i32
  }
  func.func @transform_10(%arg0: i32) -> (i32, i32) {
    %c0_i32 = arith.constant 0 : i32
    %c0_i32_0 = arith.constant 0 : i32
    %c0_i32_1 = arith.constant 0 : i32
    return %c0_i32, %c0_i32_0 : i32, i32
  }
  func.func @transform_11(%arg0: i32) -> (i32, i32) {
    %c0_i32 = arith.constant 0 : i32
    %c0_i32_0 = arith.constant 0 : i32
    %c0_i32_1 = arith.constant 0 : i32
    return %c0_i32, %c0_i32_0 : i32, i32
  }
  func.func @transform_12(%arg0: i32) -> (i32, i32) {
    %c0_i32 = arith.constant 0 : i32
    %c0_i32_0 = arith.constant 0 : i32
    %c0_i32_1 = arith.constant 0 : i32
    return %c0_i32, %c0_i32_0 : i32, i32
  }
  func.func @transform_13(%arg0: i32) -> (i32, i32) {
    %c0_i32 = arith.constant 0 : i32
    %c0_i32_0 = arith.constant 0 : i32
    %c0_i32_1 = arith.constant 0 : i32
    return %c0_i32, %c0_i32_0 : i32, i32
  }
  func.func @transform_14(%arg0: i32) -> (i32, i32) {
    %c0_i32 = arith.constant 0 : i32
    %c0_i32_0 = arith.constant 0 : i32
    %c0_i32_1 = arith.constant 0 : i32
    return %c0_i32, %c0_i32_0 : i32, i32
  }
  func.func @transform_15(%arg0: i32) -> (i32, i32) {
    %c0_i32 = arith.constant 0 : i32
    %c0_i32_0 = arith.constant 0 : i32
    %c0_i32_1 = arith.constant 0 : i32
    return %c0_i32, %c0_i32_0 : i32, i32
  }
  func.func @transform_16(%arg0: i32) -> (i32, i32) {
    %c0_i32 = arith.constant 0 : i32
    %c0_i32_0 = arith.constant 0 : i32
    %c0_i32_1 = arith.constant 0 : i32
    return %c0_i32, %c0_i32_0 : i32, i32
  }
  func.func @transform_17(%arg0: i32) -> (i32, i32, i32, i32) {
    %c0_i32 = arith.constant 0 : i32
    %c0_i32_0 = arith.constant 0 : i32
    %c0_i32_1 = arith.constant 0 : i32
    %c0_i32_2 = arith.constant 0 : i32
    return %arg0, %c0_i32, %c0_i32_0, %c0_i32_1 : i32, i32, i32, i32
  }
  func.func @transform_18(%arg0: i32) -> (i32, i32, i32) {
    %c0_i32 = arith.constant 0 : i32
    %c0_i32_0 = arith.constant 0 : i32
    %c0_i32_1 = arith.constant 0 : i32
    return %arg0, %c0_i32, %c0_i32_0 : i32, i32, i32
  }
}

</mosaic_0001>

<llo_original>
// kernel: basic_block_forward.1
$region0: #{basic_block_forward.1}
  #allocation0 [shape = 'u32[]', space=smem, size = 0x4, offset = 0x4, fixed_abs, tag = 'smem constant byte address 0x4 - core index']
  #allocation1 [shape = 'u32[72,128]{1,0:T(1,128)}', space=vmem, size = 0x9000, scoped, tag = 'internal scratch']
  %s0 = inlined_call_operand.vmem [shape: f32[2,18,18,4], index: 0, kind: input, shape index: {}]
  %s1 = inlined_call_operand.vmem [shape: f32[64,256], index: 1, kind: input, shape index: {}]
  %s2 = inlined_call_operand.vmem [shape: f32[160,64], index: 2, kind: input, shape index: {}]
  %s3 = inlined_call_operand.vmem [shape: f32[36,8], index: 3, kind: input, shape index: {}]
  %s4 = inlined_call_operand.vmem [shape: f32[1,8], index: 4, kind: input, shape index: {}]
  %s5 = inlined_call_operand.vmem [shape: f32[1,8], index: 5, kind: input, shape index: {}]
  %s6 = inlined_call_operand.vmem [shape: f32[72,8], index: 6, kind: input, shape index: {}]
  %s7 = inlined_call_operand.vmem [shape: f32[1,8], index: 7, kind: input, shape index: {}]
  %s8 = inlined_call_operand.vmem [shape: f32[1,8], index: 8, kind: input, shape index: {}]
  %s9 = inlined_call_operand.vmem [shape: f32[4,8], index: 9, kind: input, shape index: {}]
  %s10 = inlined_call_operand.vmem [shape: f32[1,8], index: 10, kind: input, shape index: {}]
  %s11 = inlined_call_operand.vmem [shape: f32[1,8], index: 11, kind: input, shape index: {}]
  %s12 = inlined_call_operand.vmem [shape: f32[4,16], index: 12, kind: input, shape index: {}]
  %s13 = inlined_call_operand.vmem [shape: f32[1,16], index: 13, kind: input, shape index: {}]
  %s14 = inlined_call_operand.vmem [shape: f32[1,16], index: 14, kind: input, shape index: {}]
  %s15 = inlined_call_operand.vmem [shape: f32[16,2], index: 15, kind: input, shape index: {}]
  %s16 = inlined_call_operand.vmem [shape: f32[1,2], index: 16, kind: input, shape index: {}]
  %s17 = inlined_call_operand.hbm [shape: f32[2,8,8,8], index: 17, kind: output, shape index: {0}]
  %s18 = inlined_call_operand.vmem [shape: f32[2,1,1], index: 18, kind: output, shape index: {1}]
  %19 = xla_tuple %s17, %s18
  %s20 = sld [smem:[#allocation0]]
  $region109: #{basic_block_forward.1} parent=0
    _
  %s22 = ssub.s32 1, %s20
  %s23 = scalar_select 0, %s22, %s20
  $region1: #{basic_block_forward.1} parent=0
    #allocation2 [shape = 'u8[65536]{0}', space=vmem, size = 0x10000, scoped, tag = 'output window, operand 0']
    #allocation3 [shape = 's32[2]{0}', space=sflag, size = 0x8, scoped, tag = 'scoped memory for basic_block_forward.1']
    %24 = vsyncpa [#allocation3], 0
    %s25 = scalar_lea.sflag [#allocation3], 1
    %26 = vsyncpa %s25, 0
    loop: start=0, step=1, limit=4
    $region2: #{basic_block_forward.1} parent=1 // loop_pre_header
      _
    $region3: #{basic_block_forward.1} parent=1 // loop_header
      %s28 = sphi 0, %s32
      %p29 = scmp.ge.s32.totalorder %s28, 4
      %s38 = sphi 0, %s40
      %s41 = sphi 0, %s38
      %s42 = sphi 0, %s41
      %s58 = sphi 0, %s42
      %s62 = sphi 0, %s62
      %s64 = sphi 0, %s62
      %s65 = sphi 0, %s64
      %s79 = sphi 0, %s65
      %s83 = sphi 0, %s83
      %s85 = sphi 0, %s83
      %s86 = sphi 0, %s85
      %s100 = sphi 0, %s86
      %s104 = sphi 0, %s104
      %s106 = sphi 0, %s104
      %s107 = sphi 0, %s106
      %s121 = sphi 0, %s107
      %s125 = sphi 0, %s125
      %s127 = sphi 0, %s125
      %s128 = sphi 0, %s127
      %s142 = sphi 0, %s128
      %s146 = sphi 0, %s146
      %s148 = sphi 0, %s146
      %s149 = sphi 0, %s148
      %s163 = sphi 0, %s149
      %s167 = sphi 0, %s167
      %s169 = sphi 0, %s167
      %s170 = sphi 0, %s169
      %s184 = sphi 0, %s170
      %s188 = sphi 0, %s188
      %s190 = sphi 0, %s188
      %s191 = sphi 0, %s190
      %s205 = sphi 0, %s191
      %s209 = sphi 0, %s209
      %s211 = sphi 0, %s209
      %s212 = sphi 0, %s211
      %s226 = sphi 0, %s212
      %s230 = sphi 0, %s230
      %s232 = sphi 0, %s230
      %s233 = sphi 0, %s232
      %s247 = sphi 0, %s233
      %s251 = sphi 0, %s251
      %s253 = sphi 0, %s251
      %s254 = sphi 0, %s253
      %s268 = sphi 0, %s254
      %s272 = sphi 0, %s272
      %s274 = sphi 0, %s272
      %s275 = sphi 0, %s274
      %s289 = sphi 0, %s275
      %s293 = sphi 0, %s293
      %s295 = sphi 0, %s293
      %s296 = sphi 0, %s295
      %s310 = sphi 0, %s296
      %s314 = sphi 0, %s314
      %s316 = sphi 0, %s314
      %s317 = sphi 0, %s316
      %s331 = sphi 0, %s317
      %s335 = sphi 0, %s335
      %s337 = sphi 0, %s335
      %s338 = sphi 0, %s337
      %s352 = sphi 0, %s338
      %s356 = sphi 0, %s356
      %s358 = sphi 0, %s356
      %s359 = sphi 0, %s358
      %s373 = sphi 0, %s359
      %s377 = sphi 0, %s377
      %s379 = sphi 0, %s377
      %s380 = sphi 0, %s379
      %s394 = sphi 0, %s380
      %s400 = sphi 0, %s402
      %s403 = sphi 0, %s400
      %s404 = sphi 0, %s403
      %s420 = sphi 0, %s404
      %s426 = sphi 0, %s428
      %s429 = sphi 0, %s426
      %s430 = sphi 0, %s429
      %s446 = sphi 0, %s430
    $region4: #{basic_block_forward.1} parent=1 // loop_header_branch
      %31 = sbr.rel (%p29) target = $region8
    $region5: #{basic_block_forward.1} parent=1 // loop_body
      %s33 = ssub.s32 %s28, 1
      %s34 = ssub.s32 %s28, 2
      %s35 = sadd.s32 %s28, 1
      %s36 = ssub.s32 %s28, %s35
      %p37 = scmp.eq.s32.totalorder %s36, 0
      %s39 = sadd.s32 %s38, 1
      %s40 = scalar_select %p37, %s38, %s39
      %p43 = pneg %p37
      %p44 = scmp.eq.s32.totalorder %s28, 1
      %p45 = por %p43, %p44
      %p46 = scmp.ne.s32.totalorder %s38, %s41
      %p47 = scmp.eq.s32.totalorder %s28, 0
      %p48 = por %p46, %p47
      %p49 = scmp.ne.s32.totalorder %s38, %s41
      %p50 = scmp.eq.s32.totalorder %s33, 1
      %p51 = por %p49, %p50
      %p52 = scmp.ne.s32.totalorder %s41, %s42
      %p53 = scmp.eq.s32.totalorder %s33, 0
      %p54 = por %p52, %p53
      %p55 = scmp.ne.s32.totalorder %s41, %s42
      %p56 = scmp.eq.s32.totalorder %s34, 1
      %p57 = por %p55, %p56
      %p59 = scmp.ne.s32.totalorder %s42, %s58
      %p60 = scmp.eq.s32.totalorder %s34, 0
      %p61 = por %p59, %p60
      %s63 = sadd.s32 %s62, 1
      %p66 = scmp.eq.s32.totalorder %s28, 1
      %p67 = scmp.ne.s32.totalorder %s62, %s64
      %p68 = scmp.eq.s32.totalorder %s28, 0
      %p69 = por %p67, %p68
      %p70 = scmp.ne.s32.totalorder %s62, %s64
      %p71 = scmp.eq.s32.totalorder %s33, 1
      %p72 = por %p70, %p71
      %p73 = scmp.ne.s32.totalorder %s64, %s65
      %p74 = scmp.eq.s32.totalorder %s33, 0
      %p75 = por %p73, %p74
      %p76 = scmp.ne.s32.totalorder %s64, %s65
      %p77 = scmp.eq.s32.totalorder %s34, 1
      %p78 = por %p76, %p77
      %p80 = scmp.ne.s32.totalorder %s65, %s79
      %p81 = scmp.eq.s32.totalorder %s34, 0
      %p82 = por %p80, %p81
      %s84 = sadd.s32 %s83, 1
      %p87 = scmp.eq.s32.totalorder %s28, 1
      %p88 = scmp.ne.s32.totalorder %s83, %s85
      %p89 = scmp.eq.s32.totalorder %s28, 0
      %p90 = por %p88, %p89
      %p91 = scmp.ne.s32.totalorder %s83, %s85
      %p92 = scmp.eq.s32.totalorder %s33, 1
      %p93 = por %p91, %p92
      %p94 = scmp.ne.s32.totalorder %s85, %s86
      %p95 = scmp.eq.s32.totalorder %s33, 0
      %p96 = por %p94, %p95
      %p97 = scmp.ne.s32.totalorder %s85, %s86
      %p98 = scmp.eq.s32.totalorder %s34, 1
      %p99 = por %p97, %p98
      %p101 = scmp.ne.s32.totalorder %s86, %s100
      %p102 = scmp.eq.s32.totalorder %s34, 0
      %p103 = por %p101, %p102
      %s105 = sadd.s32 %s104, 1
      %p108 = scmp.eq.s32.totalorder %s28, 1
      %p109 = scmp.ne.s32.totalorder %s104, %s106
      %p110 = scmp.eq.s32.totalorder %s28, 0
      %p111 = por %p109, %p110
      %p112 = scmp.ne.s32.totalorder %s104, %s106
      %p113 = scmp.eq.s32.totalorder %s33, 1
      %p114 = por %p112, %p113
      %p115 = scmp.ne.s32.totalorder %s106, %s107
      %p116 = scmp.eq.s32.totalorder %s33, 0
      %p117 = por %p115, %p116
      %p118 = scmp.ne.s32.totalorder %s106, %s107
      %p119 = scmp.eq.s32.totalorder %s34, 1
      %p120 = por %p118, %p119
      %p122 = scmp.ne.s32.totalorder %s107, %s121
      %p123 = scmp.eq.s32.totalorder %s34, 0
      %p124 = por %p122, %p123
      %s126 = sadd.s32 %s125, 1
      %p129 = scmp.eq.s32.totalorder %s28, 1
      %p130 = scmp.ne.s32.totalorder %s125, %s127
      %p131 = scmp.eq.s32.totalorder %s28, 0
      %p132 = por %p130, %p131
      %p133 = scmp.ne.s32.totalorder %s125, %s127
      %p134 = scmp.eq.s32.totalorder %s33, 1
      %p135 = por %p133, %p134
      %p136 = scmp.ne.s32.totalorder %s127, %s128
      %p137 = scmp.eq.s32.totalorder %s33, 0
      %p138 = por %p136, %p137
      %p139 = scmp.ne.s32.totalorder %s127, %s128
      %p140 = scmp.eq.s32.totalorder %s34, 1
      %p141 = por %p139, %p140
      %p143 = scmp.ne.s32.totalorder %s128, %s142
      %p144 = scmp.eq.s32.totalorder %s34, 0
      %p145 = por %p143, %p144
      %s147 = sadd.s32 %s146, 1
      %p150 = scmp.eq.s32.totalorder %s28, 1
      %p151 = scmp.ne.s32.totalorder %s146, %s148
      %p152 = scmp.eq.s32.totalorder %s28, 0
      %p153 = por %p151, %p152
      %p154 = scmp.ne.s32.totalorder %s146, %s148
      %p155 = scmp.eq.s32.totalorder %s33, 1
      %p156 = por %p154, %p155
      %p157 = scmp.ne.s32.totalorder %s148, %s149
      %p158 = scmp.eq.s32.totalorder %s33, 0
      %p159 = por %p157, %p158
      %p160 = scmp.ne.s32.totalorder %s148, %s149
      %p161 = scmp.eq.s32.totalorder %s34, 1
      %p162 = por %p160, %p161
      %p164 = scmp.ne.s32.totalorder %s149, %s163
      %p165 = scmp.eq.s32.totalorder %s34, 0
      %p166 = por %p164, %p165
      %s168 = sadd.s32 %s167, 1
      %p171 = scmp.eq.s32.totalorder %s28, 1
      %p172 = scmp.ne.s32.totalorder %s167, %s169
      %p173 = scmp.eq.s32.totalorder %s28, 0
      %p174 = por %p172, %p173
      %p175 = scmp.ne.s32.totalorder %s167, %s169
      %p176 = scmp.eq.s32.totalorder %s33, 1
      %p177 = por %p175, %p176
      %p178 = scmp.ne.s32.totalorder %s169, %s170
      %p179 = scmp.eq.s32.totalorder %s33, 0
      %p180 = por %p178, %p179
      %p181 = scmp.ne.s32.totalorder %s169, %s170
      %p182 = scmp.eq.s32.totalorder %s34, 1
      %p183 = por %p181, %p182
      %p185 = scmp.ne.s32.totalorder %s170, %s184
      %p186 = scmp.eq.s32.totalorder %s34, 0
      %p187 = por %p185, %p186
      %s189 = sadd.s32 %s188, 1
      %p192 = scmp.eq.s32.totalorder %s28, 1
      %p193 = scmp.ne.s32.totalorder %s188, %s190
      %p194 = scmp.eq.s32.totalorder %s28, 0
      %p195 = por %p193, %p194
      %p196 = scmp.ne.s32.totalorder %s188, %s190
      %p197 = scmp.eq.s32.totalorder %s33, 1
      %p198 = por %p196, %p197
      %p199 = scmp.ne.s32.totalorder %s190, %s191
      %p200 = scmp.eq.s32.totalorder %s33, 0
      %p201 = por %p199, %p200
      %p202 = scmp.ne.s32.totalorder %s190, %s191
      %p203 = scmp.eq.s32.totalorder %s34, 1
      %p204 = por %p202, %p203
      %p206 = scmp.ne.s32.totalorder %s191, %s205
      %p207 = scmp.eq.s32.totalorder %s34, 0
      %p208 = por %p206, %p207
      %s210 = sadd.s32 %s209, 1
      %p213 = scmp.eq.s32.totalorder %s28, 1
      %p214 = scmp.ne.s32.totalorder %s209, %s211
      %p215 = scmp.eq.s32.totalorder %s28, 0
      %p216 = por %p214, %p215
      %p217 = scmp.ne.s32.totalorder %s209, %s211
      %p218 = scmp.eq.s32.totalorder %s33, 1
      %p219 = por %p217, %p218
      %p220 = scmp.ne.s32.totalorder %s211, %s212
      %p221 = scmp.eq.s32.totalorder %s33, 0
      %p222 = por %p220, %p221
      %p223 = scmp.ne.s32.totalorder %s211, %s212
      %p224 = scmp.eq.s32.totalorder %s34, 1
      %p225 = por %p223, %p224
      %p227 = scmp.ne.s32.totalorder %s212, %s226
      %p228 = scmp.eq.s32.totalorder %s34, 0
      %p229 = por %p227, %p228
      %s231 = sadd.s32 %s230, 1
      %p234 = scmp.eq.s32.totalorder %s28, 1
      %p235 = scmp.ne.s32.totalorder %s230, %s232
      %p236 = scmp.eq.s32.totalorder %s28, 0
      %p237 = por %p235, %p236
      %p238 = scmp.ne.s32.totalorder %s230, %s232
      %p239 = scmp.eq.s32.totalorder %s33, 1
      %p240 = por %p238, %p239
      %p241 = scmp.ne.s32.totalorder %s232, %s233
      %p242 = scmp.eq.s32.totalorder %s33, 0
      %p243 = por %p241, %p242
      %p244 = scmp.ne.s32.totalorder %s232, %s233
      %p245 = scmp.eq.s32.totalorder %s34, 1
      %p246 = por %p244, %p245
      %p248 = scmp.ne.s32.totalorder %s233, %s247
      %p249 = scmp.eq.s32.totalorder %s34, 0
      %p250 = por %p248, %p249
      %s252 = sadd.s32 %s251, 1
      %p255 = scmp.eq.s32.totalorder %s28, 1
      %p256 = scmp.ne.s32.totalorder %s251, %s253
      %p257 = scmp.eq.s32.totalorder %s28, 0
      %p258 = por %p256, %p257
      %p259 = scmp.ne.s32.totalorder %s251, %s253
      %p260 = scmp.eq.s32.totalorder %s33, 1
      %p261 = por %p259, %p260
      %p262 = scmp.ne.s32.totalorder %s253, %s254
      %p263 = scmp.eq.s32.totalorder %s33, 0
      %p264 = por %p262, %p263
      %p265 = scmp.ne.s32.totalorder %s253, %s254
      %p266 = scmp.eq.s32.totalorder %s34, 1
      %p267 = por %p265, %p266
      %p269 = scmp.ne.s32.totalorder %s254, %s268
      %p270 = scmp.eq.s32.totalorder %s34, 0
      %p271 = por %p269, %p270
      %s273 = sadd.s32 %s272, 1
      %p276 = scmp.eq.s32.totalorder %s28, 1
      %p277 = scmp.ne.s32.totalorder %s272, %s274
      %p278 = scmp.eq.s32.totalorder %s28, 0
      %p279 = por %p277, %p278
      %p280 = scmp.ne.s32.totalorder %s272, %s274
      %p281 = scmp.eq.s32.totalorder %s33, 1
      %p282 = por %p280, %p281
      %p283 = scmp.ne.s32.totalorder %s274, %s275
      %p284 = scmp.eq.s32.totalorder %s33, 0
      %p285 = por %p283, %p284
      %p286 = scmp.ne.s32.totalorder %s274, %s275
      %p287 = scmp.eq.s32.totalorder %s34, 1
      %p288 = por %p286, %p287
      %p290 = scmp.ne.s32.totalorder %s275, %s289
      %p291 = scmp.eq.s32.totalorder %s34, 0
      %p292 = por %p290, %p291
      %s294 = sadd.s32 %s293, 1
      %p297 = scmp.eq.s32.totalorder %s28, 1
      %p298 = scmp.ne.s32.totalorder %s293, %s295
      %p299 = scmp.eq.s32.totalorder %s28, 0
      %p300 = por %p298, %p299
      %p301 = scmp.ne.s32.totalorder %s293, %s295
      %p302 = scmp.eq.s32.totalorder %s33, 1
      %p303 = por %p301, %p302
      %p304 = scmp.ne.s32.totalorder %s295, %s296
      %p305 = scmp.eq.s32.totalorder %s33, 0
      %p306 = por %p304, %p305
      %p307 = scmp.ne.s32.totalorder %s295, %s296
      %p308 = scmp.eq.s32.totalorder %s34, 1
      %p309 = por %p307, %p308
      %p311 = scmp.ne.s32.totalorder %s296, %s310
      %p312 = scmp.eq.s32.totalorder %s34, 0
      %p313 = por %p311, %p312
      %s315 = sadd.s32 %s314, 1
      %p318 = scmp.eq.s32.totalorder %s28, 1
      %p319 = scmp.ne.s32.totalorder %s314, %s316
      %p320 = scmp.eq.s32.totalorder %s28, 0
      %p321 = por %p319, %p320
      %p322 = scmp.ne.s32.totalorder %s314, %s316
      %p323 = scmp.eq.s32.totalorder %s33, 1
      %p324 = por %p322, %p323
      %p325 = scmp.ne.s32.totalorder %s316, %s317
      %p326 = scmp.eq.s32.totalorder %s33, 0
      %p327 = por %p325, %p326
      %p328 = scmp.ne.s32.totalorder %s316, %s317
      %p329 = scmp.eq.s32.totalorder %s34, 1
      %p330 = por %p328, %p329
      %p332 = scmp.ne.s32.totalorder %s317, %s331
      %p333 = scmp.eq.s32.totalorder %s34, 0
      %p334 = por %p332, %p333
      %s336 = sadd.s32 %s335, 1
      %p339 = scmp.eq.s32.totalorder %s28, 1
      %p340 = scmp.ne.s32.totalorder %s335, %s337
      %p341 = scmp.eq.s32.totalorder %s28, 0
      %p342 = por %p340, %p341
      %p343 = scmp.ne.s32.totalorder %s335, %s337
      %p344 = scmp.eq.s32.totalorder %s33, 1
      %p345 = por %p343, %p344
      %p346 = scmp.ne.s32.totalorder %s337, %s338
      %p347 = scmp.eq.s32.totalorder %s33, 0
      %p348 = por %p346, %p347
      %p349 = scmp.ne.s32.totalorder %s337, %s338
      %p350 = scmp.eq.s32.totalorder %s34, 1
      %p351 = por %p349, %p350
      %p353 = scmp.ne.s32.totalorder %s338, %s352
      %p354 = scmp.eq.s32.totalorder %s34, 0
      %p355 = por %p353, %p354
      %s357 = sadd.s32 %s356, 1
      %p360 = scmp.eq.s32.totalorder %s28, 1
      %p361 = scmp.ne.s32.totalorder %s356, %s358
      %p362 = scmp.eq.s32.totalorder %s28, 0
      %p363 = por %p361, %p362
      %p364 = scmp.ne.s32.totalorder %s356, %s358
      %p365 = scmp.eq.s32.totalorder %s33, 1
      %p366 = por %p364, %p365
      %p367 = scmp.ne.s32.totalorder %s358, %s359
      %p368 = scmp.eq.s32.totalorder %s33, 0
      %p369 = por %p367, %p368
      %p370 = scmp.ne.s32.totalorder %s358, %s359
      %p371 = scmp.eq.s32.totalorder %s34, 1
      %p372 = por %p370, %p371
      %p374 = scmp.ne.s32.totalorder %s359, %s373
      %p375 = scmp.eq.s32.totalorder %s34, 0
      %p376 = por %p374, %p375
      %s378 = sadd.s32 %s377, 1
      %p381 = scmp.eq.s32.totalorder %s28, 1
      %p382 = scmp.ne.s32.totalorder %s377, %s379
      %p383 = scmp.eq.s32.totalorder %s28, 0
      %p384 = por %p382, %p383
      %p385 = scmp.ne.s32.totalorder %s377, %s379
      %p386 = scmp.eq.s32.totalorder %s33, 1
      %p387 = por %p385, %p386
      %p388 = scmp.ne.s32.totalorder %s379, %s380
      %p389 = scmp.eq.s32.totalorder %s33, 0
      %p390 = por %p388, %p389
      %p391 = scmp.ne.s32.totalorder %s379, %s380
      %p392 = scmp.eq.s32.totalorder %s34, 1
      %p393 = por %p391, %p392
      %p395 = scmp.ne.s32.totalorder %s380, %s394
      %p396 = scmp.eq.s32.totalorder %s34, 0
      %p397 = por %p395, %p396
      %s398 = ssub.s32 %s28, %s35
      %p399 = scmp.eq.s32.totalorder %s398, 0
      %s401 = sadd.s32 %s400, 1
      %s402 = scalar_select %p399, %s400, %s401
      %p405 = pneg %p399
      %p406 = scmp.eq.s32.totalorder %s28, 1
      %p407 = por %p405, %p406
      %p408 = scmp.ne.s32.totalorder %s400, %s403
      %p409 = scmp.eq.s32.totalorder %s28, 0
      %p410 = por %p408, %p409
      %p411 = scmp.ne.s32.totalorder %s400, %s403
      %p412 = scmp.eq.s32.totalorder %s33, 1
      %p413 = por %p411, %p412
      %p414 = scmp.ne.s32.totalorder %s403, %s404
      %p415 = scmp.eq.s32.totalorder %s33, 0
      %p416 = por %p414, %p415
      %p417 = scmp.ne.s32.totalorder %s403, %s404
      %p418 = scmp.eq.s32.totalorder %s34, 1
      %p419 = por %p417, %p418
      %p421 = scmp.ne.s32.totalorder %s404, %s420
      %p422 = scmp.eq.s32.totalorder %s34, 0
      %p423 = por %p421, %p422
      %s424 = ssub.s32 %s28, %s35
      %p425 = scmp.eq.s32.totalorder %s424, 0
      %s427 = sadd.s32 %s426, 1
      %s428 = scalar_select %p425, %s426, %s427
      %p431 = pneg %p425
      %p432 = scmp.eq.s32.totalorder %s28, 1
      %p433 = por %p431, %p432
      %p434 = scmp.ne.s32.totalorder %s426, %s429
      %p435 = scmp.eq.s32.totalorder %s28, 0
      %p436 = por %p434, %p435
      %p437 = scmp.ne.s32.totalorder %s426, %s429
      %p438 = scmp.eq.s32.totalorder %s33, 1
      %p439 = por %p437, %p438
      %p440 = scmp.ne.s32.totalorder %s429, %s430
      %p441 = scmp.eq.s32.totalorder %s33, 0
      %p442 = por %p440, %p441
      %p443 = scmp.ne.s32.totalorder %s429, %s430
      %p444 = scmp.eq.s32.totalorder %s34, 1
      %p445 = por %p443, %p444
      %p447 = scmp.ne.s32.totalorder %s430, %s446
      %p448 = scmp.eq.s32.totalorder %s34, 0
      %p449 = por %p447, %p448
      %p450 = scmp.le.s32.totalorder 1, %s28
      %p451 = scmp.lt.s32.totalorder %s28, 3
      %p452 = pnand %p450, %p451
      %p453 = pneg %p452
      // Predicated region
      $region9: #{basic_block_forward.1} parent=5 // pred_check
        _
      $region10: #{basic_block_forward.1} parent=5 // pred_check_branch
        %455 = sbr.rel (%p452) target = $region12
      $region11: #{basic_block_forward.1} parent=5 // pred_region
        %s456 = ssub.s32 %s28, 1
        // Predicated region
        $region13: #{basic_block_forward.1} parent=11 // pred_check
          %p457 = pneg %p75
        $region14: #{basic_block_forward.1} parent=11 // pred_check_branch
          %459 = sbr.rel (%p457) target = $region16
        $region15: #{basic_block_forward.1} parent=11 // pred_region
          _
        $region16: #{basic_block_forward.1} parent=11 // pred_fallthru
          _
        // Predicated region
        $region17: #{basic_block_forward.1} parent=11 // pred_check
          %p460 = pneg %p96
        $region18: #{basic_block_forward.1} parent=11 // pred_check_branch
          %462 = sbr.rel (%p460) target = $region20
        $region19: #{basic_block_forward.1} parent=11 // pred_region
          _
        $region20: #{basic_block_forward.1} parent=11 // pred_fallthru
          _
        // Predicated region
        $region21: #{basic_block_forward.1} parent=11 // pred_check
          %p463 = pneg %p117
        $region22: #{basic_block_forward.1} parent=11 // pred_check_branch
          %465 = sbr.rel (%p463) target = $region24
        $region23: #{basic_block_forward.1} parent=11 // pred_region
          _
        $region24: #{basic_block_forward.1} parent=11 // pred_fallthru
          _
        // Predicated region
        $region25: #{basic_block_forward.1} parent=11 // pred_check
          %p466 = pneg %p138
        $region26: #{basic_block_forward.1} parent=11 // pred_check_branch
          %468 = sbr.rel (%p466) target = $region28
        $region27: #{basic_block_forward.1} parent=11 // pred_region
          _
        $region28: #{basic_block_forward.1} parent=11 // pred_fallthru
          _
        // Predicated region
        $region29: #{basic_block_forward.1} parent=11 // pred_check
          %p469 = pneg %p159
        $region30: #{basic_block_forward.1} parent=11 // pred_check_branch
          %471 = sbr.rel (%p469) target = $region32
        $region31: #{basic_block_forward.1} parent=11 // pred_region
          _
        $region32: #{basic_block_forward.1} parent=11 // pred_fallthru
          _
        // Predicated region
        $region33: #{basic_block_forward.1} parent=11 // pred_check
          %p472 = pneg %p180
        $region34: #{basic_block_forward.1} parent=11 // pred_check_branch
          %474 = sbr.rel (%p472) target = $region36
        $region35: #{basic_block_forward.1} parent=11 // pred_region
          _
        $region36: #{basic_block_forward.1} parent=11 // pred_fallthru
          _
        // Predicated region
        $region37: #{basic_block_forward.1} parent=11 // pred_check
          %p475 = pneg %p201
        $region38: #{basic_block_forward.1} parent=11 // pred_check_branch
          %477 = sbr.rel (%p475) target = $region40
        $region39: #{basic_block_forward.1} parent=11 // pred_region
          _
        $region40: #{basic_block_forward.1} parent=11 // pred_fallthru
          _
        // Predicated region
        $region41: #{basic_block_forward.1} parent=11 // pred_check
          %p478 = pneg %p222
        $region42: #{basic_block_forward.1} parent=11 // pred_check_branch
          %480 = sbr.rel (%p478) target = $region44
        $region43: #{basic_block_forward.1} parent=11 // pred_region
          _
        $region44: #{basic_block_forward.1} parent=11 // pred_fallthru
          _
        // Predicated region
        $region45: #{basic_block_forward.1} parent=11 // pred_check
          %p481 = pneg %p243
        $region46: #{basic_block_forward.1} parent=11 // pred_check_branch
          %483 = sbr.rel (%p481) target = $region48
        $region47: #{basic_block_forward.1} parent=11 // pred_region
          _
        $region48: #{basic_block_forward.1} parent=11 // pred_fallthru
          _
        // Predicated region
        $region49: #{basic_block_forward.1} parent=11 // pred_check
          %p484 = pneg %p264
        $region50: #{basic_block_forward.1} parent=11 // pred_check_branch
          %486 = sbr.rel (%p484) target = $region52
        $region51: #{basic_block_forward.1} parent=11 // pred_region
          _
        $region52: #{basic_block_forward.1} parent=11 // pred_fallthru
          _
        // Predicated region
        $region53: #{basic_block_forward.1} parent=11 // pred_check
          %p487 = pneg %p285
        $region54: #{basic_block_forward.1} parent=11 // pred_check_branch
          %489 = sbr.rel (%p487) target = $region56
        $region55: #{basic_block_forward.1} parent=11 // pred_region
          _
        $region56: #{basic_block_forward.1} parent=11 // pred_fallthru
          _
        // Predicated region
        $region57: #{basic_block_forward.1} parent=11 // pred_check
          %p490 = pneg %p306
        $region58: #{basic_block_forward.1} parent=11 // pred_check_branch
          %492 = sbr.rel (%p490) target = $region60
        $region59: #{basic_block_forward.1} parent=11 // pred_region
          _
        $region60: #{basic_block_forward.1} parent=11 // pred_fallthru
          _
        // Predicated region
        $region61: #{basic_block_forward.1} parent=11 // pred_check
          %p493 = pneg %p327
        $region62: #{basic_block_forward.1} parent=11 // pred_check_branch
          %495 = sbr.rel (%p493) target = $region64
        $region63: #{basic_block_forward.1} parent=11 // pred_region
          _
        $region64: #{basic_block_forward.1} parent=11 // pred_fallthru
          _
        // Predicated region
        $region65: #{basic_block_forward.1} parent=11 // pred_check
          %p496 = pneg %p348
        $region66: #{basic_block_forward.1} parent=11 // pred_check_branch
          %498 = sbr.rel (%p496) target = $region68
        $region67: #{basic_block_forward.1} parent=11 // pred_region
          _
        $region68: #{basic_block_forward.1} parent=11 // pred_fallthru
          _
        // Predicated region
        $region69: #{basic_block_forward.1} parent=11 // pred_check
          %p499 = pneg %p369
        $region70: #{basic_block_forward.1} parent=11 // pred_check_branch
          %501 = sbr.rel (%p499) target = $region72
        $region71: #{basic_block_forward.1} parent=11 // pred_region
          _
        $region72: #{basic_block_forward.1} parent=11 // pred_fallthru
          _
        // Predicated region
        $region73: #{basic_block_forward.1} parent=11 // pred_check
          %p502 = pneg %p390
        $region74: #{basic_block_forward.1} parent=11 // pred_check_branch
          %504 = sbr.rel (%p502) target = $region76
        $region75: #{basic_block_forward.1} parent=11 // pred_region
          _
        $region76: #{basic_block_forward.1} parent=11 // pred_fallthru
          _
      $region12: #{basic_block_forward.1} parent=5 // pred_fallthru
        _
      %p505 = scmp.lt.s32.totalorder %s28, 2
      // Predicated region
      $region77: #{basic_block_forward.1} parent=5 // pred_check
        %p506 = pneg %p505
      $region78: #{basic_block_forward.1} parent=5 // pred_check_branch
        %508 = sbr.rel (%p506) target = $region80
      $region79: #{basic_block_forward.1} parent=5 // pred_region
        // Predicated region
        $region81: #{basic_block_forward.1} parent=79 // pred_check
          %p509 = pneg %p48
        $region82: #{basic_block_forward.1} parent=79 // pred_check_branch
          %511 = sbr.rel (%p509) target = $region84
        $region83: #{basic_block_forward.1} parent=79 // pred_region
          %p512 = scmp.lt.s32.totalorder %s28, 1
          %s513 = scalar_select %p512, %s28, 1
          %s514 = smul.addr %s513, 54
          %s515 = smul.addr %s514, 8
          %s516 = scalar_lea.vmem %s0, %s515
        $region84: #{basic_block_forward.1} parent=79 // pred_fallthru
          _
      $region80: #{basic_block_forward.1} parent=5 // pred_fallthru
        _
      %p517 = scmp.le.s32.totalorder 1, %s28
      %p518 = scmp.lt.s32.totalorder %s28, 3
      %p519 = pnand %p517, %p518
      %p520 = pneg %p519
      // Predicated region
      $region85: #{basic_block_forward.1} parent=5 // pred_check
        _
      $region86: #{basic_block_forward.1} parent=5 // pred_check_branch
        %522 = sbr.rel (%p519) target = $region88
      $region87: #{basic_block_forward.1} parent=5 // pred_region
        %s523 = ssub.s32 %s28, 1
        %p524 = scmp.lt.s32.totalorder %s33, 1
        %s525 = scalar_select %p524, %s33, 1
        %s526 = smul.addr %s525, 54
        %s527 = smul.addr %s526, 8
        %s528 = scalar_lea.vmem %s0, %s527
        %p529 = pneg %p54
        %p530 = pneg %p51
        %p531 = pneg %p75
        %p532 = pneg %p72
        %p533 = pneg %p96
        %p534 = pneg %p93
        %p535 = pneg %p117
        %p536 = pneg %p114
        %p537 = pneg %p138
        %p538 = pneg %p135
        %p539 = pneg %p159
        %p540 = pneg %p156
        %p541 = pneg %p180
        %p542 = pneg %p177
        %p543 = pneg %p201
        %p544 = pneg %p198
        %p545 = pneg %p222
        %p546 = pneg %p219
        %p547 = pneg %p243
        %p548 = pneg %p240
        %p549 = pneg %p264
        %p550 = pneg %p261
        %p551 = pneg %p285
        %p552 = pneg %p282
        %p553 = pneg %p306
        %p554 = pneg %p303
        %p555 = pneg %p327
        %p556 = pneg %p324
        %p557 = pneg %p348
        %p558 = pneg %p345
        %p559 = pneg %p369
        %p560 = pneg %p366
        %p561 = pneg %p390
        %p562 = pneg %p387
        %p563 = pneg %p416
        %p564 = pneg %p413
        %s565 = sand.u32 %s403, 1
        %s566 = scalar_lea.sflag [#allocation3], %s565
        %s567 = sand.u32 %s403, 1
        %s568 = smul.addr %s567, 64
        %s569 = scalar_lea.vmem [#allocation2], %s568
        %p570 = pneg %p442
        %p571 = pneg %p439
        %p572 = scmp.lt.s32.totalorder %s33, 1
        %s573 = scalar_select %p572, %s33, 1
        %s574 = scalar_lea.vmem %s18, %s573
        %p575 = scmp.lt.s32.totalorder %s33, 1
        %s576 = scalar_select %p575, %s33, 1
        %s577 = smul.addr %s576, 54
        %s578 = smul.addr %s577, 8
        %s579 = scalar_lea.vmem %s0, %s578
        %p580 = scmp.lt.s32.totalorder %s33, 1
        %s581 = scalar_select %p580, %s33, 1
        %s582 = scalar_lea.vmem %s18, %s581
        %v583 = vld [vmem:[%s579] sm:$0xff]
        %v584 = vld [vmem:[%s579 + $0x8] sm:$0xff]
        %v585 = vld [vmem:[%s579 + $0x10] sm:$0x3]
        %v586 = vld [vmem:[%s579 + $0x18] sm:$0xff]
        %v587 = vld [vmem:[%s579 + $0x20] sm:$0xff]
        %v588 = vld [vmem:[%s579 + $0x28] sm:$0x3]
        %v589 = vld [vmem:[%s579 + $0x30] sm:$0xff]
        %v590 = vld [vmem:[%s579 + $0x38] sm:$0xff]
        %v591 = vld [vmem:[%s579 + $0x40] sm:$0x3]
        %v592 = vld [vmem:[%s579 + $0x48] sm:$0xff]
        %v593 = vld [vmem:[%s579 + $0x50] sm:$0xff]
        %v594 = vld [vmem:[%s579 + $0x58] sm:$0x3]
        %v595 = vld [vmem:[%s579 + $0x60] sm:$0xff]
        %v596 = vld [vmem:[%s579 + $0x68] sm:$0xff]
        %v597 = vld [vmem:[%s579 + $0x70] sm:$0x3]
        %v598 = vld [vmem:[%s579 + $0x78] sm:$0xff]
        %v599 = vld [vmem:[%s579 + $0x80] sm:$0xff]
        %v600 = vld [vmem:[%s579 + $0x88] sm:$0x3]
        %v601 = vld [vmem:[%s579 + $0x90] sm:$0xff]
        %v602 = vld [vmem:[%s579 + $0x98] sm:$0xff]
        %v603 = vld [vmem:[%s579 + $0xa0] sm:$0x3]
        %v604 = vld [vmem:[%s579 + $0xa8] sm:$0xff]
        %v605 = vld [vmem:[%s579 + $0xb0] sm:$0xff]
        %v606 = vld [vmem:[%s579 + $0xb8] sm:$0x3]
        %v607 = vld [vmem:[%s579 + $0xc0] sm:$0xff]
        %v608 = vld [vmem:[%s579 + $0xc8] sm:$0xff]
        %v609 = vld [vmem:[%s579 + $0xd0] sm:$0x3]
        %v610 = vld [vmem:[%s579 + $0xd8] sm:$0xff]
        %v611 = vld [vmem:[%s579 + $0xe0] sm:$0xff]
        %v612 = vld [vmem:[%s579 + $0xe8] sm:$0x3]
        %v613 = vld [vmem:[%s579 + $0xf0] sm:$0xff]
        %v614 = vld [vmem:[%s579 + $0xf8] sm:$0xff]
        %v615 = vld [vmem:[%s579 + $0x100] sm:$0x3]
        %v616 = vld [vmem:[%s579 + $0x108] sm:$0xff]
        %v617 = vld [vmem:[%s579 + $0x110] sm:$0xff]
        %v618 = vld [vmem:[%s579 + $0x118] sm:$0x3]
        %v619 = vld [vmem:[%s579 + $0x120] sm:$0xff]
        %v620 = vld [vmem:[%s579 + $0x128] sm:$0xff]
        %v621 = vld [vmem:[%s579 + $0x130] sm:$0x3]
        %v622 = vld [vmem:[%s579 + $0x138] sm:$0xff]
        %v623 = vld [vmem:[%s579 + $0x140] sm:$0xff]
        %v624 = vld [vmem:[%s579 + $0x148] sm:$0x3]
        %v625 = vld [vmem:[%s579 + $0x150] sm:$0xff]
        %v626 = vld [vmem:[%s579 + $0x158] sm:$0xff]
        %v627 = vld [vmem:[%s579 + $0x160] sm:$0x3]
        %v628 = vld [vmem:[%s579 + $0x168] sm:$0xff]
        %v629 = vld [vmem:[%s579 + $0x170] sm:$0xff]
        %v630 = vld [vmem:[%s579 + $0x178] sm:$0x3]
        %v631 = vld [vmem:[%s579 + $0x180] sm:$0xff]
        %v632 = vld [vmem:[%s579 + $0x188] sm:$0xff]
        %v633 = vld [vmem:[%s579 + $0x190] sm:$0x3]
        %v634 = vld [vmem:[%s579 + $0x198] sm:$0xff]
        %v635 = vld [vmem:[%s579 + $0x1a0] sm:$0xff]
        %v636 = vld [vmem:[%s579 + $0x1a8] sm:$0x3]
        %vm685 = vcmask 1046528
        %v686 = vrot.slane %v586, 1
        %v687 = vrot.slane %v587, 1
        %v688 = vsel %vm685, %v686, %v687
        %v689 = vrot.slane %v588, 1
        %v690 = vsel %vm685, %v687, %v689
        %v691 = vrot.slane %v589, 1
        %v692 = vrot.slane %v590, 1
        %v693 = vsel %vm685, %v691, %v692
        %v694 = vrot.slane %v591, 1
        %v695 = vsel %vm685, %v692, %v694
        %v696 = vrot.slane %v592, 1
        %v697 = vrot.slane %v593, 1
        %v698 = vsel %vm685, %v696, %v697
        %v699 = vrot.slane %v594, 1
        %v700 = vsel %vm685, %v697, %v699
        %v701 = vrot.slane %v595, 1
        %v702 = vrot.slane %v596, 1
        %v703 = vsel %vm685, %v701, %v702
        %v704 = vrot.slane %v597, 1
        %v705 = vsel %vm685, %v702, %v704
        %v706 = vrot.slane %v598, 1
        %v707 = vrot.slane %v599, 1
        %v708 = vsel %vm685, %v706, %v707
        %v709 = vrot.slane %v600, 1
        %v710 = vsel %vm685, %v707, %v709
        %v711 = vrot.slane %v601, 1
        %v712 = vrot.slane %v602, 1
        %v713 = vsel %vm685, %v711, %v712
        %v714 = vrot.slane %v603, 1
        %v715 = vsel %vm685, %v712, %v714
        %v716 = vrot.slane %v604, 1
        %v717 = vrot.slane %v605, 1
        %v718 = vsel %vm685, %v716, %v717
        %v719 = vrot.slane %v606, 1
        %v720 = vsel %vm685, %v717, %v719
        %v721 = vrot.slane %v607, 1
        %v722 = vrot.slane %v608, 1
        %v723 = vsel %vm685, %v721, %v722
        %v724 = vrot.slane %v609, 1
        %v725 = vsel %vm685, %v722, %v724
        %v726 = vrot.slane %v610, 1
        %v727 = vrot.slane %v611, 1
        %v728 = vsel %vm685, %v726, %v727
        %v729 = vrot.slane %v612, 1
        %v730 = vsel %vm685, %v727, %v729
        %v731 = vrot.slane %v613, 1
        %v732 = vrot.slane %v614, 1
        %v733 = vsel %vm685, %v731, %v732
        %v734 = vrot.slane %v615, 1
        %v735 = vsel %vm685, %v732, %v734
        %v736 = vrot.slane %v616, 1
        %v737 = vrot.slane %v617, 1
        %v738 = vsel %vm685, %v736, %v737
        %v739 = vrot.slane %v618, 1
        %v740 = vsel %vm685, %v737, %v739
        %v741 = vrot.slane %v619, 1
        %v742 = vrot.slane %v620, 1
        %v743 = vsel %vm685, %v741, %v742
        %v744 = vrot.slane %v621, 1
        %v745 = vsel %vm685, %v742, %v744
        %v746 = vrot.slane %v622, 1
        %v747 = vrot.slane %v623, 1
        %v748 = vsel %vm685, %v746, %v747
        %v749 = vrot.slane %v624, 1
        %v750 = vsel %vm685, %v747, %v749
        %v751 = vrot.slane %v625, 1
        %v752 = vrot.slane %v626, 1
        %v753 = vsel %vm685, %v751, %v752
        %v754 = vrot.slane %v627, 1
        %v755 = vsel %vm685, %v752, %v754
        %v756 = vrot.slane %v628, 1
        %v757 = vrot.slane %v629, 1
        %v758 = vsel %vm685, %v756, %v757
        %v759 = vrot.slane %v630, 1
        %v760 = vsel %vm685, %v757, %v759
        %v761 = vrot.slane %v631, 1
        %v762 = vrot.slane %v632, 1
        %v763 = vsel %vm685, %v761, %v762
        %v764 = vrot.slane %v633, 1
        %v765 = vsel %vm685, %v762, %v764
        %vm798 = vcmask 31744
        %v799 = vsel %vm798, %v688, 0.0
        %v800 = vsel %vm798, %v690, 0.0
        %v801 = vadd.f32 %v799, %v800
        %v802 = vsel %vm798, %v693, 0.0
        %v803 = vadd.f32 %v801, %v802
        %v804 = vsel %vm798, %v695, 0.0
        %v805 = vadd.f32 %v803, %v804
        %v806 = vsel %vm798, %v698, 0.0
        %v807 = vadd.f32 %v805, %v806
        %v808 = vsel %vm798, %v700, 0.0
        %v809 = vadd.f32 %v807, %v808
        %v810 = vsel %vm798, %v703, 0.0
        %v811 = vadd.f32 %v809, %v810
        %v812 = vsel %vm798, %v705, 0.0
        %v813 = vadd.f32 %v811, %v812
        %v814 = vsel %vm798, %v708, 0.0
        %v815 = vadd.f32 %v813, %v814
        %v816 = vsel %vm798, %v710, 0.0
        %v817 = vadd.f32 %v815, %v816
        %v818 = vsel %vm798, %v713, 0.0
        %v819 = vadd.f32 %v817, %v818
        %v820 = vsel %vm798, %v715, 0.0
        %v821 = vadd.f32 %v819, %v820
        %v822 = vsel %vm798, %v718, 0.0
        %v823 = vadd.f32 %v821, %v822
        %v824 = vsel %vm798, %v720, 0.0
        %v825 = vadd.f32 %v823, %v824
        %v826 = vsel %vm798, %v723, 0.0
        %v827 = vadd.f32 %v825, %v826
        %v828 = vsel %vm798, %v725, 0.0
        %v829 = vadd.f32 %v827, %v828
        %v830 = vsel %vm798, %v728, 0.0
        %v831 = vadd.f32 %v829, %v830
        %v832 = vsel %vm798, %v730, 0.0
        %v833 = vadd.f32 %v831, %v832
        %v834 = vsel %vm798, %v733, 0.0
        %v835 = vadd.f32 %v833, %v834
        %v836 = vsel %vm798, %v735, 0.0
        %v837 = vadd.f32 %v835, %v836
        %v838 = vsel %vm798, %v738, 0.0
        %v839 = vadd.f32 %v837, %v838
        %v840 = vsel %vm798, %v740, 0.0
        %v841 = vadd.f32 %v839, %v840
        %v842 = vsel %vm798, %v743, 0.0
        %v843 = vadd.f32 %v841, %v842
        %v844 = vsel %vm798, %v745, 0.0
        %v845 = vadd.f32 %v843, %v844
        %v846 = vsel %vm798, %v748, 0.0
        %v847 = vadd.f32 %v845, %v846
        %v848 = vsel %vm798, %v750, 0.0
        %v849 = vadd.f32 %v847, %v848
        %v850 = vsel %vm798, %v753, 0.0
        %v851 = vadd.f32 %v849, %v850
        %v852 = vsel %vm798, %v755, 0.0
        %v853 = vadd.f32 %v851, %v852
        %v854 = vsel %vm798, %v758, 0.0
        %v855 = vadd.f32 %v853, %v854
        %v856 = vsel %vm798, %v760, 0.0
        %v857 = vadd.f32 %v855, %v856
        %v858 = vsel %vm798, %v763, 0.0
        %v859 = vadd.f32 %v857, %v858
        %v860 = vsel %vm798, %v765, 0.0
        %v861 = vadd.f32 %v859, %v860
        %v862 = vrot.slane %v861, 4
        %v863 = vadd.f32 %v861, %v862
        %v864 = vrot.slane %v863, 2
        %v865 = vadd.f32 %v863, %v864
        %v866 = vrot.slane %v865, 1
        %v867 = vadd.f32 %v865, %v866
        %v868 = vmul.f32 %v867, 0.00390625
        %v869 = vld [vmem:[%s12] sm:$0xf]
        %v871 = vsel %vm798, %v868, 0
        %vm873 = vcmask 1043456
        %v875 = vsel %vm873, %v869, 0
        %877 = vmatpush.msra.mxu0 0.0
        %878 = vmatpush.msra.mxu0 0.0
        %879 = vmatpush.msra.mxu0 0.0
        %880 = vmatpush.msra.mxu0 0.0
        %881 = vmatpush.msra.mxu0 0.0
        %882 = vmatpush.msra.mxu0 0.0
        %883 = vmatpush.msra.mxu0 0.0
        %884 = vmatpush.msra.mxu0 0.0
        %885 = vmatpush.msra.mxu0 0.0
        %886 = vmatpush.msra.mxu0 0.0
        %887 = vmatpush.msra.mxu0 0.0
        %888 = vmatpush.msra.mxu0 0.0
        %889 = vmatpush.msra.mxu0 0.0
        %890 = vmatpush.msra.mxu0 0.0
        %891 = vmatpush.msra.mxu0 0.0
        %892 = vmatpush.msra.mxu0 %v875
        %893 = vmatmul.f32.gmra.mxu0 %v871
        %v894 = vpop.f32.mrf.mxu0
        %v895 = vadd.f32 0.0, %v894
        %896 = vdwg.mxu0
        %v897 = vld [vmem:[%s13] sm:$0x1]
        %v898 = vmul.f32 %v895, %v897
        %v899 = vld [vmem:[%s14] sm:$0x1]
        %v900 = vadd.f32 %v898, %v899
        %v901 = vmax.f32 %v900, 0.0
        %v902 = vld [vmem:[%s15] sm:$0xff]
        %v903 = vld [vmem:[%s15 + $0x8] sm:$0xff]
        %v904 = vld [vmem:[%s16] sm:$0x1]
        %vm905 = vcmask 130048
        %v907 = vsel %vm905, %v901, 0
        %909 = vmatpush.msra.mxu0 0.0
        %910 = vmatpush.msra.mxu0 0.0
        %911 = vmatpush.msra.mxu0 0.0
        %912 = vmatpush.msra.mxu0 0.0
        %913 = vmatpush.msra.mxu0 0.0
        %914 = vmatpush.msra.mxu0 0.0
        %915 = vmatpush.msra.mxu0 0.0
        %916 = vmatpush.msra.mxu0 0.0
        %917 = vmatpush.msra.mxu0 0.0
        %918 = vmatpush.msra.mxu0 0.0
        %919 = vmatpush.msra.mxu0 0.0
        %920 = vmatpush.msra.mxu0 0.0
        %921 = vmatpush.msra.mxu0 0.0
        %922 = vmatpush.msra.mxu0 0.0
        %923 = vmatpush.msra.mxu0 %v903
        %924 = vmatpush.msra.mxu0 %v902
        %925 = vmatmul.f32.gmra.mxu0 %v907
        %v926 = vpop.f32.mrf.mxu0
        %v927 = vadd.f32 %v904, %v926
        %928 = vdwg.mxu0
        %930 = vrot.lane.b32.xlu0 %v927, 127
        %v931 = vpop.permute.xlu0 %930
        %vm933 = vcmask 0
        %934 = vst.msk [vmem:[%s582] sm:$0x1] %vm933, %v931
        %v938 = vrot.slane %v583, 1
        %v939 = vrot.slane %v584, 1
        %v940 = vsel %vm685, %v938, %v939
        %v941 = vrot.slane %v585, 1
        %v942 = vsel %vm685, %v939, %v941
        %vm943 = vcmask 1045504
        %v944 = vrot.slane %v583, 2
        %v945 = vrot.slane %v584, 2
        %v946 = vsel %vm943, %v944, %v945
        %v947 = vrot.slane %v585, 2
        %v948 = vsel %vm943, %v945, %v947
        %v949 = vrot.slane %v586, 2
        %v950 = vrot.slane %v587, 2
        %v951 = vsel %vm943, %v949, %v950
        %v952 = vrot.slane %v588, 2
        %v953 = vsel %vm943, %v950, %v952
        %v954 = vrot.slane %v589, 2
        %v955 = vrot.slane %v590, 2
        %v956 = vsel %vm943, %v954, %v955
        %v957 = vrot.slane %v591, 2
        %v958 = vsel %vm943, %v955, %v957
        %v959 = vrot.slane %v592, 2
        %v960 = vrot.slane %v593, 2
        %v961 = vsel %vm943, %v959, %v960
        %v962 = vrot.slane %v594, 2
        %v963 = vsel %vm943, %v960, %v962
        %v964 = vrot.slane %v595, 2
        %v965 = vrot.slane %v596, 2
        %v966 = vsel %vm943, %v964, %v965
        %v967 = vrot.slane %v597, 2
        %v968 = vsel %vm943, %v965, %v967
        %v969 = vrot.slane %v598, 2
        %v970 = vrot.slane %v599, 2
        %v971 = vsel %vm943, %v969, %v970
        %v972 = vrot.slane %v600, 2
        %v973 = vsel %vm943, %v970, %v972
        %v974 = vrot.slane %v601, 2
        %v975 = vrot.slane %v602, 2
        %v976 = vsel %vm943, %v974, %v975
        %v977 = vrot.slane %v603, 2
        %v978 = vsel %vm943, %v975, %v977
        %v979 = vrot.slane %v604, 2
        %v980 = vrot.slane %v605, 2
        %v981 = vsel %vm943, %v979, %v980
        %v982 = vrot.slane %v606, 2
        %v983 = vsel %vm943, %v980, %v982
        %v984 = vrot.slane %v607, 2
        %v985 = vrot.slane %v608, 2
        %v986 = vsel %vm943, %v984, %v985
        %v987 = vrot.slane %v609, 2
        %v988 = vsel %vm943, %v985, %v987
        %v989 = vrot.slane %v610, 2
        %v990 = vrot.slane %v611, 2
        %v991 = vsel %vm943, %v989, %v990
        %v992 = vrot.slane %v612, 2
        %v993 = vsel %vm943, %v990, %v992
        %v994 = vrot.slane %v613, 2
        %v995 = vrot.slane %v614, 2
        %v996 = vsel %vm943, %v994, %v995
        %v997 = vrot.slane %v615, 2
        %v998 = vsel %vm943, %v995, %v997
        %v999 = vrot.slane %v616, 2
        %v1000 = vrot.slane %v617, 2
        %v1001 = vsel %vm943, %v999, %v1000
        %v1002 = vrot.slane %v618, 2
        %v1003 = vsel %vm943, %v1000, %v1002
        %v1004 = vrot.slane %v619, 2
        %v1005 = vrot.slane %v620, 2
        %v1006 = vsel %vm943, %v1004, %v1005
        %v1007 = vrot.slane %v621, 2
        %v1008 = vsel %vm943, %v1005, %v1007
        %v1009 = vrot.slane %v622, 2
        %v1010 = vrot.slane %v623, 2
        %v1011 = vsel %vm943, %v1009, %v1010
        %v1012 = vrot.slane %v624, 2
        %v1013 = vsel %vm943, %v1010, %v1012
        %v1014 = vrot.slane %v625, 2
        %v1015 = vrot.slane %v626, 2
        %v1016 = vsel %vm943, %v1014, %v1015
        %v1017 = vrot.slane %v627, 2
        %v1018 = vsel %vm943, %v1015, %v1017
        %v1019 = vrot.slane %v628, 2
        %v1020 = vrot.slane %v629, 2
        %v1021 = vsel %vm943, %v1019, %v1020
        %v1022 = vrot.slane %v630, 2
        %v1023 = vsel %vm943, %v1020, %v1022
        %v1024 = vrot.slane %v631, 2
        %v1025 = vrot.slane %v632, 2
        %v1026 = vsel %vm943, %v1024, %v1025
        %v1027 = vrot.slane %v633, 2
        %v1028 = vsel %vm943, %v1025, %v1027
        %v1032 = vrot.slane %v634, 1
        %v1033 = vrot.slane %v635, 1
        %v1034 = vsel %vm685, %v1032, %v1033
        %v1035 = vrot.slane %v636, 1
        %v1036 = vsel %vm685, %v1033, %v1035
        %v1037 = vrot.slane %v634, 2
        %v1038 = vrot.slane %v635, 2
        %v1039 = vsel %vm943, %v1037, %v1038
        %v1040 = vrot.slane %v636, 2
        %v1041 = vsel %vm943, %v1038, %v1040
        %1042 = vrot.lane.b32.xlu0 %v940, 4
        %v1043 = vpop.permute.xlu0 %1042
        %1044 = vrot.lane.b32.xlu0 %v942, 4
        %v1045 = vpop.permute.xlu0 %1044
        %1046 = vrot.lane.b32.xlu0 %v688, 4
        %v1047 = vpop.permute.xlu0 %1046
        %1048 = vrot.lane.b32.xlu0 %v690, 4
        %v1049 = vpop.permute.xlu0 %1048
        %1050 = vrot.lane.b32.xlu0 %v693, 4
        %v1051 = vpop.permute.xlu0 %1050
        %1052 = vrot.lane.b32.xlu0 %v695, 4
        %v1053 = vpop.permute.xlu0 %1052
        %1054 = vrot.lane.b32.xlu0 %v698, 4
        %v1055 = vpop.permute.xlu0 %1054
        %1056 = vrot.lane.b32.xlu0 %v700, 4
        %v1057 = vpop.permute.xlu0 %1056
        %1058 = vrot.lane.b32.xlu0 %v703, 4
        %v1059 = vpop.permute.xlu0 %1058
        %1060 = vrot.lane.b32.xlu0 %v705, 4
        %v1061 = vpop.permute.xlu0 %1060
        %1062 = vrot.lane.b32.xlu0 %v708, 4
        %v1063 = vpop.permute.xlu0 %1062
        %1064 = vrot.lane.b32.xlu0 %v710, 4
        %v1065 = vpop.permute.xlu0 %1064
        %1066 = vrot.lane.b32.xlu0 %v713, 4
        %v1067 = vpop.permute.xlu0 %1066
        %1068 = vrot.lane.b32.xlu0 %v715, 4
        %v1069 = vpop.permute.xlu0 %1068
        %1070 = vrot.lane.b32.xlu0 %v718, 4
        %v1071 = vpop.permute.xlu0 %1070
        %1072 = vrot.lane.b32.xlu0 %v720, 4
        %v1073 = vpop.permute.xlu0 %1072
        %1074 = vrot.lane.b32.xlu0 %v723, 4
        %v1075 = vpop.permute.xlu0 %1074
        %1076 = vrot.lane.b32.xlu0 %v725, 4
        %v1077 = vpop.permute.xlu0 %1076
        %1078 = vrot.lane.b32.xlu0 %v728, 4
        %v1079 = vpop.permute.xlu0 %1078
        %1080 = vrot.lane.b32.xlu0 %v730, 4
        %v1081 = vpop.permute.xlu0 %1080
        %1082 = vrot.lane.b32.xlu0 %v733, 4
        %v1083 = vpop.permute.xlu0 %1082
        %1084 = vrot.lane.b32.xlu0 %v735, 4
        %v1085 = vpop.permute.xlu0 %1084
        %1086 = vrot.lane.b32.xlu0 %v738, 4
        %v1087 = vpop.permute.xlu0 %1086
        %1088 = vrot.lane.b32.xlu0 %v740, 4
        %v1089 = vpop.permute.xlu0 %1088
        %1090 = vrot.lane.b32.xlu0 %v743, 4
        %v1091 = vpop.permute.xlu0 %1090
        %1092 = vrot.lane.b32.xlu0 %v745, 4
        %v1093 = vpop.permute.xlu0 %1092
        %1094 = vrot.lane.b32.xlu0 %v748, 4
        %v1095 = vpop.permute.xlu0 %1094
        %1096 = vrot.lane.b32.xlu0 %v750, 4
        %v1097 = vpop.permute.xlu0 %1096
        %1098 = vrot.lane.b32.xlu0 %v753, 4
        %v1099 = vpop.permute.xlu0 %1098
        %1100 = vrot.lane.b32.xlu0 %v755, 4
        %v1101 = vpop.permute.xlu0 %1100
        %1102 = vrot.lane.b32.xlu0 %v758, 4
        %v1103 = vpop.permute.xlu0 %1102
        %1104 = vrot.lane.b32.xlu0 %v760, 4
        %v1105 = vpop.permute.xlu0 %1104
        %1138 = vrot.lane.b32.xlu0 %v946, 8
        %v1139 = vpop.permute.xlu0 %1138
        %1140 = vrot.lane.b32.xlu0 %v948, 8
        %v1141 = vpop.permute.xlu0 %1140
        %1142 = vrot.lane.b32.xlu0 %v951, 8
        %v1143 = vpop.permute.xlu0 %1142
        %1144 = vrot.lane.b32.xlu0 %v953, 8
        %v1145 = vpop.permute.xlu0 %1144
        %1146 = vrot.lane.b32.xlu0 %v956, 8
        %v1147 = vpop.permute.xlu0 %1146
        %1148 = vrot.lane.b32.xlu0 %v958, 8
        %v1149 = vpop.permute.xlu0 %1148
        %1150 = vrot.lane.b32.xlu0 %v961, 8
        %v1151 = vpop.permute.xlu0 %1150
        %1152 = vrot.lane.b32.xlu0 %v963, 8
        %v1153 = vpop.permute.xlu0 %1152
        %1154 = vrot.lane.b32.xlu0 %v966, 8
        %v1155 = vpop.permute.xlu0 %1154
        %1156 = vrot.lane.b32.xlu0 %v968, 8
        %v1157 = vpop.permute.xlu0 %1156
        %1158 = vrot.lane.b32.xlu0 %v971, 8
        %v1159 = vpop.permute.xlu0 %1158
        %1160 = vrot.lane.b32.xlu0 %v973, 8
        %v1161 = vpop.permute.xlu0 %1160
        %1162 = vrot.lane.b32.xlu0 %v976, 8
        %v1163 = vpop.permute.xlu0 %1162
        %1164 = vrot.lane.b32.xlu0 %v978, 8
        %v1165 = vpop.permute.xlu0 %1164
        %1166 = vrot.lane.b32.xlu0 %v981, 8
        %v1167 = vpop.permute.xlu0 %1166
        %1168 = vrot.lane.b32.xlu0 %v983, 8
        %v1169 = vpop.permute.xlu0 %1168
        %1170 = vrot.lane.b32.xlu0 %v986, 8
        %v1171 = vpop.permute.xlu0 %1170
        %1172 = vrot.lane.b32.xlu0 %v988, 8
        %v1173 = vpop.permute.xlu0 %1172
        %1174 = vrot.lane.b32.xlu0 %v991, 8
        %v1175 = vpop.permute.xlu0 %1174
        %1176 = vrot.lane.b32.xlu0 %v993, 8
        %v1177 = vpop.permute.xlu0 %1176
        %1178 = vrot.lane.b32.xlu0 %v996, 8
        %v1179 = vpop.permute.xlu0 %1178
        %1180 = vrot.lane.b32.xlu0 %v998, 8
        %v1181 = vpop.permute.xlu0 %1180
        %1182 = vrot.lane.b32.xlu0 %v1001, 8
        %v1183 = vpop.permute.xlu0 %1182
        %1184 = vrot.lane.b32.xlu0 %v1003, 8
        %v1185 = vpop.permute.xlu0 %1184
        %1186 = vrot.lane.b32.xlu0 %v1006, 8
        %v1187 = vpop.permute.xlu0 %1186
        %1188 = vrot.lane.b32.xlu0 %v1008, 8
        %v1189 = vpop.permute.xlu0 %1188
        %1190 = vrot.lane.b32.xlu0 %v1011, 8
        %v1191 = vpop.permute.xlu0 %1190
        %1192 = vrot.lane.b32.xlu0 %v1013, 8
        %v1193 = vpop.permute.xlu0 %1192
        %1194 = vrot.lane.b32.xlu0 %v1016, 8
        %v1195 = vpop.permute.xlu0 %1194
        %1196 = vrot.lane.b32.xlu0 %v1018, 8
        %v1197 = vpop.permute.xlu0 %1196
        %1198 = vrot.lane.b32.xlu0 %v1021, 8
        %v1199 = vpop.permute.xlu0 %1198
        %1200 = vrot.lane.b32.xlu0 %v1023, 8
        %v1201 = vpop.permute.xlu0 %1200
        %1234 = vrot.lane.b32.xlu0 %v586, 12
        %v1235 = vpop.permute.xlu0 %1234
        %1236 = vrot.lane.b32.xlu0 %v587, 12
        %v1237 = vpop.permute.xlu0 %1236
        %1238 = vrot.lane.b32.xlu0 %v589, 12
        %v1239 = vpop.permute.xlu0 %1238
        %1240 = vrot.lane.b32.xlu0 %v590, 12
        %v1241 = vpop.permute.xlu0 %1240
        %1242 = vrot.lane.b32.xlu0 %v592, 12
        %v1243 = vpop.permute.xlu0 %1242
        %1244 = vrot.lane.b32.xlu0 %v593, 12
        %v1245 = vpop.permute.xlu0 %1244
        %1246 = vrot.lane.b32.xlu0 %v595, 12
        %v1247 = vpop.permute.xlu0 %1246
        %1248 = vrot.lane.b32.xlu0 %v596, 12
        %v1249 = vpop.permute.xlu0 %1248
        %1250 = vrot.lane.b32.xlu0 %v598, 12
        %v1251 = vpop.permute.xlu0 %1250
        %1252 = vrot.lane.b32.xlu0 %v599, 12
        %v1253 = vpop.permute.xlu0 %1252
        %1254 = vrot.lane.b32.xlu0 %v601, 12
        %v1255 = vpop.permute.xlu0 %1254
        %1256 = vrot.lane.b32.xlu0 %v602, 12
        %v1257 = vpop.permute.xlu0 %1256
        %1258 = vrot.lane.b32.xlu0 %v604, 12
        %v1259 = vpop.permute.xlu0 %1258
        %1260 = vrot.lane.b32.xlu0 %v605, 12
        %v1261 = vpop.permute.xlu0 %1260
        %1262 = vrot.lane.b32.xlu0 %v607, 12
        %v1263 = vpop.permute.xlu0 %1262
        %1264 = vrot.lane.b32.xlu0 %v608, 12
        %v1265 = vpop.permute.xlu0 %1264
        %1266 = vrot.lane.b32.xlu0 %v610, 12
        %v1267 = vpop.permute.xlu0 %1266
        %1268 = vrot.lane.b32.xlu0 %v611, 12
        %v1269 = vpop.permute.xlu0 %1268
        %1270 = vrot.lane.b32.xlu0 %v613, 12
        %v1271 = vpop.permute.xlu0 %1270
        %1272 = vrot.lane.b32.xlu0 %v614, 12
        %v1273 = vpop.permute.xlu0 %1272
        %1274 = vrot.lane.b32.xlu0 %v616, 12
        %v1275 = vpop.permute.xlu0 %1274
        %1276 = vrot.lane.b32.xlu0 %v617, 12
        %v1277 = vpop.permute.xlu0 %1276
        %1278 = vrot.lane.b32.xlu0 %v619, 12
        %v1279 = vpop.permute.xlu0 %1278
        %1280 = vrot.lane.b32.xlu0 %v620, 12
        %v1281 = vpop.permute.xlu0 %1280
        %1282 = vrot.lane.b32.xlu0 %v622, 12
        %v1283 = vpop.permute.xlu0 %1282
        %1284 = vrot.lane.b32.xlu0 %v623, 12
        %v1285 = vpop.permute.xlu0 %1284
        %1286 = vrot.lane.b32.xlu0 %v625, 12
        %v1287 = vpop.permute.xlu0 %1286
        %1288 = vrot.lane.b32.xlu0 %v626, 12
        %v1289 = vpop.permute.xlu0 %1288
        %1290 = vrot.lane.b32.xlu0 %v628, 12
        %v1291 = vpop.permute.xlu0 %1290
        %1292 = vrot.lane.b32.xlu0 %v629, 12
        %v1293 = vpop.permute.xlu0 %1292
        %1294 = vrot.lane.b32.xlu0 %v631, 12
        %v1295 = vpop.permute.xlu0 %1294
        %1296 = vrot.lane.b32.xlu0 %v632, 12
        %v1297 = vpop.permute.xlu0 %1296
        %1330 = vrot.lane.b32.xlu0 %v688, 16
        %v1331 = vpop.permute.xlu0 %1330
        %1332 = vrot.lane.b32.xlu0 %v690, 16
        %v1333 = vpop.permute.xlu0 %1332
        %1334 = vrot.lane.b32.xlu0 %v693, 16
        %v1335 = vpop.permute.xlu0 %1334
        %1336 = vrot.lane.b32.xlu0 %v695, 16
        %v1337 = vpop.permute.xlu0 %1336
        %1338 = vrot.lane.b32.xlu0 %v698, 16
        %v1339 = vpop.permute.xlu0 %1338
        %1340 = vrot.lane.b32.xlu0 %v700, 16
        %v1341 = vpop.permute.xlu0 %1340
        %1342 = vrot.lane.b32.xlu0 %v703, 16
        %v1343 = vpop.permute.xlu0 %1342
        %1344 = vrot.lane.b32.xlu0 %v705, 16
        %v1345 = vpop.permute.xlu0 %1344
        %1346 = vrot.lane.b32.xlu0 %v708, 16
        %v1347 = vpop.permute.xlu0 %1346
        %1348 = vrot.lane.b32.xlu0 %v710, 16
        %v1349 = vpop.permute.xlu0 %1348
        %1350 = vrot.lane.b32.xlu0 %v713, 16
        %v1351 = vpop.permute.xlu0 %1350
        %1352 = vrot.lane.b32.xlu0 %v715, 16
        %v1353 = vpop.permute.xlu0 %1352
        %1354 = vrot.lane.b32.xlu0 %v718, 16
        %v1355 = vpop.permute.xlu0 %1354
        %1356 = vrot.lane.b32.xlu0 %v720, 16
        %v1357 = vpop.permute.xlu0 %1356
        %1358 = vrot.lane.b32.xlu0 %v723, 16
        %v1359 = vpop.permute.xlu0 %1358
        %1360 = vrot.lane.b32.xlu0 %v725, 16
        %v1361 = vpop.permute.xlu0 %1360
        %1362 = vrot.lane.b32.xlu0 %v728, 16
        %v1363 = vpop.permute.xlu0 %1362
        %1364 = vrot.lane.b32.xlu0 %v730, 16
        %v1365 = vpop.permute.xlu0 %1364
        %1366 = vrot.lane.b32.xlu0 %v733, 16
        %v1367 = vpop.permute.xlu0 %1366
        %1368 = vrot.lane.b32.xlu0 %v735, 16
        %v1369 = vpop.permute.xlu0 %1368
        %1370 = vrot.lane.b32.xlu0 %v738, 16
        %v1371 = vpop.permute.xlu0 %1370
        %1372 = vrot.lane.b32.xlu0 %v740, 16
        %v1373 = vpop.permute.xlu0 %1372
        %1374 = vrot.lane.b32.xlu0 %v743, 16
        %v1375 = vpop.permute.xlu0 %1374
        %1376 = vrot.lane.b32.xlu0 %v745, 16
        %v1377 = vpop.permute.xlu0 %1376
        %1378 = vrot.lane.b32.xlu0 %v748, 16
        %v1379 = vpop.permute.xlu0 %1378
        %1380 = vrot.lane.b32.xlu0 %v750, 16
        %v1381 = vpop.permute.xlu0 %1380
        %1382 = vrot.lane.b32.xlu0 %v753, 16
        %v1383 = vpop.permute.xlu0 %1382
        %1384 = vrot.lane.b32.xlu0 %v755, 16
        %v1385 = vpop.permute.xlu0 %1384
        %1386 = vrot.lane.b32.xlu0 %v758, 16
        %v1387 = vpop.permute.xlu0 %1386
        %1388 = vrot.lane.b32.xlu0 %v760, 16
        %v1389 = vpop.permute.xlu0 %1388
        %1390 = vrot.lane.b32.xlu0 %v763, 16
        %v1391 = vpop.permute.xlu0 %1390
        %1392 = vrot.lane.b32.xlu0 %v765, 16
        %v1393 = vpop.permute.xlu0 %1392
        %1426 = vrot.lane.b32.xlu0 %v951, 20
        %v1427 = vpop.permute.xlu0 %1426
        %1428 = vrot.lane.b32.xlu0 %v953, 20
        %v1429 = vpop.permute.xlu0 %1428
        %1430 = vrot.lane.b32.xlu0 %v956, 20
        %v1431 = vpop.permute.xlu0 %1430
        %1432 = vrot.lane.b32.xlu0 %v958, 20
        %v1433 = vpop.permute.xlu0 %1432
        %1434 = vrot.lane.b32.xlu0 %v961, 20
        %v1435 = vpop.permute.xlu0 %1434
        %1436 = vrot.lane.b32.xlu0 %v963, 20
        %v1437 = vpop.permute.xlu0 %1436
        %1438 = vrot.lane.b32.xlu0 %v966, 20
        %v1439 = vpop.permute.xlu0 %1438
        %1440 = vrot.lane.b32.xlu0 %v968, 20
        %v1441 = vpop.permute.xlu0 %1440
        %1442 = vrot.lane.b32.xlu0 %v971, 20
        %v1443 = vpop.permute.xlu0 %1442
        %1444 = vrot.lane.b32.xlu0 %v973, 20
        %v1445 = vpop.permute.xlu0 %1444
        %1446 = vrot.lane.b32.xlu0 %v976, 20
        %v1447 = vpop.permute.xlu0 %1446
        %1448 = vrot.lane.b32.xlu0 %v978, 20
        %v1449 = vpop.permute.xlu0 %1448
        %1450 = vrot.lane.b32.xlu0 %v981, 20
        %v1451 = vpop.permute.xlu0 %1450
        %1452 = vrot.lane.b32.xlu0 %v983, 20
        %v1453 = vpop.permute.xlu0 %1452
        %1454 = vrot.lane.b32.xlu0 %v986, 20
        %v1455 = vpop.permute.xlu0 %1454
        %1456 = vrot.lane.b32.xlu0 %v988, 20
        %v1457 = vpop.permute.xlu0 %1456
        %1458 = vrot.lane.b32.xlu0 %v991, 20
        %v1459 = vpop.permute.xlu0 %1458
        %1460 = vrot.lane.b32.xlu0 %v993, 20
        %v1461 = vpop.permute.xlu0 %1460
        %1462 = vrot.lane.b32.xlu0 %v996, 20
        %v1463 = vpop.permute.xlu0 %1462
        %1464 = vrot.lane.b32.xlu0 %v998, 20
        %v1465 = vpop.permute.xlu0 %1464
        %1466 = vrot.lane.b32.xlu0 %v1001, 20
        %v1467 = vpop.permute.xlu0 %1466
        %1468 = vrot.lane.b32.xlu0 %v1003, 20
        %v1469 = vpop.permute.xlu0 %1468
        %1470 = vrot.lane.b32.xlu0 %v1006, 20
        %v1471 = vpop.permute.xlu0 %1470
        %1472 = vrot.lane.b32.xlu0 %v1008, 20
        %v1473 = vpop.permute.xlu0 %1472
        %1474 = vrot.lane.b32.xlu0 %v1011, 20
        %v1475 = vpop.permute.xlu0 %1474
        %1476 = vrot.lane.b32.xlu0 %v1013, 20
        %v1477 = vpop.permute.xlu0 %1476
        %1478 = vrot.lane.b32.xlu0 %v1016, 20
        %v1479 = vpop.permute.xlu0 %1478
        %1480 = vrot.lane.b32.xlu0 %v1018, 20
        %v1481 = vpop.permute.xlu0 %1480
        %1482 = vrot.lane.b32.xlu0 %v1021, 20
        %v1483 = vpop.permute.xlu0 %1482
        %1484 = vrot.lane.b32.xlu0 %v1023, 20
        %v1485 = vpop.permute.xlu0 %1484
        %1486 = vrot.lane.b32.xlu0 %v1026, 20
        %v1487 = vpop.permute.xlu0 %1486
        %1488 = vrot.lane.b32.xlu0 %v1028, 20
        %v1489 = vpop.permute.xlu0 %1488
        %1522 = vrot.lane.b32.xlu0 %v589, 24
        %v1523 = vpop.permute.xlu0 %1522
        %1524 = vrot.lane.b32.xlu0 %v590, 24
        %v1525 = vpop.permute.xlu0 %1524
        %1526 = vrot.lane.b32.xlu0 %v592, 24
        %v1527 = vpop.permute.xlu0 %1526
        %1528 = vrot.lane.b32.xlu0 %v593, 24
        %v1529 = vpop.permute.xlu0 %1528
        %1530 = vrot.lane.b32.xlu0 %v595, 24
        %v1531 = vpop.permute.xlu0 %1530
        %1532 = vrot.lane.b32.xlu0 %v596, 24
        %v1533 = vpop.permute.xlu0 %1532
        %1534 = vrot.lane.b32.xlu0 %v598, 24
        %v1535 = vpop.permute.xlu0 %1534
        %1536 = vrot.lane.b32.xlu0 %v599, 24
        %v1537 = vpop.permute.xlu0 %1536
        %1538 = vrot.lane.b32.xlu0 %v601, 24
        %v1539 = vpop.permute.xlu0 %1538
        %1540 = vrot.lane.b32.xlu0 %v602, 24
        %v1541 = vpop.permute.xlu0 %1540
        %1542 = vrot.lane.b32.xlu0 %v604, 24
        %v1543 = vpop.permute.xlu0 %1542
        %1544 = vrot.lane.b32.xlu0 %v605, 24
        %v1545 = vpop.permute.xlu0 %1544
        %1546 = vrot.lane.b32.xlu0 %v607, 24
        %v1547 = vpop.permute.xlu0 %1546
        %1548 = vrot.lane.b32.xlu0 %v608, 24
        %v1549 = vpop.permute.xlu0 %1548
        %1550 = vrot.lane.b32.xlu0 %v610, 24
        %v1551 = vpop.permute.xlu0 %1550
        %1552 = vrot.lane.b32.xlu0 %v611, 24
        %v1553 = vpop.permute.xlu0 %1552
        %1554 = vrot.lane.b32.xlu0 %v613, 24
        %v1555 = vpop.permute.xlu0 %1554
        %1556 = vrot.lane.b32.xlu0 %v614, 24
        %v1557 = vpop.permute.xlu0 %1556
        %1558 = vrot.lane.b32.xlu0 %v616, 24
        %v1559 = vpop.permute.xlu0 %1558
        %1560 = vrot.lane.b32.xlu0 %v617, 24
        %v1561 = vpop.permute.xlu0 %1560
        %1562 = vrot.lane.b32.xlu0 %v619, 24
        %v1563 = vpop.permute.xlu0 %1562
        %1564 = vrot.lane.b32.xlu0 %v620, 24
        %v1565 = vpop.permute.xlu0 %1564
        %1566 = vrot.lane.b32.xlu0 %v622, 24
        %v1567 = vpop.permute.xlu0 %1566
        %1568 = vrot.lane.b32.xlu0 %v623, 24
        %v1569 = vpop.permute.xlu0 %1568
        %1570 = vrot.lane.b32.xlu0 %v625, 24
        %v1571 = vpop.permute.xlu0 %1570
        %1572 = vrot.lane.b32.xlu0 %v626, 24
        %v1573 = vpop.permute.xlu0 %1572
        %1574 = vrot.lane.b32.xlu0 %v628, 24
        %v1575 = vpop.permute.xlu0 %1574
        %1576 = vrot.lane.b32.xlu0 %v629, 24
        %v1577 = vpop.permute.xlu0 %1576
        %1578 = vrot.lane.b32.xlu0 %v631, 24
        %v1579 = vpop.permute.xlu0 %1578
        %1580 = vrot.lane.b32.xlu0 %v632, 24
        %v1581 = vpop.permute.xlu0 %1580
        %1582 = vrot.lane.b32.xlu0 %v634, 24
        %v1583 = vpop.permute.xlu0 %1582
        %1584 = vrot.lane.b32.xlu0 %v635, 24
        %v1585 = vpop.permute.xlu0 %1584
        %1618 = vrot.lane.b32.xlu0 %v693, 28
        %v1619 = vpop.permute.xlu0 %1618
        %1620 = vrot.lane.b32.xlu0 %v695, 28
        %v1621 = vpop.permute.xlu0 %1620
        %1622 = vrot.lane.b32.xlu0 %v698, 28
        %v1623 = vpop.permute.xlu0 %1622
        %1624 = vrot.lane.b32.xlu0 %v700, 28
        %v1625 = vpop.permute.xlu0 %1624
        %1626 = vrot.lane.b32.xlu0 %v703, 28
        %v1627 = vpop.permute.xlu0 %1626
        %1628 = vrot.lane.b32.xlu0 %v705, 28
        %v1629 = vpop.permute.xlu0 %1628
        %1630 = vrot.lane.b32.xlu0 %v708, 28
        %v1631 = vpop.permute.xlu0 %1630
        %1632 = vrot.lane.b32.xlu0 %v710, 28
        %v1633 = vpop.permute.xlu0 %1632
        %1634 = vrot.lane.b32.xlu0 %v713, 28
        %v1635 = vpop.permute.xlu0 %1634
        %1636 = vrot.lane.b32.xlu0 %v715, 28
        %v1637 = vpop.permute.xlu0 %1636
        %1638 = vrot.lane.b32.xlu0 %v718, 28
        %v1639 = vpop.permute.xlu0 %1638
        %1640 = vrot.lane.b32.xlu0 %v720, 28
        %v1641 = vpop.permute.xlu0 %1640
        %1642 = vrot.lane.b32.xlu0 %v723, 28
        %v1643 = vpop.permute.xlu0 %1642
        %1644 = vrot.lane.b32.xlu0 %v725, 28
        %v1645 = vpop.permute.xlu0 %1644
        %1646 = vrot.lane.b32.xlu0 %v728, 28
        %v1647 = vpop.permute.xlu0 %1646
        %1648 = vrot.lane.b32.xlu0 %v730, 28
        %v1649 = vpop.permute.xlu0 %1648
        %1650 = vrot.lane.b32.xlu0 %v733, 28
        %v1651 = vpop.permute.xlu0 %1650
        %1652 = vrot.lane.b32.xlu0 %v735, 28
        %v1653 = vpop.permute.xlu0 %1652
        %1654 = vrot.lane.b32.xlu0 %v738, 28
        %v1655 = vpop.permute.xlu0 %1654
        %1656 = vrot.lane.b32.xlu0 %v740, 28
        %v1657 = vpop.permute.xlu0 %1656
        %1658 = vrot.lane.b32.xlu0 %v743, 28
        %v1659 = vpop.permute.xlu0 %1658
        %1660 = vrot.lane.b32.xlu0 %v745, 28
        %v1661 = vpop.permute.xlu0 %1660
        %1662 = vrot.lane.b32.xlu0 %v748, 28
        %v1663 = vpop.permute.xlu0 %1662
        %1664 = vrot.lane.b32.xlu0 %v750, 28
        %v1665 = vpop.permute.xlu0 %1664
        %1666 = vrot.lane.b32.xlu0 %v753, 28
        %v1667 = vpop.permute.xlu0 %1666
        %1668 = vrot.lane.b32.xlu0 %v755, 28
        %v1669 = vpop.permute.xlu0 %1668
        %1670 = vrot.lane.b32.xlu0 %v758, 28
        %v1671 = vpop.permute.xlu0 %1670
        %1672 = vrot.lane.b32.xlu0 %v760, 28
        %v1673 = vpop.permute.xlu0 %1672
        %1674 = vrot.lane.b32.xlu0 %v763, 28
        %v1675 = vpop.permute.xlu0 %1674
        %1676 = vrot.lane.b32.xlu0 %v765, 28
        %v1677 = vpop.permute.xlu0 %1676
        %1678 = vrot.lane.b32.xlu0 %v1034, 28
        %v1679 = vpop.permute.xlu0 %1678
        %1680 = vrot.lane.b32.xlu0 %v1036, 28
        %v1681 = vpop.permute.xlu0 %1680
        %1714 = vrot.lane.b32.xlu0 %v956, 32
        %v1715 = vpop.permute.xlu0 %1714
        %1716 = vrot.lane.b32.xlu0 %v958, 32
        %v1717 = vpop.permute.xlu0 %1716
        %1718 = vrot.lane.b32.xlu0 %v961, 32
        %v1719 = vpop.permute.xlu0 %1718
        %1720 = vrot.lane.b32.xlu0 %v963, 32
        %v1721 = vpop.permute.xlu0 %1720
        %1722 = vrot.lane.b32.xlu0 %v966, 32
        %v1723 = vpop.permute.xlu0 %1722
        %1724 = vrot.lane.b32.xlu0 %v968, 32
        %v1725 = vpop.permute.xlu0 %1724
        %1726 = vrot.lane.b32.xlu0 %v971, 32
        %v1727 = vpop.permute.xlu0 %1726
        %1728 = vrot.lane.b32.xlu0 %v973, 32
        %v1729 = vpop.permute.xlu0 %1728
        %1730 = vrot.lane.b32.xlu0 %v976, 32
        %v1731 = vpop.permute.xlu0 %1730
        %1732 = vrot.lane.b32.xlu0 %v978, 32
        %v1733 = vpop.permute.xlu0 %1732
        %1734 = vrot.lane.b32.xlu0 %v981, 32
        %v1735 = vpop.permute.xlu0 %1734
        %1736 = vrot.lane.b32.xlu0 %v983, 32
        %v1737 = vpop.permute.xlu0 %1736
        %1738 = vrot.lane.b32.xlu0 %v986, 32
        %v1739 = vpop.permute.xlu0 %1738
        %1740 = vrot.lane.b32.xlu0 %v988, 32
        %v1741 = vpop.permute.xlu0 %1740
        %1742 = vrot.lane.b32.xlu0 %v991, 32
        %v1743 = vpop.permute.xlu0 %1742
        %1744 = vrot.lane.b32.xlu0 %v993, 32
        %v1745 = vpop.permute.xlu0 %1744
        %1746 = vrot.lane.b32.xlu0 %v996, 32
        %v1747 = vpop.permute.xlu0 %1746
        %1748 = vrot.lane.b32.xlu0 %v998, 32
        %v1749 = vpop.permute.xlu0 %1748
        %1750 = vrot.lane.b32.xlu0 %v1001, 32
        %v1751 = vpop.permute.xlu0 %1750
        %1752 = vrot.lane.b32.xlu0 %v1003, 32
        %v1753 = vpop.permute.xlu0 %1752
        %1754 = vrot.lane.b32.xlu0 %v1006, 32
        %v1755 = vpop.permute.xlu0 %1754
        %1756 = vrot.lane.b32.xlu0 %v1008, 32
        %v1757 = vpop.permute.xlu0 %1756
        %1758 = vrot.lane.b32.xlu0 %v1011, 32
        %v1759 = vpop.permute.xlu0 %1758
        %1760 = vrot.lane.b32.xlu0 %v1013, 32
        %v1761 = vpop.permute.xlu0 %1760
        %1762 = vrot.lane.b32.xlu0 %v1016, 32
        %v1763 = vpop.permute.xlu0 %1762
        %1764 = vrot.lane.b32.xlu0 %v1018, 32
        %v1765 = vpop.permute.xlu0 %1764
        %1766 = vrot.lane.b32.xlu0 %v1021, 32
        %v1767 = vpop.permute.xlu0 %1766
        %1768 = vrot.lane.b32.xlu0 %v1023, 32
        %v1769 = vpop.permute.xlu0 %1768
        %1770 = vrot.lane.b32.xlu0 %v1026, 32
        %v1771 = vpop.permute.xlu0 %1770
        %1772 = vrot.lane.b32.xlu0 %v1028, 32
        %v1773 = vpop.permute.xlu0 %1772
        %1774 = vrot.lane.b32.xlu0 %v1039, 32
        %v1775 = vpop.permute.xlu0 %1774
        %1776 = vrot.lane.b32.xlu0 %v1041, 32
        %v1777 = vpop.permute.xlu0 %1776
        %v1810 = vsel %vm798, %v583, %v1043
        %v1811 = vsel %vm798, %v584, %v1045
        %v1812 = vsel %vm798, %v586, %v1047
        %v1813 = vsel %vm798, %v587, %v1049
        %v1814 = vsel %vm798, %v589, %v1051
        %v1815 = vsel %vm798, %v590, %v1053
        %v1816 = vsel %vm798, %v592, %v1055
        %v1817 = vsel %vm798, %v593, %v1057
        %v1818 = vsel %vm798, %v595, %v1059
        %v1819 = vsel %vm798, %v596, %v1061
        %v1820 = vsel %vm798, %v598, %v1063
        %v1821 = vsel %vm798, %v599, %v1065
        %v1822 = vsel %vm798, %v601, %v1067
        %v1823 = vsel %vm798, %v602, %v1069
        %v1824 = vsel %vm798, %v604, %v1071
        %v1825 = vsel %vm798, %v605, %v1073
        %v1826 = vsel %vm798, %v607, %v1075
        %v1827 = vsel %vm798, %v608, %v1077
        %v1828 = vsel %vm798, %v610, %v1079
        %v1829 = vsel %vm798, %v611, %v1081
        %v1830 = vsel %vm798, %v613, %v1083
        %v1831 = vsel %vm798, %v614, %v1085
        %v1832 = vsel %vm798, %v616, %v1087
        %v1833 = vsel %vm798, %v617, %v1089
        %v1834 = vsel %vm798, %v619, %v1091
        %v1835 = vsel %vm798, %v620, %v1093
        %v1836 = vsel %vm798, %v622, %v1095
        %v1837 = vsel %vm798, %v623, %v1097
        %v1838 = vsel %vm798, %v625, %v1099
        %v1839 = vsel %vm798, %v626, %v1101
        %v1840 = vsel %vm798, %v628, %v1103
        %v1841 = vsel %vm798, %v629, %v1105
        %vm1842 = vcmask 64512
        %v1843 = vsel %vm1842, %v1810, %v1139
        %v1844 = vsel %vm1842, %v1811, %v1141
        %v1845 = vsel %vm1842, %v1812, %v1143
        %v1846 = vsel %vm1842, %v1813, %v1145
        %v1847 = vsel %vm1842, %v1814, %v1147
        %v1848 = vsel %vm1842, %v1815, %v1149
        %v1849 = vsel %vm1842, %v1816, %v1151
        %v1850 = vsel %vm1842, %v1817, %v1153
        %v1851 = vsel %vm1842, %v1818, %v1155
        %v1852 = vsel %vm1842, %v1819, %v1157
        %v1853 = vsel %vm1842, %v1820, %v1159
        %v1854 = vsel %vm1842, %v1821, %v1161
        %v1855 = vsel %vm1842, %v1822, %v1163
        %v1856 = vsel %vm1842, %v1823, %v1165
        %v1857 = vsel %vm1842, %v1824, %v1167
        %v1858 = vsel %vm1842, %v1825, %v1169
        %v1859 = vsel %vm1842, %v1826, %v1171
        %v1860 = vsel %vm1842, %v1827, %v1173
        %v1861 = vsel %vm1842, %v1828, %v1175
        %v1862 = vsel %vm1842, %v1829, %v1177
        %v1863 = vsel %vm1842, %v1830, %v1179
        %v1864 = vsel %vm1842, %v1831, %v1181
        %v1865 = vsel %vm1842, %v1832, %v1183
        %v1866 = vsel %vm1842, %v1833, %v1185
        %v1867 = vsel %vm1842, %v1834, %v1187
        %v1868 = vsel %vm1842, %v1835, %v1189
        %v1869 = vsel %vm1842, %v1836, %v1191
        %v1870 = vsel %vm1842, %v1837, %v1193
        %v1871 = vsel %vm1842, %v1838, %v1195
        %v1872 = vsel %vm1842, %v1839, %v1197
        %v1873 = vsel %vm1842, %v1840, %v1199
        %v1874 = vsel %vm1842, %v1841, %v1201
        %vm1875 = vcmask 97280
        %v1876 = vsel %vm1875, %v1843, %v1235
        %v1877 = vsel %vm1875, %v1844, %v1237
        %v1878 = vsel %vm1875, %v1845, %v1239
        %v1879 = vsel %vm1875, %v1846, %v1241
        %v1880 = vsel %vm1875, %v1847, %v1243
        %v1881 = vsel %vm1875, %v1848, %v1245
        %v1882 = vsel %vm1875, %v1849, %v1247
        %v1883 = vsel %vm1875, %v1850, %v1249
        %v1884 = vsel %vm1875, %v1851, %v1251
        %v1885 = vsel %vm1875, %v1852, %v1253
        %v1886 = vsel %vm1875, %v1853, %v1255
        %v1887 = vsel %vm1875, %v1854, %v1257
        %v1888 = vsel %vm1875, %v1855, %v1259
        %v1889 = vsel %vm1875, %v1856, %v1261
        %v1890 = vsel %vm1875, %v1857, %v1263
        %v1891 = vsel %vm1875, %v1858, %v1265
        %v1892 = vsel %vm1875, %v1859, %v1267
        %v1893 = vsel %vm1875, %v1860, %v1269
        %v1894 = vsel %vm1875, %v1861, %v1271
        %v1895 = vsel %vm1875, %v1862, %v1273
        %v1896 = vsel %vm1875, %v1863, %v1275
        %v1897 = vsel %vm1875, %v1864, %v1277
        %v1898 = vsel %vm1875, %v1865, %v1279
        %v1899 = vsel %vm1875, %v1866, %v1281
        %v1900 = vsel %vm1875, %v1867, %v1283
        %v1901 = vsel %vm1875, %v1868, %v1285
        %v1902 = vsel %vm1875, %v1869, %v1287
        %v1903 = vsel %vm1875, %v1870, %v1289
        %v1904 = vsel %vm1875, %v1871, %v1291
        %v1905 = vsel %vm1875, %v1872, %v1293
        %v1906 = vsel %vm1875, %v1873, %v1295
        %v1907 = vsel %vm1875, %v1874, %v1297
        %v1908 = vsel %vm905, %v1876, %v1331
        %v1909 = vsel %vm905, %v1877, %v1333
        %v1910 = vsel %vm905, %v1878, %v1335
        %v1911 = vsel %vm905, %v1879, %v1337
        %v1912 = vsel %vm905, %v1880, %v1339
        %v1913 = vsel %vm905, %v1881, %v1341
        %v1914 = vsel %vm905, %v1882, %v1343
        %v1915 = vsel %vm905, %v1883, %v1345
        %v1916 = vsel %vm905, %v1884, %v1347
        %v1917 = vsel %vm905, %v1885, %v1349
        %v1918 = vsel %vm905, %v1886, %v1351
        %v1919 = vsel %vm905, %v1887, %v1353
        %v1920 = vsel %vm905, %v1888, %v1355
        %v1921 = vsel %vm905, %v1889, %v1357
        %v1922 = vsel %vm905, %v1890, %v1359
        %v1923 = vsel %vm905, %v1891, %v1361
        %v1924 = vsel %vm905, %v1892, %v1363
        %v1925 = vsel %vm905, %v1893, %v1365
        %v1926 = vsel %vm905, %v1894, %v1367
        %v1927 = vsel %vm905, %v1895, %v1369
        %v1928 = vsel %vm905, %v1896, %v1371
        %v1929 = vsel %vm905, %v1897, %v1373
        %v1930 = vsel %vm905, %v1898, %v1375
        %v1931 = vsel %vm905, %v1899, %v1377
        %v1932 = vsel %vm905, %v1900, %v1379
        %v1933 = vsel %vm905, %v1901, %v1381
        %v1934 = vsel %vm905, %v1902, %v1383
        %v1935 = vsel %vm905, %v1903, %v1385
        %v1936 = vsel %vm905, %v1904, %v1387
        %v1937 = vsel %vm905, %v1905, %v1389
        %v1938 = vsel %vm905, %v1906, %v1391
        %v1939 = vsel %vm905, %v1907, %v1393
        %vm1940 = vcmask 162816
        %v1941 = vsel %vm1940, %v1908, %v1427
        %v1942 = vsel %vm1940, %v1909, %v1429
        %v1943 = vsel %vm1940, %v1910, %v1431
        %v1944 = vsel %vm1940, %v1911, %v1433
        %v1945 = vsel %vm1940, %v1912, %v1435
        %v1946 = vsel %vm1940, %v1913, %v1437
        %v1947 = vsel %vm1940, %v1914, %v1439
        %v1948 = vsel %vm1940, %v1915, %v1441
        %v1949 = vsel %vm1940, %v1916, %v1443
        %v1950 = vsel %vm1940, %v1917, %v1445
        %v1951 = vsel %vm1940, %v1918, %v1447
        %v1952 = vsel %vm1940, %v1919, %v1449
        %v1953 = vsel %vm1940, %v1920, %v1451
        %v1954 = vsel %vm1940, %v1921, %v1453
        %v1955 = vsel %vm1940, %v1922, %v1455
        %v1956 = vsel %vm1940, %v1923, %v1457
        %v1957 = vsel %vm1940, %v1924, %v1459
        %v1958 = vsel %vm1940, %v1925, %v1461
        %v1959 = vsel %vm1940, %v1926, %v1463
        %v1960 = vsel %vm1940, %v1927, %v1465
        %v1961 = vsel %vm1940, %v1928, %v1467
        %v1962 = vsel %vm1940, %v1929, %v1469
        %v1963 = vsel %vm1940, %v1930, %v1471
        %v1964 = vsel %vm1940, %v1931, %v1473
        %v1965 = vsel %vm1940, %v1932, %v1475
        %v1966 = vsel %vm1940, %v1933, %v1477
        %v1967 = vsel %vm1940, %v1934, %v1479
        %v1968 = vsel %vm1940, %v1935, %v1481
        %v1969 = vsel %vm1940, %v1936, %v1483
        %v1970 = vsel %vm1940, %v1937, %v1485
        %v1971 = vsel %vm1940, %v1938, %v1487
        %v1972 = vsel %vm1940, %v1939, %v1489
        %vm1973 = vcmask 195584
        %v1974 = vsel %vm1973, %v1941, %v1523
        %v1975 = vsel %vm1973, %v1942, %v1525
        %v1976 = vsel %vm1973, %v1943, %v1527
        %v1977 = vsel %vm1973, %v1944, %v1529
        %v1978 = vsel %vm1973, %v1945, %v1531
        %v1979 = vsel %vm1973, %v1946, %v1533
        %v1980 = vsel %vm1973, %v1947, %v1535
        %v1981 = vsel %vm1973, %v1948, %v1537
        %v1982 = vsel %vm1973, %v1949, %v1539
        %v1983 = vsel %vm1973, %v1950, %v1541
        %v1984 = vsel %vm1973, %v1951, %v1543
        %v1985 = vsel %vm1973, %v1952, %v1545
        %v1986 = vsel %vm1973, %v1953, %v1547
        %v1987 = vsel %vm1973, %v1954, %v1549
        %v1988 = vsel %vm1973, %v1955, %v1551
        %v1989 = vsel %vm1973, %v1956, %v1553
        %v1990 = vsel %vm1973, %v1957, %v1555
        %v1991 = vsel %vm1973, %v1958, %v1557
        %v1992 = vsel %vm1973, %v1959, %v1559
        %v1993 = vsel %vm1973, %v1960, %v1561
        %v1994 = vsel %vm1973, %v1961, %v1563
        %v1995 = vsel %vm1973, %v1962, %v1565
        %v1996 = vsel %vm1973, %v1963, %v1567
        %v1997 = vsel %vm1973, %v1964, %v1569
        %v1998 = vsel %vm1973, %v1965, %v1571
        %v1999 = vsel %vm1973, %v1966, %v1573
        %v2000 = vsel %vm1973, %v1967, %v1575
        %v2001 = vsel %vm1973, %v1968, %v1577
        %v2002 = vsel %vm1973, %v1969, %v1579
        %v2003 = vsel %vm1973, %v1970, %v1581
        %v2004 = vsel %vm1973, %v1971, %v1583
        %v2005 = vsel %vm1973, %v1972, %v1585
        %vm2006 = vcmask 228352
        %v2007 = vsel %vm2006, %v1974, %v1619
        %v2008 = vsel %vm2006, %v1975, %v1621
        %v2009 = vsel %vm2006, %v1976, %v1623
        %v2010 = vsel %vm2006, %v1977, %v1625
        %v2011 = vsel %vm2006, %v1978, %v1627
        %v2012 = vsel %vm2006, %v1979, %v1629
        %v2013 = vsel %vm2006, %v1980, %v1631
        %v2014 = vsel %vm2006, %v1981, %v1633
        %v2015 = vsel %vm2006, %v1982, %v1635
        %v2016 = vsel %vm2006, %v1983, %v1637
        %v2017 = vsel %vm2006, %v1984, %v1639
        %v2018 = vsel %vm2006, %v1985, %v1641
        %v2019 = vsel %vm2006, %v1986, %v1643
        %v2020 = vsel %vm2006, %v1987, %v1645
        %v2021 = vsel %vm2006, %v1988, %v1647
        %v2022 = vsel %vm2006, %v1989, %v1649
        %v2023 = vsel %vm2006, %v1990, %v1651
        %v2024 = vsel %vm2006, %v1991, %v1653
        %v2025 = vsel %vm2006, %v1992, %v1655
        %v2026 = vsel %vm2006, %v1993, %v1657
        %v2027 = vsel %vm2006, %v1994, %v1659
        %v2028 = vsel %vm2006, %v1995, %v1661
        %v2029 = vsel %vm2006, %v1996, %v1663
        %v2030 = vsel %vm2006, %v1997, %v1665
        %v2031 = vsel %vm2006, %v1998, %v1667
        %v2032 = vsel %vm2006, %v1999, %v1669
        %v2033 = vsel %vm2006, %v2000, %v1671
        %v2034 = vsel %vm2006, %v2001, %v1673
        %v2035 = vsel %vm2006, %v2002, %v1675
        %v2036 = vsel %vm2006, %v2003, %v1677
        %v2037 = vsel %vm2006, %v2004, %v1679
        %v2038 = vsel %vm2006, %v2005, %v1681
        %vm2039 = vcmask 261120
        %v2040 = vsel %vm2039, %v2007, %v1715
        %v2041 = vsel %vm2039, %v2008, %v1717
        %v2042 = vsel %vm2039, %v2009, %v1719
        %v2043 = vsel %vm2039, %v2010, %v1721
        %v2044 = vsel %vm2039, %v2011, %v1723
        %v2045 = vsel %vm2039, %v2012, %v1725
        %v2046 = vsel %vm2039, %v2013, %v1727
        %v2047 = vsel %vm2039, %v2014, %v1729
        %v2048 = vsel %vm2039, %v2015, %v1731
        %v2049 = vsel %vm2039, %v2016, %v1733
        %v2050 = vsel %vm2039, %v2017, %v1735
        %v2051 = vsel %vm2039, %v2018, %v1737
        %v2052 = vsel %vm2039, %v2019, %v1739
        %v2053 = vsel %vm2039, %v2020, %v1741
        %v2054 = vsel %vm2039, %v2021, %v1743
        %v2055 = vsel %vm2039, %v2022, %v1745
        %v2056 = vsel %vm2039, %v2023, %v1747
        %v2057 = vsel %vm2039, %v2024, %v1749
        %v2058 = vsel %vm2039, %v2025, %v1751
        %v2059 = vsel %vm2039, %v2026, %v1753
        %v2060 = vsel %vm2039, %v2027, %v1755
        %v2061 = vsel %vm2039, %v2028, %v1757
        %v2062 = vsel %vm2039, %v2029, %v1759
        %v2063 = vsel %vm2039, %v2030, %v1761
        %v2064 = vsel %vm2039, %v2031, %v1763
        %v2065 = vsel %vm2039, %v2032, %v1765
        %v2066 = vsel %vm2039, %v2033, %v1767
        %v2067 = vsel %vm2039, %v2034, %v1769
        %v2068 = vsel %vm2039, %v2035, %v1771
        %v2069 = vsel %vm2039, %v2036, %v1773
        %v2070 = vsel %vm2039, %v2037, %v1775
        %v2071 = vsel %vm2039, %v2038, %v1777
        %v2072 = vld [vmem:[%s3] sm:$0xff]
        %v2073 = vld [vmem:[%s3 + $0x8] sm:$0xff]
        %v2074 = vld [vmem:[%s3 + $0x10] sm:$0xff]
        %v2075 = vld [vmem:[%s3 + $0x18] sm:$0xff]
        %v2076 = vld [vmem:[%s3 + $0x20] sm:$0xf]
        %vm2077 = vcmask 293888
        %v2079 = vsel %vm2077, %v2040, 0
        %v2082 = vsel %vm2077, %v2041, 0
        %v2085 = vsel %vm2077, %v2042, 0
        %v2088 = vsel %vm2077, %v2043, 0
        %v2091 = vsel %vm2077, %v2044, 0
        %v2094 = vsel %vm2077, %v2045, 0
        %v2097 = vsel %vm2077, %v2046, 0
        %v2100 = vsel %vm2077, %v2047, 0
        %v2103 = vsel %vm2077, %v2048, 0
        %v2106 = vsel %vm2077, %v2049, 0
        %v2109 = vsel %vm2077, %v2050, 0
        %v2112 = vsel %vm2077, %v2051, 0
        %v2115 = vsel %vm2077, %v2052, 0
        %v2118 = vsel %vm2077, %v2053, 0
        %v2121 = vsel %vm2077, %v2054, 0
        %v2124 = vsel %vm2077, %v2055, 0
        %v2127 = vsel %vm2077, %v2056, 0
        %v2130 = vsel %vm2077, %v2057, 0
        %v2133 = vsel %vm2077, %v2058, 0
        %v2136 = vsel %vm2077, %v2059, 0
        %v2139 = vsel %vm2077, %v2060, 0
        %v2142 = vsel %vm2077, %v2061, 0
        %v2145 = vsel %vm2077, %v2062, 0
        %v2148 = vsel %vm2077, %v2063, 0
        %v2151 = vsel %vm2077, %v2064, 0
        %v2154 = vsel %vm2077, %v2065, 0
        %v2157 = vsel %vm2077, %v2066, 0
        %v2160 = vsel %vm2077, %v2067, 0
        %v2163 = vsel %vm2077, %v2068, 0
        %v2166 = vsel %vm2077, %v2069, 0
        %v2169 = vsel %vm2077, %v2070, 0
        %v2172 = vsel %vm2077, %v2071, 0
        %v2175 = vsel %vm873, %v2076, 0
        %2177 = vmatpush.msra.mxu0 0.0
        %2178 = vmatpush.msra.mxu0 0.0
        %2179 = vmatpush.msra.mxu0 0.0
        %2180 = vmatpush.msra.mxu0 0.0
        %2181 = vmatpush.msra.mxu0 0.0
        %2182 = vmatpush.msra.mxu0 0.0
        %2183 = vmatpush.msra.mxu0 0.0
        %2184 = vmatpush.msra.mxu0 0.0
        %2185 = vmatpush.msra.mxu0 0.0
        %2186 = vmatpush.msra.mxu0 0.0
        %2187 = vmatpush.msra.mxu0 0.0
        %2188 = vmatpush.msra.mxu0 %v2175
        %2189 = vmatpush.msra.mxu0 %v2075
        %2190 = vmatpush.msra.mxu0 %v2074
        %2191 = vmatpush.msra.mxu0 %v2073
        %2192 = vmatpush.msra.mxu0 %v2072
        %2193 = vmatmul.f32.gmra.mxu0 %v2079
        %v2194 = vpop.f32.mrf.mxu0
        %v2195 = vadd.f32 0.0, %v2194
        %2196 = vmatmul.f32.gmra.mxu0 %v2082
        %v2197 = vpop.f32.mrf.mxu0
        %v2198 = vadd.f32 0.0, %v2197
        %2199 = vmatmul.f32.gmra.mxu0 %v2085
        %v2200 = vpop.f32.mrf.mxu0
        %v2201 = vadd.f32 0.0, %v2200
        %2202 = vmatmul.f32.gmra.mxu0 %v2088
        %v2203 = vpop.f32.mrf.mxu0
        %v2204 = vadd.f32 0.0, %v2203
        %2205 = vmatmul.f32.gmra.mxu0 %v2091
        %v2206 = vpop.f32.mrf.mxu0
        %v2207 = vadd.f32 0.0, %v2206
        %2208 = vmatmul.f32.gmra.mxu0 %v2094
        %v2209 = vpop.f32.mrf.mxu0
        %v2210 = vadd.f32 0.0, %v2209
        %2211 = vmatmul.f32.gmra.mxu0 %v2097
        %v2212 = vpop.f32.mrf.mxu0
        %v2213 = vadd.f32 0.0, %v2212
        %2214 = vmatmul.f32.gmra.mxu0 %v2100
        %v2215 = vpop.f32.mrf.mxu0
        %v2216 = vadd.f32 0.0, %v2215
        %2217 = vmatmul.f32.gmra.mxu0 %v2103
        %v2218 = vpop.f32.mrf.mxu0
        %v2219 = vadd.f32 0.0, %v2218
        %2220 = vmatmul.f32.gmra.mxu0 %v2106
        %v2221 = vpop.f32.mrf.mxu0
        %v2222 = vadd.f32 0.0, %v2221
        %2223 = vmatmul.f32.gmra.mxu0 %v2109
        %v2224 = vpop.f32.mrf.mxu0
        %v2225 = vadd.f32 0.0, %v2224
        %2226 = vmatmul.f32.gmra.mxu0 %v2112
        %v2227 = vpop.f32.mrf.mxu0
        %v2228 = vadd.f32 0.0, %v2227
        %2229 = vmatmul.f32.gmra.mxu0 %v2115
        %v2230 = vpop.f32.mrf.mxu0
        %v2231 = vadd.f32 0.0, %v2230
        %2232 = vmatmul.f32.gmra.mxu0 %v2118
        %v2233 = vpop.f32.mrf.mxu0
        %v2234 = vadd.f32 0.0, %v2233
        %2235 = vmatmul.f32.gmra.mxu0 %v2121
        %v2236 = vpop.f32.mrf.mxu0
        %v2237 = vadd.f32 0.0, %v2236
        %2238 = vmatmul.f32.gmra.mxu0 %v2124
        %v2239 = vpop.f32.mrf.mxu0
        %v2240 = vadd.f32 0.0, %v2239
        %2241 = vmatmul.f32.gmra.mxu0 %v2127
        %v2242 = vpop.f32.mrf.mxu0
        %v2243 = vadd.f32 0.0, %v2242
        %2244 = vmatmul.f32.gmra.mxu0 %v2130
        %v2245 = vpop.f32.mrf.mxu0
        %v2246 = vadd.f32 0.0, %v2245
        %2247 = vmatmul.f32.gmra.mxu0 %v2133
        %v2248 = vpop.f32.mrf.mxu0
        %v2249 = vadd.f32 0.0, %v2248
        %2250 = vmatmul.f32.gmra.mxu0 %v2136
        %v2251 = vpop.f32.mrf.mxu0
        %v2252 = vadd.f32 0.0, %v2251
        %2253 = vmatmul.f32.gmra.mxu0 %v2139
        %v2254 = vpop.f32.mrf.mxu0
        %v2255 = vadd.f32 0.0, %v2254
        %2256 = vmatmul.f32.gmra.mxu0 %v2142
        %v2257 = vpop.f32.mrf.mxu0
        %v2258 = vadd.f32 0.0, %v2257
        %2259 = vmatmul.f32.gmra.mxu0 %v2145
        %v2260 = vpop.f32.mrf.mxu0
        %v2261 = vadd.f32 0.0, %v2260
        %2262 = vmatmul.f32.gmra.mxu0 %v2148
        %v2263 = vpop.f32.mrf.mxu0
        %v2264 = vadd.f32 0.0, %v2263
        %2265 = vmatmul.f32.gmra.mxu0 %v2151
        %v2266 = vpop.f32.mrf.mxu0
        %v2267 = vadd.f32 0.0, %v2266
        %2268 = vmatmul.f32.gmra.mxu0 %v2154
        %v2269 = vpop.f32.mrf.mxu0
        %v2270 = vadd.f32 0.0, %v2269
        %2271 = vmatmul.f32.gmra.mxu0 %v2157
        %v2272 = vpop.f32.mrf.mxu0
        %v2273 = vadd.f32 0.0, %v2272
        %2274 = vmatmul.f32.gmra.mxu0 %v2160
        %v2275 = vpop.f32.mrf.mxu0
        %v2276 = vadd.f32 0.0, %v2275
        %2277 = vmatmul.f32.gmra.mxu0 %v2163
        %v2278 = vpop.f32.mrf.mxu0
        %v2279 = vadd.f32 0.0, %v2278
        %2280 = vmatmul.f32.gmra.mxu0 %v2166
        %v2281 = vpop.f32.mrf.mxu0
        %v2282 = vadd.f32 0.0, %v2281
        %2283 = vmatmul.f32.gmra.mxu0 %v2169
        %v2284 = vpop.f32.mrf.mxu0
        %v2285 = vadd.f32 0.0, %v2284
        %2286 = vmatmul.f32.gmra.mxu0 %v2172
        %v2287 = vpop.f32.mrf.mxu0
        %v2288 = vadd.f32 0.0, %v2287
        %2289 = vdwg.mxu0
        %v2290 = vld [vmem:[%s1] sm:$0xff]
        %v2291 = vld [vmem:[%s1 + $0x8] sm:$0xff]
        %v2292 = vld [vmem:[%s1 + $0x10] sm:$0xff]
        %v2293 = vld [vmem:[%s1 + $0x18] sm:$0xff]
        %v2294 = vld [vmem:[%s1 + $0x20] sm:$0xff]
        %v2295 = vld [vmem:[%s1 + $0x28] sm:$0xff]
        %v2296 = vld [vmem:[%s1 + $0x30] sm:$0xff]
        %v2297 = vld [vmem:[%s1 + $0x38] sm:$0xff]
        %v2298 = vld [vmem:[%s1 + $0x40] sm:$0xff]
        %v2299 = vld [vmem:[%s1 + $0x48] sm:$0xff]
        %v2300 = vld [vmem:[%s1 + $0x50] sm:$0xff]
        %v2301 = vld [vmem:[%s1 + $0x58] sm:$0xff]
        %v2302 = vld [vmem:[%s1 + $0x60] sm:$0xff]
        %v2303 = vld [vmem:[%s1 + $0x68] sm:$0xff]
        %v2304 = vld [vmem:[%s1 + $0x70] sm:$0xff]
        %v2305 = vld [vmem:[%s1 + $0x78] sm:$0xff]
        %2306 = vmatpush.msra.mxu0 %v2240
        %2307 = vmatpush.msra.mxu0 %v2237
        %2308 = vmatpush.msra.mxu0 %v2234
        %2309 = vmatpush.msra.mxu0 %v2231
        %2310 = vmatpush.msra.mxu0 %v2228
        %2311 = vmatpush.msra.mxu0 %v2225
        %2312 = vmatpush.msra.mxu0 %v2222
        %2313 = vmatpush.msra.mxu0 %v2219
        %2314 = vmatpush.msra.mxu0 %v2216
        %2315 = vmatpush.msra.mxu0 %v2213
        %2316 = vmatpush.msra.mxu0 %v2210
        %2317 = vmatpush.msra.mxu0 %v2207
        %2318 = vmatpush.msra.mxu0 %v2204
        %2319 = vmatpush.msra.mxu0 %v2201
        %2320 = vmatpush.msra.mxu0 %v2198
        %2321 = vmatpush.msra.mxu0 %v2195
        %2322 = vmatmul.f32.gmra.mxu0 %v2290
        %v2323 = vpop.f32.mrf.mxu0
        %v2324 = vadd.f32 0.0, %v2323
        %2325 = vmatmul.f32.gmra.mxu0 %v2292
        %v2326 = vpop.f32.mrf.mxu0
        %v2327 = vadd.f32 0.0, %v2326
        %2328 = vmatmul.f32.gmra.mxu0 %v2294
        %v2329 = vpop.f32.mrf.mxu0
        %v2330 = vadd.f32 0.0, %v2329
        %2331 = vmatmul.f32.gmra.mxu0 %v2296
        %v2332 = vpop.f32.mrf.mxu0
        %v2333 = vadd.f32 0.0, %v2332
        %2334 = vmatmul.f32.gmra.mxu0 %v2298
        %v2335 = vpop.f32.mrf.mxu0
        %v2336 = vadd.f32 0.0, %v2335
        %2337 = vmatmul.f32.gmra.mxu0 %v2300
        %v2338 = vpop.f32.mrf.mxu0
        %v2339 = vadd.f32 0.0, %v2338
        %2340 = vmatmul.f32.gmra.mxu0 %v2302
        %v2341 = vpop.f32.mrf.mxu0
        %v2342 = vadd.f32 0.0, %v2341
        %2343 = vmatmul.f32.gmra.mxu0 %v2304
        %v2344 = vpop.f32.mrf.mxu0
        %v2345 = vadd.f32 0.0, %v2344
        %2346 = vdwg.mxu0
        %2347 = vmatpush.msra.mxu0 %v2288
        %2348 = vmatpush.msra.mxu0 %v2285
        %2349 = vmatpush.msra.mxu0 %v2282
        %2350 = vmatpush.msra.mxu0 %v2279
        %2351 = vmatpush.msra.mxu0 %v2276
        %2352 = vmatpush.msra.mxu0 %v2273
        %2353 = vmatpush.msra.mxu0 %v2270
        %2354 = vmatpush.msra.mxu0 %v2267
        %2355 = vmatpush.msra.mxu0 %v2264
        %2356 = vmatpush.msra.mxu0 %v2261
        %2357 = vmatpush.msra.mxu0 %v2258
        %2358 = vmatpush.msra.mxu0 %v2255
        %2359 = vmatpush.msra.mxu0 %v2252
        %2360 = vmatpush.msra.mxu0 %v2249
        %2361 = vmatpush.msra.mxu0 %v2246
        %2362 = vmatpush.msra.mxu0 %v2243
        %2363 = vmatmul.f32.gmra.mxu0 %v2291
        %v2364 = vpop.f32.mrf.mxu0
        %v2365 = vadd.f32 %v2324, %v2364
        %2366 = vmatmul.f32.gmra.mxu0 %v2293
        %v2367 = vpop.f32.mrf.mxu0
        %v2368 = vadd.f32 %v2327, %v2367
        %2369 = vmatmul.f32.gmra.mxu0 %v2295
        %v2370 = vpop.f32.mrf.mxu0
        %v2371 = vadd.f32 %v2330, %v2370
        %2372 = vmatmul.f32.gmra.mxu0 %v2297
        %v2373 = vpop.f32.mrf.mxu0
        %v2374 = vadd.f32 %v2333, %v2373
        %2375 = vmatmul.f32.gmra.mxu0 %v2299
        %v2376 = vpop.f32.mrf.mxu0
        %v2377 = vadd.f32 %v2336, %v2376
        %2378 = vmatmul.f32.gmra.mxu0 %v2301
        %v2379 = vpop.f32.mrf.mxu0
        %v2380 = vadd.f32 %v2339, %v2379
        %2381 = vmatmul.f32.gmra.mxu0 %v2303
        %v2382 = vpop.f32.mrf.mxu0
        %v2383 = vadd.f32 %v2342, %v2382
        %2384 = vmatmul.f32.gmra.mxu0 %v2305
        %v2385 = vpop.f32.mrf.mxu0
        %v2386 = vadd.f32 %v2345, %v2385
        %2387 = vdwg.mxu0
        %v2388 = vld [vmem:[%s4] sm:$0x1]
        %v2390 = vperm.slane %v2388, 0
        %v2392 = vmul.f32 %v2365, %v2390
        %v2393 = vmul.f32 %v2368, %v2390
        %v2394 = vmul.f32 %v2371, %v2390
        %v2395 = vmul.f32 %v2374, %v2390
        %v2396 = vmul.f32 %v2377, %v2390
        %v2397 = vmul.f32 %v2380, %v2390
        %v2398 = vmul.f32 %v2383, %v2390
        %v2399 = vmul.f32 %v2386, %v2390
        %v2400 = vld [vmem:[%s5] sm:$0x1]
        %v2402 = vperm.slane %v2400, 0
        %v2404 = vadd.f32 %v2392, %v2402
        %v2405 = vadd.f32 %v2393, %v2402
        %v2406 = vadd.f32 %v2394, %v2402
        %v2407 = vadd.f32 %v2395, %v2402
        %v2408 = vadd.f32 %v2396, %v2402
        %v2409 = vadd.f32 %v2397, %v2402
        %v2410 = vadd.f32 %v2398, %v2402
        %v2411 = vadd.f32 %v2399, %v2402
        %v2412 = vmax.f32 %v2404, 0.0
        %v2413 = vmax.f32 %v2405, 0.0
        %v2414 = vmax.f32 %v2406, 0.0
        %v2415 = vmax.f32 %v2407, 0.0
        %v2416 = vmax.f32 %v2408, 0.0
        %v2417 = vmax.f32 %v2409, 0.0
        %v2418 = vmax.f32 %v2410, 0.0
        %v2419 = vmax.f32 %v2411, 0.0
        %v2420 = vld [vmem:[%s2] sm:$0xff]
        %v2421 = vld [vmem:[%s2 + $0x8] sm:$0xff]
        %v2422 = vld [vmem:[%s2 + $0x10] sm:$0xff]
        %v2423 = vld [vmem:[%s2 + $0x18] sm:$0xff]
        %v2424 = vld [vmem:[%s2 + $0x20] sm:$0xff]
        %v2425 = vld [vmem:[%s2 + $0x28] sm:$0xff]
        %v2426 = vld [vmem:[%s2 + $0x30] sm:$0xff]
        %v2427 = vld [vmem:[%s2 + $0x38] sm:$0xff]
        %v2428 = vld [vmem:[%s2 + $0x40] sm:$0xff]
        %v2429 = vld [vmem:[%s2 + $0x48] sm:$0xff]
        %v2430 = vld [vmem:[%s2 + $0x50] sm:$0xff]
        %v2431 = vld [vmem:[%s2 + $0x58] sm:$0xff]
        %v2432 = vld [vmem:[%s2 + $0x60] sm:$0xff]
        %v2433 = vld [vmem:[%s2 + $0x68] sm:$0xff]
        %v2434 = vld [vmem:[%s2 + $0x70] sm:$0xff]
        %v2435 = vld [vmem:[%s2 + $0x78] sm:$0xff]
        %v2436 = vld [vmem:[%s2 + $0x80] sm:$0xff]
        %v2437 = vld [vmem:[%s2 + $0x88] sm:$0xff]
        %v2438 = vld [vmem:[%s2 + $0x90] sm:$0xff]
        %v2439 = vld [vmem:[%s2 + $0x98] sm:$0xff]
        %vm2440 = vcmask 523264
        %v2442 = vsel %vm2440, %v2420, 0
        %v2445 = vsel %vm2440, %v2421, 0
        %v2448 = vsel %vm2440, %v2422, 0
        %v2451 = vsel %vm2440, %v2423, 0
        %v2454 = vsel %vm2440, %v2424, 0
        %v2457 = vsel %vm2440, %v2425, 0
        %v2460 = vsel %vm2440, %v2426, 0
        %v2463 = vsel %vm2440, %v2427, 0
        %v2466 = vsel %vm2440, %v2428, 0
        %v2469 = vsel %vm2440, %v2429, 0
        %v2472 = vsel %vm2440, %v2430, 0
        %v2475 = vsel %vm2440, %v2431, 0
        %v2478 = vsel %vm2440, %v2432, 0
        %v2481 = vsel %vm2440, %v2433, 0
        %v2484 = vsel %vm2440, %v2434, 0
        %v2487 = vsel %vm2440, %v2435, 0
        %v2490 = vsel %vm2440, %v2436, 0
        %v2493 = vsel %vm2440, %v2437, 0
        %v2496 = vsel %vm2440, %v2438, 0
        %v2499 = vsel %vm2440, %v2439, 0
        %2501 = vmatpush.msra.mxu0 0.0
        %2502 = vmatpush.msra.mxu0 0.0
        %2503 = vmatpush.msra.mxu0 0.0
        %2504 = vmatpush.msra.mxu0 0.0
        %2505 = vmatpush.msra.mxu0 0.0
        %2506 = vmatpush.msra.mxu0 0.0
        %2507 = vmatpush.msra.mxu0 0.0
        %2508 = vmatpush.msra.mxu0 0.0
        %2509 = vmatpush.msra.mxu0 %v2419
        %2510 = vmatpush.msra.mxu0 %v2418
        %2511 = vmatpush.msra.mxu0 %v2417
        %2512 = vmatpush.msra.mxu0 %v2416
        %2513 = vmatpush.msra.mxu0 %v2415
        %2514 = vmatpush.msra.mxu0 %v2414
        %2515 = vmatpush.msra.mxu0 %v2413
        %2516 = vmatpush.msra.mxu0 %v2412
        %2517 = vmatmul.f32.gmra.mxu0 %v2442
        %v2518 = vpop.f32.mrf.mxu0
        %v2519 = vadd.f32 0.0, %v2518
        %2520 = vmatmul.f32.gmra.mxu0 %v2445
        %v2521 = vpop.f32.mrf.mxu0
        %v2522 = vadd.f32 0.0, %v2521
        %2523 = vmatmul.f32.gmra.mxu0 %v2448
        %v2524 = vpop.f32.mrf.mxu0
        %v2525 = vadd.f32 0.0, %v2524
        %2526 = vmatmul.f32.gmra.mxu0 %v2451
        %v2527 = vpop.f32.mrf.mxu0
        %v2528 = vadd.f32 0.0, %v2527
        %2529 = vmatmul.f32.gmra.mxu0 %v2454
        %v2530 = vpop.f32.mrf.mxu0
        %v2531 = vadd.f32 0.0, %v2530
        %2532 = vmatmul.f32.gmra.mxu0 %v2457
        %v2533 = vpop.f32.mrf.mxu0
        %v2534 = vadd.f32 0.0, %v2533
        %2535 = vmatmul.f32.gmra.mxu0 %v2460
        %v2536 = vpop.f32.mrf.mxu0
        %v2537 = vadd.f32 0.0, %v2536
        %2538 = vmatmul.f32.gmra.mxu0 %v2463
        %v2539 = vpop.f32.mrf.mxu0
        %v2540 = vadd.f32 0.0, %v2539
        %2541 = vmatmul.f32.gmra.mxu0 %v2466
        %v2542 = vpop.f32.mrf.mxu0
        %v2543 = vadd.f32 0.0, %v2542
        %2544 = vmatmul.f32.gmra.mxu0 %v2469
        %v2545 = vpop.f32.mrf.mxu0
        %v2546 = vadd.f32 0.0, %v2545
        %2547 = vmatmul.f32.gmra.mxu0 %v2472
        %v2548 = vpop.f32.mrf.mxu0
        %v2549 = vadd.f32 0.0, %v2548
        %2550 = vmatmul.f32.gmra.mxu0 %v2475
        %v2551 = vpop.f32.mrf.mxu0
        %v2552 = vadd.f32 0.0, %v2551
        %2553 = vmatmul.f32.gmra.mxu0 %v2478
        %v2554 = vpop.f32.mrf.mxu0
        %v2555 = vadd.f32 0.0, %v2554
        %2556 = vmatmul.f32.gmra.mxu0 %v2481
        %v2557 = vpop.f32.mrf.mxu0
        %v2558 = vadd.f32 0.0, %v2557
        %2559 = vmatmul.f32.gmra.mxu0 %v2484
        %v2560 = vpop.f32.mrf.mxu0
        %v2561 = vadd.f32 0.0, %v2560
        %2562 = vmatmul.f32.gmra.mxu0 %v2487
        %v2563 = vpop.f32.mrf.mxu0
        %v2564 = vadd.f32 0.0, %v2563
        %2565 = vmatmul.f32.gmra.mxu0 %v2490
        %v2566 = vpop.f32.mrf.mxu0
        %v2567 = vadd.f32 0.0, %v2566
        %2568 = vmatmul.f32.gmra.mxu0 %v2493
        %v2569 = vpop.f32.mrf.mxu0
        %v2570 = vadd.f32 0.0, %v2569
        %2571 = vmatmul.f32.gmra.mxu0 %v2496
        %v2572 = vpop.f32.mrf.mxu0
        %v2573 = vadd.f32 0.0, %v2572
        %2574 = vmatmul.f32.gmra.mxu0 %v2499
        %v2575 = vpop.f32.mrf.mxu0
        %v2576 = vadd.f32 0.0, %v2575
        %2577 = vdwg.mxu0
        %v2594 = vrot.slane %v2519, 1
        %v2595 = vrot.slane %v2522, 1
        %v2596 = vsel %vm685, %v2594, %v2595
        %v2597 = vrot.slane %v2525, 1
        %v2598 = vrot.slane %v2528, 1
        %v2599 = vsel %vm685, %v2597, %v2598
        %v2600 = vrot.slane %v2531, 1
        %v2601 = vrot.slane %v2534, 1
        %v2602 = vsel %vm685, %v2600, %v2601
        %v2603 = vrot.slane %v2537, 1
        %v2604 = vrot.slane %v2540, 1
        %v2605 = vsel %vm685, %v2603, %v2604
        %v2606 = vrot.slane %v2543, 1
        %v2607 = vrot.slane %v2546, 1
        %v2608 = vsel %vm685, %v2606, %v2607
        %v2609 = vrot.slane %v2549, 1
        %v2610 = vrot.slane %v2552, 1
        %v2611 = vsel %vm685, %v2609, %v2610
        %v2612 = vrot.slane %v2555, 1
        %v2613 = vrot.slane %v2558, 1
        %v2614 = vsel %vm685, %v2612, %v2613
        %v2615 = vrot.slane %v2561, 1
        %v2616 = vrot.slane %v2564, 1
        %v2617 = vsel %vm685, %v2615, %v2616
        %v2618 = vrot.slane %v2519, 2
        %v2619 = vrot.slane %v2522, 2
        %v2620 = vsel %vm943, %v2618, %v2619
        %v2621 = vrot.slane %v2525, 2
        %v2622 = vrot.slane %v2528, 2
        %v2623 = vsel %vm943, %v2621, %v2622
        %v2624 = vrot.slane %v2531, 2
        %v2625 = vrot.slane %v2534, 2
        %v2626 = vsel %vm943, %v2624, %v2625
        %v2627 = vrot.slane %v2537, 2
        %v2628 = vrot.slane %v2540, 2
        %v2629 = vsel %vm943, %v2627, %v2628
        %v2630 = vrot.slane %v2543, 2
        %v2631 = vrot.slane %v2546, 2
        %v2632 = vsel %vm943, %v2630, %v2631
        %v2633 = vrot.slane %v2549, 2
        %v2634 = vrot.slane %v2552, 2
        %v2635 = vsel %vm943, %v2633, %v2634
        %v2636 = vrot.slane %v2555, 2
        %v2637 = vrot.slane %v2558, 2
        %v2638 = vsel %vm943, %v2636, %v2637
        %v2639 = vrot.slane %v2561, 2
        %v2640 = vrot.slane %v2564, 2
        %v2641 = vsel %vm943, %v2639, %v2640
        %v2644 = vrot.slane %v2567, 1
        %v2645 = vrot.slane %v2570, 1
        %v2646 = vsel %vm685, %v2644, %v2645
        %v2647 = vrot.slane %v2567, 2
        %v2648 = vrot.slane %v2570, 2
        %v2649 = vsel %vm943, %v2647, %v2648
        %v2652 = vrot.slane %v2573, 1
        %v2653 = vrot.slane %v2576, 1
        %v2654 = vsel %vm685, %v2652, %v2653
        %v2655 = vrot.slane %v2573, 2
        %v2656 = vrot.slane %v2576, 2
        %v2657 = vsel %vm943, %v2655, %v2656
        %2658 = vrot.lane.b32.xlu0 %v2596, 8
        %v2659 = vpop.permute.xlu0 %2658
        %2660 = vrot.lane.b32.xlu0 %v2599, 8
        %v2661 = vpop.permute.xlu0 %2660
        %2662 = vrot.lane.b32.xlu0 %v2602, 8
        %v2663 = vpop.permute.xlu0 %2662
        %2664 = vrot.lane.b32.xlu0 %v2605, 8
        %v2665 = vpop.permute.xlu0 %2664
        %2666 = vrot.lane.b32.xlu0 %v2608, 8
        %v2667 = vpop.permute.xlu0 %2666
        %2668 = vrot.lane.b32.xlu0 %v2611, 8
        %v2669 = vpop.permute.xlu0 %2668
        %2670 = vrot.lane.b32.xlu0 %v2614, 8
        %v2671 = vpop.permute.xlu0 %2670
        %2672 = vrot.lane.b32.xlu0 %v2617, 8
        %v2673 = vpop.permute.xlu0 %2672
        %2682 = vrot.lane.b32.xlu0 %v2620, 16
        %v2683 = vpop.permute.xlu0 %2682
        %2684 = vrot.lane.b32.xlu0 %v2623, 16
        %v2685 = vpop.permute.xlu0 %2684
        %2686 = vrot.lane.b32.xlu0 %v2626, 16
        %v2687 = vpop.permute.xlu0 %2686
        %2688 = vrot.lane.b32.xlu0 %v2629, 16
        %v2689 = vpop.permute.xlu0 %2688
        %2690 = vrot.lane.b32.xlu0 %v2632, 16
        %v2691 = vpop.permute.xlu0 %2690
        %2692 = vrot.lane.b32.xlu0 %v2635, 16
        %v2693 = vpop.permute.xlu0 %2692
        %2694 = vrot.lane.b32.xlu0 %v2638, 16
        %v2695 = vpop.permute.xlu0 %2694
        %2696 = vrot.lane.b32.xlu0 %v2641, 16
        %v2697 = vpop.permute.xlu0 %2696
        %2706 = vrot.lane.b32.xlu0 %v2525, 24
        %v2707 = vpop.permute.xlu0 %2706
        %2708 = vrot.lane.b32.xlu0 %v2531, 24
        %v2709 = vpop.permute.xlu0 %2708
        %2710 = vrot.lane.b32.xlu0 %v2537, 24
        %v2711 = vpop.permute.xlu0 %2710
        %2712 = vrot.lane.b32.xlu0 %v2543, 24
        %v2713 = vpop.permute.xlu0 %2712
        %2714 = vrot.lane.b32.xlu0 %v2549, 24
        %v2715 = vpop.permute.xlu0 %2714
        %2716 = vrot.lane.b32.xlu0 %v2555, 24
        %v2717 = vpop.permute.xlu0 %2716
        %2718 = vrot.lane.b32.xlu0 %v2561, 24
        %v2719 = vpop.permute.xlu0 %2718
        %2720 = vrot.lane.b32.xlu0 %v2567, 24
        %v2721 = vpop.permute.xlu0 %2720
        %2730 = vrot.lane.b32.xlu0 %v2599, 32
        %v2731 = vpop.permute.xlu0 %2730
        %2732 = vrot.lane.b32.xlu0 %v2602, 32
        %v2733 = vpop.permute.xlu0 %2732
        %2734 = vrot.lane.b32.xlu0 %v2605, 32
        %v2735 = vpop.permute.xlu0 %2734
        %2736 = vrot.lane.b32.xlu0 %v2608, 32
        %v2737 = vpop.permute.xlu0 %2736
        %2738 = vrot.lane.b32.xlu0 %v2611, 32
        %v2739 = vpop.permute.xlu0 %2738
        %2740 = vrot.lane.b32.xlu0 %v2614, 32
        %v2741 = vpop.permute.xlu0 %2740
        %2742 = vrot.lane.b32.xlu0 %v2617, 32
        %v2743 = vpop.permute.xlu0 %2742
        %2744 = vrot.lane.b32.xlu0 %v2646, 32
        %v2745 = vpop.permute.xlu0 %2744
        %2754 = vrot.lane.b32.xlu0 %v2623, 40
        %v2755 = vpop.permute.xlu0 %2754
        %2756 = vrot.lane.b32.xlu0 %v2626, 40
        %v2757 = vpop.permute.xlu0 %2756
        %2758 = vrot.lane.b32.xlu0 %v2629, 40
        %v2759 = vpop.permute.xlu0 %2758
        %2760 = vrot.lane.b32.xlu0 %v2632, 40
        %v2761 = vpop.permute.xlu0 %2760
        %2762 = vrot.lane.b32.xlu0 %v2635, 40
        %v2763 = vpop.permute.xlu0 %2762
        %2764 = vrot.lane.b32.xlu0 %v2638, 40
        %v2765 = vpop.permute.xlu0 %2764
        %2766 = vrot.lane.b32.xlu0 %v2641, 40
        %v2767 = vpop.permute.xlu0 %2766
        %2768 = vrot.lane.b32.xlu0 %v2649, 40
        %v2769 = vpop.permute.xlu0 %2768
        %2778 = vrot.lane.b32.xlu0 %v2531, 48
        %v2779 = vpop.permute.xlu0 %2778
        %2780 = vrot.lane.b32.xlu0 %v2537, 48
        %v2781 = vpop.permute.xlu0 %2780
        %2782 = vrot.lane.b32.xlu0 %v2543, 48
        %v2783 = vpop.permute.xlu0 %2782
        %2784 = vrot.lane.b32.xlu0 %v2549, 48
        %v2785 = vpop.permute.xlu0 %2784
        %2786 = vrot.lane.b32.xlu0 %v2555, 48
        %v2787 = vpop.permute.xlu0 %2786
        %2788 = vrot.lane.b32.xlu0 %v2561, 48
        %v2789 = vpop.permute.xlu0 %2788
        %2790 = vrot.lane.b32.xlu0 %v2567, 48
        %v2791 = vpop.permute.xlu0 %2790
        %2792 = vrot.lane.b32.xlu0 %v2573, 48
        %v2793 = vpop.permute.xlu0 %2792
        %2802 = vrot.lane.b32.xlu0 %v2602, 56
        %v2803 = vpop.permute.xlu0 %2802
        %2804 = vrot.lane.b32.xlu0 %v2605, 56
        %v2805 = vpop.permute.xlu0 %2804
        %2806 = vrot.lane.b32.xlu0 %v2608, 56
        %v2807 = vpop.permute.xlu0 %2806
        %2808 = vrot.lane.b32.xlu0 %v2611, 56
        %v2809 = vpop.permute.xlu0 %2808
        %2810 = vrot.lane.b32.xlu0 %v2614, 56
        %v2811 = vpop.permute.xlu0 %2810
        %2812 = vrot.lane.b32.xlu0 %v2617, 56
        %v2813 = vpop.permute.xlu0 %2812
        %2814 = vrot.lane.b32.xlu0 %v2646, 56
        %v2815 = vpop.permute.xlu0 %2814
        %2816 = vrot.lane.b32.xlu0 %v2654, 56
        %v2817 = vpop.permute.xlu0 %2816
        %2826 = vrot.lane.b32.xlu0 %v2626, 64
        %v2827 = vpop.permute.xlu0 %2826
        %2828 = vrot.lane.b32.xlu0 %v2629, 64
        %v2829 = vpop.permute.xlu0 %2828
        %2830 = vrot.lane.b32.xlu0 %v2632, 64
        %v2831 = vpop.permute.xlu0 %2830
        %2832 = vrot.lane.b32.xlu0 %v2635, 64
        %v2833 = vpop.permute.xlu0 %2832
        %2834 = vrot.lane.b32.xlu0 %v2638, 64
        %v2835 = vpop.permute.xlu0 %2834
        %2836 = vrot.lane.b32.xlu0 %v2641, 64
        %v2837 = vpop.permute.xlu0 %2836
        %2838 = vrot.lane.b32.xlu0 %v2649, 64
        %v2839 = vpop.permute.xlu0 %2838
        %2840 = vrot.lane.b32.xlu0 %v2657, 64
        %v2841 = vpop.permute.xlu0 %2840
        %v2850 = vsel %vm1842, %v2519, %v2659
        %v2851 = vsel %vm1842, %v2525, %v2661
        %v2852 = vsel %vm1842, %v2531, %v2663
        %v2853 = vsel %vm1842, %v2537, %v2665
        %v2854 = vsel %vm1842, %v2543, %v2667
        %v2855 = vsel %vm1842, %v2549, %v2669
        %v2856 = vsel %vm1842, %v2555, %v2671
        %v2857 = vsel %vm1842, %v2561, %v2673
        %v2858 = vsel %vm905, %v2850, %v2683
        %v2859 = vsel %vm905, %v2851, %v2685
        %v2860 = vsel %vm905, %v2852, %v2687
        %v2861 = vsel %vm905, %v2853, %v2689
        %v2862 = vsel %vm905, %v2854, %v2691
        %v2863 = vsel %vm905, %v2855, %v2693
        %v2864 = vsel %vm905, %v2856, %v2695
        %v2865 = vsel %vm905, %v2857, %v2697
        %v2866 = vsel %vm1973, %v2858, %v2707
        %v2867 = vsel %vm1973, %v2859, %v2709
        %v2868 = vsel %vm1973, %v2860, %v2711
        %v2869 = vsel %vm1973, %v2861, %v2713
        %v2870 = vsel %vm1973, %v2862, %v2715
        %v2871 = vsel %vm1973, %v2863, %v2717
        %v2872 = vsel %vm1973, %v2864, %v2719
        %v2873 = vsel %vm1973, %v2865, %v2721
        %v2874 = vsel %vm2039, %v2866, %v2731
        %v2875 = vsel %vm2039, %v2867, %v2733
        %v2876 = vsel %vm2039, %v2868, %v2735
        %v2877 = vsel %vm2039, %v2869, %v2737
        %v2878 = vsel %vm2039, %v2870, %v2739
        %v2879 = vsel %vm2039, %v2871, %v2741
        %v2880 = vsel %vm2039, %v2872, %v2743
        %v2881 = vsel %vm2039, %v2873, %v2745
        %vm2882 = vcmask 326656
        %v2883 = vsel %vm2882, %v2874, %v2755
        %v2884 = vsel %vm2882, %v2875, %v2757
        %v2885 = vsel %vm2882, %v2876, %v2759
        %v2886 = vsel %vm2882, %v2877, %v2761
        %v2887 = vsel %vm2882, %v2878, %v2763
        %v2888 = vsel %vm2882, %v2879, %v2765
        %v2889 = vsel %vm2882, %v2880, %v2767
        %v2890 = vsel %vm2882, %v2881, %v2769
        %vm2891 = vcmask 392192
        %v2892 = vsel %vm2891, %v2883, %v2779
        %v2893 = vsel %vm2891, %v2884, %v2781
        %v2894 = vsel %vm2891, %v2885, %v2783
        %v2895 = vsel %vm2891, %v2886, %v2785
        %v2896 = vsel %vm2891, %v2887, %v2787
        %v2897 = vsel %vm2891, %v2888, %v2789
        %v2898 = vsel %vm2891, %v2889, %v2791
        %v2899 = vsel %vm2891, %v2890, %v2793
        %vm2900 = vcmask 457728
        %v2901 = vsel %vm2900, %v2892, %v2803
        %v2902 = vsel %vm2900, %v2893, %v2805
        %v2903 = vsel %vm2900, %v2894, %v2807
        %v2904 = vsel %vm2900, %v2895, %v2809
        %v2905 = vsel %vm2900, %v2896, %v2811
        %v2906 = vsel %vm2900, %v2897, %v2813
        %v2907 = vsel %vm2900, %v2898, %v2815
        %v2908 = vsel %vm2900, %v2899, %v2817
        %v2909 = vsel %vm2440, %v2901, %v2827
        %v2910 = vsel %vm2440, %v2902, %v2829
        %v2911 = vsel %vm2440, %v2903, %v2831
        %v2912 = vsel %vm2440, %v2904, %v2833
        %v2913 = vsel %vm2440, %v2905, %v2835
        %v2914 = vsel %vm2440, %v2906, %v2837
        %v2915 = vsel %vm2440, %v2907, %v2839
        %v2916 = vsel %vm2440, %v2908, %v2841
        %v2917 = vld [vmem:[%s6] sm:$0xff]
        %v2918 = vld [vmem:[%s6 + $0x8] sm:$0xff]
        %v2919 = vld [vmem:[%s6 + $0x10] sm:$0xff]
        %v2920 = vld [vmem:[%s6 + $0x18] sm:$0xff]
        %v2921 = vld [vmem:[%s6 + $0x20] sm:$0xff]
        %v2922 = vld [vmem:[%s6 + $0x28] sm:$0xff]
        %v2923 = vld [vmem:[%s6 + $0x30] sm:$0xff]
        %v2924 = vld [vmem:[%s6 + $0x38] sm:$0xff]
        %v2925 = vld [vmem:[%s6 + $0x40] sm:$0xff]
        %vm2926 = vcmask 588800
        %v2928 = vsel %vm2926, %v2909, 0
        %v2931 = vsel %vm2926, %v2910, 0
        %v2934 = vsel %vm2926, %v2911, 0
        %v2937 = vsel %vm2926, %v2912, 0
        %v2940 = vsel %vm2926, %v2913, 0
        %v2943 = vsel %vm2926, %v2914, 0
        %v2946 = vsel %vm2926, %v2915, 0
        %v2949 = vsel %vm2926, %v2916, 0
        %2951 = vmatpush.msra.mxu0 0.0
        %2952 = vmatpush.msra.mxu0 0.0
        %2953 = vmatpush.msra.mxu0 0.0
        %2954 = vmatpush.msra.mxu0 0.0
        %2955 = vmatpush.msra.mxu0 0.0
        %2956 = vmatpush.msra.mxu0 0.0
        %2957 = vmatpush.msra.mxu0 0.0
        %2958 = vmatpush.msra.mxu0 %v2925
        %2959 = vmatpush.msra.mxu0 %v2924
        %2960 = vmatpush.msra.mxu0 %v2923
        %2961 = vmatpush.msra.mxu0 %v2922
        %2962 = vmatpush.msra.mxu0 %v2921
        %2963 = vmatpush.msra.mxu0 %v2920
        %2964 = vmatpush.msra.mxu0 %v2919
        %2965 = vmatpush.msra.mxu0 %v2918
        %2966 = vmatpush.msra.mxu0 %v2917
        %2967 = vmatmul.f32.gmra.mxu0 %v2928
        %v2968 = vpop.f32.mrf.mxu0
        %v2969 = vadd.f32 0.0, %v2968
        %2970 = vmatmul.f32.gmra.mxu0 %v2931
        %v2971 = vpop.f32.mrf.mxu0
        %v2972 = vadd.f32 0.0, %v2971
        %2973 = vmatmul.f32.gmra.mxu0 %v2934
        %v2974 = vpop.f32.mrf.mxu0
        %v2975 = vadd.f32 0.0, %v2974
        %2976 = vmatmul.f32.gmra.mxu0 %v2937
        %v2977 = vpop.f32.mrf.mxu0
        %v2978 = vadd.f32 0.0, %v2977
        %2979 = vmatmul.f32.gmra.mxu0 %v2940
        %v2980 = vpop.f32.mrf.mxu0
        %v2981 = vadd.f32 0.0, %v2980
        %2982 = vmatmul.f32.gmra.mxu0 %v2943
        %v2983 = vpop.f32.mrf.mxu0
        %v2984 = vadd.f32 0.0, %v2983
        %2985 = vmatmul.f32.gmra.mxu0 %v2946
        %v2986 = vpop.f32.mrf.mxu0
        %v2987 = vadd.f32 0.0, %v2986
        %2988 = vmatmul.f32.gmra.mxu0 %v2949
        %v2989 = vpop.f32.mrf.mxu0
        %v2990 = vadd.f32 0.0, %v2989
        %2991 = vdwg.mxu0
        %v2992 = vld [vmem:[%s7] sm:$0x1]
        %v2994 = vperm.slane %v2992, 0
        %v2996 = vmul.f32 %v2969, %v2994
        %v2997 = vmul.f32 %v2972, %v2994
        %v2998 = vmul.f32 %v2975, %v2994
        %v2999 = vmul.f32 %v2978, %v2994
        %v3000 = vmul.f32 %v2981, %v2994
        %v3001 = vmul.f32 %v2984, %v2994
        %v3002 = vmul.f32 %v2987, %v2994
        %v3003 = vmul.f32 %v2990, %v2994
        %v3004 = vld [vmem:[%s8] sm:$0x1]
        %v3006 = vperm.slane %v3004, 0
        %v3008 = vadd.f32 %v2996, %v3006
        %v3009 = vadd.f32 %v2997, %v3006
        %v3010 = vadd.f32 %v2998, %v3006
        %v3011 = vadd.f32 %v2999, %v3006
        %v3012 = vadd.f32 %v3000, %v3006
        %v3013 = vadd.f32 %v3001, %v3006
        %v3014 = vadd.f32 %v3002, %v3006
        %v3015 = vadd.f32 %v3003, %v3006
        %3016 = vmatpush.msra.mxu0 %v725
        %3017 = vmatpush.msra.mxu0 %v723
        %3018 = vmatpush.msra.mxu0 %v720
        %3019 = vmatpush.msra.mxu0 %v718
        %3020 = vmatpush.msra.mxu0 %v715
        %3021 = vmatpush.msra.mxu0 %v713
        %3022 = vmatpush.msra.mxu0 %v710
        %3023 = vmatpush.msra.mxu0 %v708
        %3024 = vmatpush.msra.mxu0 %v705
        %3025 = vmatpush.msra.mxu0 %v703
        %3026 = vmatpush.msra.mxu0 %v700
        %3027 = vmatpush.msra.mxu0 %v698
        %3028 = vmatpush.msra.mxu0 %v695
        %3029 = vmatpush.msra.mxu0 %v693
        %3030 = vmatpush.msra.mxu0 %v690
        %3031 = vmatpush.msra.mxu0 %v688
        %3032 = vmatmul.f32.gmra.mxu0 %v2290
        %v3033 = vpop.f32.mrf.mxu0
        %v3034 = vadd.f32 0.0, %v3033
        %3035 = vmatmul.f32.gmra.mxu0 %v2292
        %v3036 = vpop.f32.mrf.mxu0
        %v3037 = vadd.f32 0.0, %v3036
        %3038 = vmatmul.f32.gmra.mxu0 %v2294
        %v3039 = vpop.f32.mrf.mxu0
        %v3040 = vadd.f32 0.0, %v3039
        %3041 = vmatmul.f32.gmra.mxu0 %v2296
        %v3042 = vpop.f32.mrf.mxu0
        %v3043 = vadd.f32 0.0, %v3042
        %3044 = vmatmul.f32.gmra.mxu0 %v2298
        %v3045 = vpop.f32.mrf.mxu0
        %v3046 = vadd.f32 0.0, %v3045
        %3047 = vmatmul.f32.gmra.mxu0 %v2300
        %v3048 = vpop.f32.mrf.mxu0
        %v3049 = vadd.f32 0.0, %v3048
        %3050 = vmatmul.f32.gmra.mxu0 %v2302
        %v3051 = vpop.f32.mrf.mxu0
        %v3052 = vadd.f32 0.0, %v3051
        %3053 = vmatmul.f32.gmra.mxu0 %v2304
        %v3054 = vpop.f32.mrf.mxu0
        %v3055 = vadd.f32 0.0, %v3054
        %3056 = vdwg.mxu0
        %3057 = vmatpush.msra.mxu0 %v765
        %3058 = vmatpush.msra.mxu0 %v763
        %3059 = vmatpush.msra.mxu0 %v760
        %3060 = vmatpush.msra.mxu0 %v758
        %3061 = vmatpush.msra.mxu0 %v755
        %3062 = vmatpush.msra.mxu0 %v753
        %3063 = vmatpush.msra.mxu0 %v750
        %3064 = vmatpush.msra.mxu0 %v748
        %3065 = vmatpush.msra.mxu0 %v745
        %3066 = vmatpush.msra.mxu0 %v743
        %3067 = vmatpush.msra.mxu0 %v740
        %3068 = vmatpush.msra.mxu0 %v738
        %3069 = vmatpush.msra.mxu0 %v735
        %3070 = vmatpush.msra.mxu0 %v733
        %3071 = vmatpush.msra.mxu0 %v730
        %3072 = vmatpush.msra.mxu0 %v728
        %3073 = vmatmul.f32.gmra.mxu0 %v2291
        %v3074 = vpop.f32.mrf.mxu0
        %v3075 = vadd.f32 %v3034, %v3074
        %3076 = vmatmul.f32.gmra.mxu0 %v2293
        %v3077 = vpop.f32.mrf.mxu0
        %v3078 = vadd.f32 %v3037, %v3077
        %3079 = vmatmul.f32.gmra.mxu0 %v2295
        %v3080 = vpop.f32.mrf.mxu0
        %v3081 = vadd.f32 %v3040, %v3080
        %3082 = vmatmul.f32.gmra.mxu0 %v2297
        %v3083 = vpop.f32.mrf.mxu0
        %v3084 = vadd.f32 %v3043, %v3083
        %3085 = vmatmul.f32.gmra.mxu0 %v2299
        %v3086 = vpop.f32.mrf.mxu0
        %v3087 = vadd.f32 %v3046, %v3086
        %3088 = vmatmul.f32.gmra.mxu0 %v2301
        %v3089 = vpop.f32.mrf.mxu0
        %v3090 = vadd.f32 %v3049, %v3089
        %3091 = vmatmul.f32.gmra.mxu0 %v2303
        %v3092 = vpop.f32.mrf.mxu0
        %v3093 = vadd.f32 %v3052, %v3092
        %3094 = vmatmul.f32.gmra.mxu0 %v2305
        %v3095 = vpop.f32.mrf.mxu0
        %v3096 = vadd.f32 %v3055, %v3095
        %3097 = vdwg.mxu0
        %v3098 = vld [vmem:[%s9] sm:$0xf]
        %v3100 = vsel %vm798, %v3075, 0
        %v3103 = vsel %vm798, %v3078, 0
        %v3106 = vsel %vm798, %v3081, 0
        %v3109 = vsel %vm798, %v3084, 0
        %v3112 = vsel %vm798, %v3087, 0
        %v3115 = vsel %vm798, %v3090, 0
        %v3118 = vsel %vm798, %v3093, 0
        %v3121 = vsel %vm798, %v3096, 0
        %v3124 = vsel %vm873, %v3098, 0
        %3126 = vmatpush.msra.mxu0 0.0
        %3127 = vmatpush.msra.mxu0 0.0
        %3128 = vmatpush.msra.mxu0 0.0
        %3129 = vmatpush.msra.mxu0 0.0
        %3130 = vmatpush.msra.mxu0 0.0
        %3131 = vmatpush.msra.mxu0 0.0
        %3132 = vmatpush.msra.mxu0 0.0
        %3133 = vmatpush.msra.mxu0 0.0
        %3134 = vmatpush.msra.mxu0 0.0
        %3135 = vmatpush.msra.mxu0 0.0
        %3136 = vmatpush.msra.mxu0 0.0
        %3137 = vmatpush.msra.mxu0 0.0
        %3138 = vmatpush.msra.mxu0 0.0
        %3139 = vmatpush.msra.mxu0 0.0
        %3140 = vmatpush.msra.mxu0 0.0
        %3141 = vmatpush.msra.mxu0 %v3124
        %3142 = vmatmul.f32.gmra.mxu0 %v3100
        %v3143 = vpop.f32.mrf.mxu0
        %v3144 = vadd.f32 0.0, %v3143
        %3145 = vmatmul.f32.gmra.mxu0 %v3103
        %v3146 = vpop.f32.mrf.mxu0
        %v3147 = vadd.f32 0.0, %v3146
        %3148 = vmatmul.f32.gmra.mxu0 %v3106
        %v3149 = vpop.f32.mrf.mxu0
        %v3150 = vadd.f32 0.0, %v3149
        %3151 = vmatmul.f32.gmra.mxu0 %v3109
        %v3152 = vpop.f32.mrf.mxu0
        %v3153 = vadd.f32 0.0, %v3152
        %3154 = vmatmul.f32.gmra.mxu0 %v3112
        %v3155 = vpop.f32.mrf.mxu0
        %v3156 = vadd.f32 0.0, %v3155
        %3157 = vmatmul.f32.gmra.mxu0 %v3115
        %v3158 = vpop.f32.mrf.mxu0
        %v3159 = vadd.f32 0.0, %v3158
        %3160 = vmatmul.f32.gmra.mxu0 %v3118
        %v3161 = vpop.f32.mrf.mxu0
        %v3162 = vadd.f32 0.0, %v3161
        %3163 = vmatmul.f32.gmra.mxu0 %v3121
        %v3164 = vpop.f32.mrf.mxu0
        %v3165 = vadd.f32 0.0, %v3164
        %3166 = vdwg.mxu0
        %v3167 = vld [vmem:[%s10] sm:$0x1]
        %v3169 = vperm.slane %v3167, 0
        %v3171 = vmul.f32 %v3144, %v3169
        %v3172 = vmul.f32 %v3147, %v3169
        %v3173 = vmul.f32 %v3150, %v3169
        %v3174 = vmul.f32 %v3153, %v3169
        %v3175 = vmul.f32 %v3156, %v3169
        %v3176 = vmul.f32 %v3159, %v3169
        %v3177 = vmul.f32 %v3162, %v3169
        %v3178 = vmul.f32 %v3165, %v3169
        %v3179 = vld [vmem:[%s11] sm:$0x1]
        %v3181 = vperm.slane %v3179, 0
        %v3183 = vadd.f32 %v3171, %v3181
        %v3184 = vadd.f32 %v3172, %v3181
        %v3185 = vadd.f32 %v3173, %v3181
        %v3186 = vadd.f32 %v3174, %v3181
        %v3187 = vadd.f32 %v3175, %v3181
        %v3188 = vadd.f32 %v3176, %v3181
        %v3189 = vadd.f32 %v3177, %v3181
        %v3190 = vadd.f32 %v3178, %v3181
        %s3191 = vtos %v931
        %v3192 = vstv %s3191
        %v3194 = vmul.f32 %v3008, %v3192
        %v3195 = vmul.f32 %v3009, %v3192
        %v3196 = vmul.f32 %v3010, %v3192
        %v3197 = vmul.f32 %v3011, %v3192
        %v3198 = vmul.f32 %v3012, %v3192
        %v3199 = vmul.f32 %v3013, %v3192
        %v3200 = vmul.f32 %v3014, %v3192
        %v3201 = vmul.f32 %v3015, %v3192
        %v3202 = vadd.f32 %v3183, %v3194
        %v3203 = vadd.f32 %v3184, %v3195
        %v3204 = vadd.f32 %v3185, %v3196
        %v3205 = vadd.f32 %v3186, %v3197
        %v3206 = vadd.f32 %v3187, %v3198
        %v3207 = vadd.f32 %v3188, %v3199
        %v3208 = vadd.f32 %v3189, %v3200
        %v3209 = vadd.f32 %v3190, %v3201
        %v3210 = vmax.f32 %v3202, 0.0
        %v3211 = vmax.f32 %v3203, 0.0
        %v3212 = vmax.f32 %v3204, 0.0
        %v3213 = vmax.f32 %v3205, 0.0
        %v3214 = vmax.f32 %v3206, 0.0
        %v3215 = vmax.f32 %v3207, 0.0
        %v3216 = vmax.f32 %v3208, 0.0
        %v3217 = vmax.f32 %v3209, 0.0
        %3218 = vst.msk [vmem:[%s569] sm:$0xff] %vm1842, %v3210
        %3219 = vst.msk [vmem:[%s569 + $0x8] sm:$0xff] %vm1842, %v3211
        %3220 = vst.msk [vmem:[%s569 + $0x10] sm:$0xff] %vm1842, %v3212
        %3221 = vst.msk [vmem:[%s569 + $0x18] sm:$0xff] %vm1842, %v3213
        %3222 = vst.msk [vmem:[%s569 + $0x20] sm:$0xff] %vm1842, %v3214
        %3223 = vst.msk [vmem:[%s569 + $0x28] sm:$0xff] %vm1842, %v3215
        %3224 = vst.msk [vmem:[%s569 + $0x30] sm:$0xff] %vm1842, %v3216
        %3225 = vst.msk [vmem:[%s569 + $0x38] sm:$0xff] %vm1842, %v3217
        %s3226 = sand.u32 %s403, 1
        %s3227 = scalar_lea.sflag [#allocation3], %s3226
        %s3228 = sand.u32 %s403, 1
        %s3229 = smul.addr %s3228, 64
        %s3230 = scalar_lea.vmem [#allocation2], %s3229
        %p3231 = scmp.lt.s32.totalorder %s33, 1
        %s3232 = scalar_select %p3231, %s33, 1
        %s3233 = scalar_lea.vmem %s18, %s3232
        // Predicated region
        $region89: #{basic_block_forward.1} parent=87 // pred_check
          %p3234 = pneg %p413
        $region90: #{basic_block_forward.1} parent=87 // pred_check_branch
          %3236 = sbr.rel (%p3234) target = $region92
        $region91: #{basic_block_forward.1} parent=87 // pred_region
          %3238 = vsyncadd %s3227, 0
          %s3239 = smul.addr %s33, 8
          %s3240 = smul.addr %s3239, 8
          %s3241 = scalar_lea.hbm %s17, %s3240
          %s3242 = sshll.u32 %s3230, 4
          %s3243 = int_to_ptr.vmem [resolvable:$true] %s3242
          %s3244 = sshll.u32 %s3241, 4
          %s3245 = int_to_ptr.hbm [resolvable:$true] %s3244
          %3250 = dma.vmem_to_hbm [thread:$0]  %s3243, 1024, %s3245, %s3227, 128, 128, 8
        $region92: #{basic_block_forward.1} parent=87 // pred_fallthru
          _
        // Predicated region
        $region93: #{basic_block_forward.1} parent=87 // pred_check
          %p3251 = pneg %p439
        $region94: #{basic_block_forward.1} parent=87 // pred_check_branch
          %3253 = sbr.rel (%p3251) target = $region96
        $region95: #{basic_block_forward.1} parent=87 // pred_region
          _
        $region96: #{basic_block_forward.1} parent=87 // pred_fallthru
          _
      $region88: #{basic_block_forward.1} parent=5 // pred_fallthru
        _
      %p3254 = scmp.le.s32.totalorder 2, %s28
      // Predicated region
      $region97: #{basic_block_forward.1} parent=5 // pred_check
        %p3255 = pneg %p3254
      $region98: #{basic_block_forward.1} parent=5 // pred_check_branch
        %3257 = sbr.rel (%p3255) target = $region100
      $region99: #{basic_block_forward.1} parent=5 // pred_region
        %s3258 = ssub.s32 %s28, 2
        // Predicated region
        $region101: #{basic_block_forward.1} parent=99 // pred_check
          %p3259 = pneg %p419
        $region102: #{basic_block_forward.1} parent=99 // pred_check_branch
          %3261 = sbr.rel (%p3259) target = $region104
        $region103: #{basic_block_forward.1} parent=99 // pred_region
          %s3262 = sand.u32 %s404, 1
          %s3263 = scalar_lea.sflag [#allocation3], %s3262
          %s3264 = sand.u32 %s404, 1
          %s3265 = smul.addr %s3264, 64
          %s3266 = scalar_lea.vmem [#allocation2], %s3265
          %3268 = dma.done %s3263, 1024
        $region104: #{basic_block_forward.1} parent=99 // pred_fallthru
          _
        // Predicated region
        $region105: #{basic_block_forward.1} parent=99 // pred_check
          %p3269 = pneg %p445
        $region106: #{basic_block_forward.1} parent=99 // pred_check_branch
          %3271 = sbr.rel (%p3269) target = $region108
        $region107: #{basic_block_forward.1} parent=99 // pred_region
          %p3272 = scmp.lt.s32.totalorder %s34, 1
          %s3273 = scalar_select %p3272, %s34, 1
          %s3274 = scalar_lea.vmem %s18, %s3273
        $region108: #{basic_block_forward.1} parent=99 // pred_fallthru
          _
      $region100: #{basic_block_forward.1} parent=5 // pred_fallthru
        _
    $region6: #{basic_block_forward.1} parent=1 // loop_footer
      %s32 = sadd.s32 1, %s28
    $region7: #{basic_block_forward.1} parent=1 // loop_footer_branch
      %27 = sbr.rel target = $region3
    $region8: #{basic_block_forward.1} parent=1 // loop_exit
      _
    %3275 = vsyncpa [#allocation3], 1
    %s3276 = scalar_lea.sflag [#allocation3], 1
    %3277 = vsyncpa %s3276, 1

</llo_original>
